<compile_context>
chip_gen: v7x
topology: tpu7x:2x2x1
jax: 0.10.0
libtpu: 0.0.40
codegen_flags: <defaults>
</compile_context>

<pallas_src>
import functools

import jax
import jax.numpy as jnp
from jax.experimental import pallas as pl
from jax.experimental.pallas import tpu as pltpu


def _round_up(x, m):
    return (x + m - 1) // m * m


def _pad2(a, rows, cols):
    return jnp.pad(a, ((0, rows - a.shape[0]), (0, cols - a.shape[1])))


def _gelu_tanh(x):
    c = 0.7978845608028654  # sqrt(2/pi)
    x2 = x * x
    return 0.5 * x * (1.0 + jnp.tanh(c * x * (1.0 + 0.044715 * x2)))


def gazenet_kernel(x_ref,
                   w1_ref, b1_ref, w2_ref, b2_ref,
                   gamma_ref, beta_ref,
                   w3_ref, b3_ref, w4_ref, b4_ref,
                   o_ref, *, d_valid):
    """One (block_m, Dp) row block through the whole fused module.

    All padded columns of x / weights / biases / gamma / beta are zero, so the
    padded lanes stay exactly zero through the matmuls; only the LayerNorm
    statistics need explicit masking to the `d_valid` real feature columns.
    """
    x = x_ref[...].astype(jnp.float32)                 # (bm, Dp); pads are 0
    xb = x.astype(jnp.bfloat16)

    # ---- PositionwiseFeedForward: D -> 4*D (ReLU) -> D  (bf16 MXU, f32 acc) ----
    h = jnp.dot(xb, w1_ref[...], preferred_element_type=jnp.float32) + b1_ref[...]
    h = jnp.maximum(h, 0.0)
    y = jnp.dot(h.astype(jnp.bfloat16), w2_ref[...],
                preferred_element_type=jnp.float32) + b2_ref[...]

    # ---- dropout (eval) = identity; residual + LayerNorm over real columns ----
    z = y + x                                          # padded cols stay exactly 0
    inv_d = jnp.float32(1.0 / d_valid)
    mu = jnp.sum(z, axis=-1, keepdims=True) * inv_d    # exact: pads contribute 0
    lane = jax.lax.broadcasted_iota(jnp.int32, z.shape, 1)
    diff = jnp.where(lane < d_valid, z - mu, 0.0)
    var = jnp.sum(diff * diff, axis=-1, keepdims=True) * inv_d
    zn = (z - mu) * jax.lax.rsqrt(var + 1e-5)
    zn = zn * gamma_ref[...] + beta_ref[...]           # padded gamma/beta are 0

    # ---- Mlp: D -> 4*D (GELU tanh) -> D_out ----
    h2 = jnp.dot(zn.astype(jnp.bfloat16), w3_ref[...],
                 preferred_element_type=jnp.float32) + b3_ref[...]
    h2 = _gelu_tanh(h2)
    out = jnp.dot(h2.astype(jnp.bfloat16), w4_ref[...],
                  preferred_element_type=jnp.float32) + b4_ref[...]

    o_ref[...] = out.astype(o_ref.dtype)


def _build_pallas_call(block_m, Mp, Dp, Hp, Op, out_dtype, d_valid,
                       cost, single_buffer_weights):
    if single_buffer_weights:
        # Constant index_map => single buffer is enough (halves weight VMEM).
        def wspec(shape):
            return pl.BlockSpec(shape, lambda i: (0, 0),
                                pipeline_mode=pl.Buffered(1))
    else:
        def wspec(shape):
            return pl.BlockSpec(shape, lambda i: (0, 0))

    return pl.pallas_call(
        functools.partial(gazenet_kernel, d_valid=d_valid),
        out_shape=jax.ShapeDtypeStruct((Mp, Op), out_dtype),
        grid_spec=pltpu.PrefetchScalarGridSpec(
            num_scalar_prefetch=0,
            grid=(Mp // block_m,),
            in_specs=[
                pl.BlockSpec((block_m, Dp), lambda i: (i, 0)),   # x row block
                wspec((Dp, Hp)), wspec((1, Hp)),                 # W1, b1
                wspec((Hp, Dp)), wspec((1, Dp)),                 # W2, b2
                wspec((1, Dp)), wspec((1, Dp)),                  # ln gamma, beta
                wspec((Dp, Hp)), wspec((1, Hp)),                 # W3, b3
                wspec((Hp, Op)), wspec((1, Op)),                 # W4, b4
            ],
            out_specs=pl.BlockSpec((block_m, Op), lambda i: (i, 0)),
        ),
        compiler_params=pltpu.CompilerParams(
            dimension_semantics=("parallel",),      # row blocks are independent
            vmem_limit_bytes=64 * 1024 * 1024,      # above the 32 MiB default
        ),
        cost_estimate=cost,
    )


def gazenet_forward(x, params, *, block_m=128, lane=128):
    """x: (B, N, D) float32. Returns (B, N, D_out)."""
    B, N, D = x.shape
    d_hid = params["w1"].shape[1]
    d_out = params["w4"].shape[1]
    M = B * N

    Mp = _round_up(M, block_m)
    Dp = _round_up(D, lane)
    Hp = _round_up(d_hid, lane)
    Op = _round_up(d_out, lane)

    # Lane-dense, zero-padded operands.  (In production, pre-pad / pre-cast the
    # weights once outside the step function rather than per call.)
    x2 = jnp.pad(x.reshape(M, D).astype(jnp.float32), ((0, Mp - M), (0, Dp - D)))
    bf = jnp.bfloat16
    w1 = _pad2(params["w1"], Dp, Hp).astype(bf)
    b1 = _pad2(params["b1"], 1, Hp)
    w2 = _pad2(params["w2"], Hp, Dp).astype(bf)
    b2 = _pad2(params["b2"], 1, Dp)
    gamma = _pad2(params["gamma"], 1, Dp)
    beta = _pad2(params["beta"], 1, Dp)
    w3 = _pad2(params["w3"], Dp, Hp).astype(bf)
    b3 = _pad2(params["b3"], 1, Hp)
    w4 = _pad2(params["w4"], Hp, Op).astype(bf)
    b4 = _pad2(params["b4"], 1, Op)

    args = (x2, w1, b1, w2, b2, gamma, beta, w3, b3, w4, b4)

    weight_bytes = sum(int(a.size) * a.dtype.itemsize for a in args[1:])
    cost = pl.CostEstimate(
        flops=2 * Mp * (Dp * Hp + Hp * Dp + Dp * Hp + Hp * Op),
        transcendentals=Mp * Hp,                     # tanh in GELU
        bytes_accessed=int(x2.size) * 4 + weight_bytes + Mp * Op * 4,
    )

    try:
        call = _build_pallas_call(block_m, Mp, Dp, Hp, Op, x.dtype, D, cost, True)
        out2 = call(*args)
    except Exception:
        # Fallback if single-buffered constant blocks are not supported by this
        # jax version; semantics are identical, only weight VMEM doubles.
        call = _build_pallas_call(block_m, Mp, Dp, Hp, Op, x.dtype, D, cost, False)
        out2 = call(*args)

    return out2[:M, :d_out].reshape(B, N, d_out)


def gazenet_reference(x, params):
    """Pure-JAX reference mirroring the kernel numerics
    (bf16 matmul inputs, f32 accumulation and f32 elementwise math)."""
    bf = jnp.bfloat16
    mm = lambda a, w: jnp.dot(a.astype(bf), w.astype(bf),
                              preferred_element_type=jnp.float32)
    residual = x
    h = jax.nn.relu(mm(x, params["w1"]) + params["b1"][0])
    y = mm(h, params["w2"]) + params["b2"][0]
    z = y + residual
    mu = jnp.mean(z, axis=-1, keepdims=True)
    var = jnp.mean((z - mu) ** 2, axis=-1, keepdims=True)
    zn = (z - mu) * jax.lax.rsqrt(var + 1e-5) * params["gamma"][0] + params["beta"][0]
    h2 = _gelu_tanh(mm(zn, params["w3"]) + params["b3"][0])
    return mm(h2, params["w4"]) + params["b4"][0]


def init_params(key, d_in, d_out=None):
    d_out = d_in if d_out is None else d_out
    d_hid = 4 * d_in
    ks = jax.random.split(key, 8)
    scale = lambda fan_in: 1.0 / jnp.sqrt(fan_in)
    # Weights stored as (in, out) so the kernel computes x @ W + b
    # (equivalent to PyTorch's x @ W.T + b with W of shape (out, in)).
    return {
        "w1": jax.random.normal(ks[0], (d_in, d_hid), jnp.float32) * scale(d_in),
        "b1": jax.random.normal(ks[1], (1, d_hid), jnp.float32) * 0.01,
        "w2": jax.random.normal(ks[2], (d_hid, d_in), jnp.float32) * scale(d_hid),
        "b2": jax.random.normal(ks[3], (1, d_in), jnp.float32) * 0.01,
        "gamma": jnp.ones((1, d_in), jnp.float32),
        "beta": jnp.zeros((1, d_in), jnp.float32),
        "w3": jax.random.normal(ks[4], (d_in, d_hid), jnp.float32) * scale(d_in),
        "b3": jax.random.normal(ks[5], (1, d_hid), jnp.float32) * 0.01,
        "w4": jax.random.normal(ks[6], (d_hid, d_out), jnp.float32) * scale(d_hid),
        "b4": jax.random.normal(ks[7], (1, d_out), jnp.float32) * 0.01,
    }


if __name__ == "__main__":
    B, N, D = 2, 8, 32          # batch=2, seq=8, d_in=32 (d_hid=128, d_out=d_in)
    key = jax.random.PRNGKey(0)
    kx, kp = jax.random.split(key)
    x = jax.random.normal(kx, (B, N, D), jnp.float32)
    params = init_params(kp, D)

    out = gazenet_forward(x, params)
    out = jax.block_until_ready(out)

    ref = gazenet_reference(x, params)
    assert out.shape == (B, N, D), out.shape
    max_err = float(jnp.max(jnp.abs(out - ref)))
    assert jnp.allclose(out, ref, atol=5e-3, rtol=5e-3), max_err
    print("KERNEL_OK")
</pallas_src>

<mosaic_0001>
module attributes {stable_mosaic.version = 11 : i64} {
  func.func @gazenet_kernel(%arg0: i32, %arg1: memref<128x128xf32, #tpu.memory_space<vmem>>, %arg2: memref<128x128xbf16, #tpu.memory_space<vmem>>, %arg3: memref<1x128xf32, #tpu.memory_space<vmem>>, %arg4: memref<128x128xbf16, #tpu.memory_space<vmem>>, %arg5: memref<1x128xf32, #tpu.memory_space<vmem>>, %arg6: memref<1x128xf32, #tpu.memory_space<vmem>>, %arg7: memref<1x128xf32, #tpu.memory_space<vmem>>, %arg8: memref<128x128xbf16, #tpu.memory_space<vmem>>, %arg9: memref<1x128xf32, #tpu.memory_space<vmem>>, %arg10: memref<128x128xbf16, #tpu.memory_space<vmem>>, %arg11: memref<1x128xf32, #tpu.memory_space<vmem>>, %arg12: memref<128x128xf32, #tpu.memory_space<vmem>>) attributes {dimension_semantics = [#tpu.dimension_semantics<parallel>], iteration_bounds = array<i64: 1>, scalar_prefetch = 0 : i64, scratch_operands = 0 : i64, tpu.core_type = #tpu.core_type<tc>, window_params = [{transform_indices = @transform_0, window_bounds = array<i64: 128, 128>}, {pipeline_mode = #tpu.pipeline_mode<synchronous>, transform_indices = @transform_1, window_bounds = array<i64: 128, 128>}, {pipeline_mode = #tpu.pipeline_mode<synchronous>, transform_indices = @transform_2, window_bounds = array<i64: 1, 128>}, {pipeline_mode = #tpu.pipeline_mode<synchronous>, transform_indices = @transform_3, window_bounds = array<i64: 128, 128>}, {pipeline_mode = #tpu.pipeline_mode<synchronous>, transform_indices = @transform_4, window_bounds = array<i64: 1, 128>}, {pipeline_mode = #tpu.pipeline_mode<synchronous>, transform_indices = @transform_5, window_bounds = array<i64: 1, 128>}, {pipeline_mode = #tpu.pipeline_mode<synchronous>, transform_indices = @transform_6, window_bounds = array<i64: 1, 128>}, {pipeline_mode = #tpu.pipeline_mode<synchronous>, transform_indices = @transform_7, window_bounds = array<i64: 128, 128>}, {pipeline_mode = #tpu.pipeline_mode<synchronous>, transform_indices = @transform_8, window_bounds = array<i64: 1, 128>}, {pipeline_mode = #tpu.pipeline_mode<synchronous>, transform_indices = @transform_9, window_bounds = array<i64: 128, 128>}, {pipeline_mode = #tpu.pipeline_mode<synchronous>, transform_indices = @transform_10, window_bounds = array<i64: 1, 128>}, {transform_indices = @transform_11, window_bounds = array<i64: 128, 128>}]} {
    %c0 = arith.constant 0 : index
    %c0_0 = arith.constant 0 : index
    %0 = vector.load %arg1[%c0, %c0_0] : memref<128x128xf32, #tpu.memory_space<vmem>>, vector<128x128xf32>
    %1 = arith.truncf %0 : vector<128x128xf32> to vector<128x128xbf16>
    %c0_1 = arith.constant 0 : index
    %c0_2 = arith.constant 0 : index
    %2 = vector.load %arg2[%c0_1, %c0_2] : memref<128x128xbf16, #tpu.memory_space<vmem>>, vector<128x128xbf16>
    %cst = arith.constant dense<0.000000e+00> : vector<128x128xf32>
    %3 = tpu.matmul %1, %2, %cst {dimension_numbers = #tpu.dot_dimension_numbers<[1], [0], [0], [1], [0, 0, 1, 1], [], []>} : vector<128x128xbf16>, vector<128x128xbf16>, vector<128x128xf32> -> vector<128x128xf32>
    %c0_3 = arith.constant 0 : index
    %c0_4 = arith.constant 0 : index
    %4 = vector.load %arg3[%c0_3, %c0_4] : memref<1x128xf32, #tpu.memory_space<vmem>>, vector<1x128xf32>
    %5 = vector.broadcast %4 : vector<1x128xf32> to vector<128x128xf32>
    %6 = arith.addf %3, %5 : vector<128x128xf32>
    %cst_5 = arith.constant 0.000000e+00 : f32
    %7 = vector.broadcast %cst_5 : f32 to vector<128x128xf32>
    %8 = arith.maximumf %6, %7 : vector<128x128xf32>
    %9 = arith.truncf %8 : vector<128x128xf32> to vector<128x128xbf16>
    %c0_6 = arith.constant 0 : index
    %c0_7 = arith.constant 0 : index
    %10 = vector.load %arg4[%c0_6, %c0_7] : memref<128x128xbf16, #tpu.memory_space<vmem>>, vector<128x128xbf16>
    %cst_8 = arith.constant dense<0.000000e+00> : vector<128x128xf32>
    %11 = tpu.matmul %9, %10, %cst_8 {dimension_numbers = #tpu.dot_dimension_numbers<[1], [0], [0], [1], [0, 0, 1, 1], [], []>} : vector<128x128xbf16>, vector<128x128xbf16>, vector<128x128xf32> -> vector<128x128xf32>
    %c0_9 = arith.constant 0 : index
    %c0_10 = arith.constant 0 : index
    %12 = vector.load %arg5[%c0_9, %c0_10] : memref<1x128xf32, #tpu.memory_space<vmem>>, vector<1x128xf32>
    %13 = vector.broadcast %12 : vector<1x128xf32> to vector<128x128xf32>
    %14 = arith.addf %11, %13 : vector<128x128xf32>
    %15 = arith.addf %14, %0 : vector<128x128xf32>
    %cst_11 = arith.constant dense<0.000000e+00> : vector<128xf32>
    %16 = vector.multi_reduction <add>, %15, %cst_11 [1] : vector<128x128xf32> to vector<128xf32>
    %17 = vector.shape_cast %16 : vector<128xf32> to vector<128x1xf32>
    %cst_12 = arith.constant 3.125000e-02 : f32
    %18 = vector.broadcast %cst_12 : f32 to vector<128x1xf32>
    %19 = arith.mulf %17, %18 : vector<128x1xf32>
    %20 = tpu.iota {dimensions = array<i32: 1>} : vector<128x128xi32>
    %c32_i32 = arith.constant 32 : i32
    %21 = vector.broadcast %c32_i32 : i32 to vector<128x128xi32>
    %22 = arith.cmpi slt, %20, %21 : vector<128x128xi32>
    %23 = vector.broadcast %19 : vector<128x1xf32> to vector<128x128xf32>
    %24 = arith.subf %15, %23 : vector<128x128xf32>
    %cst_13 = arith.constant 0.000000e+00 : f32
    %25 = vector.broadcast %cst_13 : f32 to vector<128x128xf32>
    %26 = arith.select %22, %24, %25 : vector<128x128xi1>, vector<128x128xf32>
    %27 = arith.mulf %26, %26 : vector<128x128xf32>
    %cst_14 = arith.constant dense<0.000000e+00> : vector<128xf32>
    %28 = vector.multi_reduction <add>, %27, %cst_14 [1] : vector<128x128xf32> to vector<128xf32>
    %29 = vector.shape_cast %28 : vector<128xf32> to vector<128x1xf32>
    %cst_15 = arith.constant 3.125000e-02 : f32
    %30 = vector.broadcast %cst_15 : f32 to vector<128x1xf32>
    %31 = arith.mulf %29, %30 : vector<128x1xf32>
    %32 = vector.broadcast %19 : vector<128x1xf32> to vector<128x128xf32>
    %33 = arith.subf %15, %32 : vector<128x128xf32>
    %cst_16 = arith.constant 9.99999974E-6 : f32
    %34 = vector.broadcast %cst_16 : f32 to vector<128x1xf32>
    %35 = arith.addf %31, %34 : vector<128x1xf32>
    %36 = math.rsqrt %35 : vector<128x1xf32>
    %37 = vector.broadcast %36 : vector<128x1xf32> to vector<128x128xf32>
    %38 = arith.mulf %33, %37 : vector<128x128xf32>
    %c0_17 = arith.constant 0 : index
    %c0_18 = arith.constant 0 : index
    %39 = vector.load %arg6[%c0_17, %c0_18] : memref<1x128xf32, #tpu.memory_space<vmem>>, vector<1x128xf32>
    %40 = vector.broadcast %39 : vector<1x128xf32> to vector<128x128xf32>
    %41 = arith.mulf %38, %40 : vector<128x128xf32>
    %c0_19 = arith.constant 0 : index
    %c0_20 = arith.constant 0 : index
    %42 = vector.load %arg7[%c0_19, %c0_20] : memref<1x128xf32, #tpu.memory_space<vmem>>, vector<1x128xf32>
    %43 = vector.broadcast %42 : vector<1x128xf32> to vector<128x128xf32>
    %44 = arith.addf %41, %43 : vector<128x128xf32>
    %45 = arith.truncf %44 : vector<128x128xf32> to vector<128x128xbf16>
    %c0_21 = arith.constant 0 : index
    %c0_22 = arith.constant 0 : index
    %46 = vector.load %arg8[%c0_21, %c0_22] : memref<128x128xbf16, #tpu.memory_space<vmem>>, vector<128x128xbf16>
    %cst_23 = arith.constant dense<0.000000e+00> : vector<128x128xf32>
    %47 = tpu.matmul %45, %46, %cst_23 {dimension_numbers = #tpu.dot_dimension_numbers<[1], [0], [0], [1], [0, 0, 1, 1], [], []>} : vector<128x128xbf16>, vector<128x128xbf16>, vector<128x128xf32> -> vector<128x128xf32>
    %c0_24 = arith.constant 0 : index
    %c0_25 = arith.constant 0 : index
    %48 = vector.load %arg9[%c0_24, %c0_25] : memref<1x128xf32, #tpu.memory_space<vmem>>, vector<1x128xf32>
    %49 = vector.broadcast %48 : vector<1x128xf32> to vector<128x128xf32>
    %50 = arith.addf %47, %49 : vector<128x128xf32>
    %51 = arith.mulf %50, %50 : vector<128x128xf32>
    %cst_26 = arith.constant 5.000000e-01 : f32
    %52 = vector.broadcast %cst_26 : f32 to vector<128x128xf32>
    %53 = arith.mulf %52, %50 : vector<128x128xf32>
    %cst_27 = arith.constant 0.797884583 : f32
    %54 = vector.broadcast %cst_27 : f32 to vector<128x128xf32>
    %55 = arith.mulf %54, %50 : vector<128x128xf32>
    %cst_28 = arith.constant 4.471500e-02 : f32
    %56 = vector.broadcast %cst_28 : f32 to vector<128x128xf32>
    %57 = arith.mulf %56, %51 : vector<128x128xf32>
    %cst_29 = arith.constant 1.000000e+00 : f32
    %58 = vector.broadcast %cst_29 : f32 to vector<128x128xf32>
    %59 = arith.addf %58, %57 : vector<128x128xf32>
    %60 = arith.mulf %55, %59 : vector<128x128xf32>
    %61 = math.tanh %60 : vector<128x128xf32>
    %cst_30 = arith.constant 1.000000e+00 : f32
    %62 = vector.broadcast %cst_30 : f32 to vector<128x128xf32>
    %63 = arith.addf %62, %61 : vector<128x128xf32>
    %64 = arith.mulf %53, %63 : vector<128x128xf32>
    %65 = arith.truncf %64 : vector<128x128xf32> to vector<128x128xbf16>
    %c0_31 = arith.constant 0 : index
    %c0_32 = arith.constant 0 : index
    %66 = vector.load %arg10[%c0_31, %c0_32] : memref<128x128xbf16, #tpu.memory_space<vmem>>, vector<128x128xbf16>
    %cst_33 = arith.constant dense<0.000000e+00> : vector<128x128xf32>
    %67 = tpu.matmul %65, %66, %cst_33 {dimension_numbers = #tpu.dot_dimension_numbers<[1], [0], [0], [1], [0, 0, 1, 1], [], []>} : vector<128x128xbf16>, vector<128x128xbf16>, vector<128x128xf32> -> vector<128x128xf32>
    %c0_34 = arith.constant 0 : index
    %c0_35 = arith.constant 0 : index
    %68 = vector.load %arg11[%c0_34, %c0_35] : memref<1x128xf32, #tpu.memory_space<vmem>>, vector<1x128xf32>
    %69 = vector.broadcast %68 : vector<1x128xf32> to vector<128x128xf32>
    %70 = arith.addf %67, %69 : vector<128x128xf32>
    %c0_36 = arith.constant 0 : index
    %c0_37 = arith.constant 0 : index
    %71 = vector.load %arg12[%c0_36, %c0_37] : memref<128x128xf32, #tpu.memory_space<vmem>>, vector<128x128xf32>
    tpu.vector_store %arg12[%c0_36, %c0_37], %70 {strides = array<i32>} : memref<128x128xf32, #tpu.memory_space<vmem>>, vector<128x128xf32>,
    return
  }
  func.func @transform_0(%arg0: i32) -> (i32, i32) {
    %c0_i32 = arith.constant 0 : i32
    %c0_i32_0 = arith.constant 0 : i32
    return %arg0, %c0_i32 : i32, i32
  }
  func.func @transform_1(%arg0: i32) -> (i32, i32) {
    %c0_i32 = arith.constant 0 : i32
    %c0_i32_0 = arith.constant 0 : i32
    %c0_i32_1 = arith.constant 0 : i32
    return %c0_i32, %c0_i32_0 : i32, i32
  }
  func.func @transform_2(%arg0: i32) -> (i32, i32) {
    %c0_i32 = arith.constant 0 : i32
    %c0_i32_0 = arith.constant 0 : i32
    %c0_i32_1 = arith.constant 0 : i32
    return %c0_i32, %c0_i32_0 : i32, i32
  }
  func.func @transform_3(%arg0: i32) -> (i32, i32) {
    %c0_i32 = arith.constant 0 : i32
    %c0_i32_0 = arith.constant 0 : i32
    %c0_i32_1 = arith.constant 0 : i32
    return %c0_i32, %c0_i32_0 : i32, i32
  }
  func.func @transform_4(%arg0: i32) -> (i32, i32) {
    %c0_i32 = arith.constant 0 : i32
    %c0_i32_0 = arith.constant 0 : i32
    %c0_i32_1 = arith.constant 0 : i32
    return %c0_i32, %c0_i32_0 : i32, i32
  }
  func.func @transform_5(%arg0: i32) -> (i32, i32) {
    %c0_i32 = arith.constant 0 : i32
    %c0_i32_0 = arith.constant 0 : i32
    %c0_i32_1 = arith.constant 0 : i32
    return %c0_i32, %c0_i32_0 : i32, i32
  }
  func.func @transform_6(%arg0: i32) -> (i32, i32) {
    %c0_i32 = arith.constant 0 : i32
    %c0_i32_0 = arith.constant 0 : i32
    %c0_i32_1 = arith.constant 0 : i32
    return %c0_i32, %c0_i32_0 : i32, i32
  }
  func.func @transform_7(%arg0: i32) -> (i32, i32) {
    %c0_i32 = arith.constant 0 : i32
    %c0_i32_0 = arith.constant 0 : i32
    %c0_i32_1 = arith.constant 0 : i32
    return %c0_i32, %c0_i32_0 : i32, i32
  }
  func.func @transform_8(%arg0: i32) -> (i32, i32) {
    %c0_i32 = arith.constant 0 : i32
    %c0_i32_0 = arith.constant 0 : i32
    %c0_i32_1 = arith.constant 0 : i32
    return %c0_i32, %c0_i32_0 : i32, i32
  }
  func.func @transform_9(%arg0: i32) -> (i32, i32) {
    %c0_i32 = arith.constant 0 : i32
    %c0_i32_0 = arith.constant 0 : i32
    %c0_i32_1 = arith.constant 0 : i32
    return %c0_i32, %c0_i32_0 : i32, i32
  }
  func.func @transform_10(%arg0: i32) -> (i32, i32) {
    %c0_i32 = arith.constant 0 : i32
    %c0_i32_0 = arith.constant 0 : i32
    %c0_i32_1 = arith.constant 0 : i32
    return %c0_i32, %c0_i32_0 : i32, i32
  }
  func.func @transform_11(%arg0: i32) -> (i32, i32) {
    %c0_i32 = arith.constant 0 : i32
    %c0_i32_0 = arith.constant 0 : i32
    return %arg0, %c0_i32 : i32, i32
  }
}

module attributes {stable_mosaic.version = 11 : i64} {
  func.func @gazenet_kernel(%arg0: i32, %arg1: memref<128x128xf32, #tpu.memory_space<vmem>>, %arg2: memref<128x128xbf16, #tpu.memory_space<vmem>>, %arg3: memref<1x128xf32, #tpu.memory_space<vmem>>, %arg4: memref<128x128xbf16, #tpu.memory_space<vmem>>, %arg5: memref<1x128xf32, #tpu.memory_space<vmem>>, %arg6: memref<1x128xf32, #tpu.memory_space<vmem>>, %arg7: memref<1x128xf32, #tpu.memory_space<vmem>>, %arg8: memref<128x128xbf16, #tpu.memory_space<vmem>>, %arg9: memref<1x128xf32, #tpu.memory_space<vmem>>, %arg10: memref<128x128xbf16, #tpu.memory_space<vmem>>, %arg11: memref<1x128xf32, #tpu.memory_space<vmem>>, %arg12: memref<128x128xf32, #tpu.memory_space<vmem>>) attributes {dimension_semantics = [#tpu.dimension_semantics<parallel>], iteration_bounds = array<i64: 1>, scalar_prefetch = 0 : i64, scratch_operands = 0 : i64, tpu.core_type = #tpu.core_type<tc>, window_params = [{transform_indices = @transform_0, window_bounds = array<i64: 128, 128>}, {pipeline_mode = #tpu.pipeline_mode<synchronous>, transform_indices = @transform_1, window_bounds = array<i64: 128, 128>}, {pipeline_mode = #tpu.pipeline_mode<synchronous>, transform_indices = @transform_2, window_bounds = array<i64: 1, 128>}, {pipeline_mode = #tpu.pipeline_mode<synchronous>, transform_indices = @transform_3, window_bounds = array<i64: 128, 128>}, {pipeline_mode = #tpu.pipeline_mode<synchronous>, transform_indices = @transform_4, window_bounds = array<i64: 1, 128>}, {pipeline_mode = #tpu.pipeline_mode<synchronous>, transform_indices = @transform_5, window_bounds = array<i64: 1, 128>}, {pipeline_mode = #tpu.pipeline_mode<synchronous>, transform_indices = @transform_6, window_bounds = array<i64: 1, 128>}, {pipeline_mode = #tpu.pipeline_mode<synchronous>, transform_indices = @transform_7, window_bounds = array<i64: 128, 128>}, {pipeline_mode = #tpu.pipeline_mode<synchronous>, transform_indices = @transform_8, window_bounds = array<i64: 1, 128>}, {pipeline_mode = #tpu.pipeline_mode<synchronous>, transform_indices = @transform_9, window_bounds = array<i64: 128, 128>}, {pipeline_mode = #tpu.pipeline_mode<synchronous>, transform_indices = @transform_10, window_bounds = array<i64: 1, 128>}, {transform_indices = @transform_11, window_bounds = array<i64: 128, 128>}]} {
    %c0 = arith.constant 0 : index
    %c0_0 = arith.constant 0 : index
    %0 = vector.load %arg1[%c0, %c0_0] : memref<128x128xf32, #tpu.memory_space<vmem>>, vector<128x128xf32>
    %1 = arith.truncf %0 : vector<128x128xf32> to vector<128x128xbf16>
    %c0_1 = arith.constant 0 : index
    %c0_2 = arith.constant 0 : index
    %2 = vector.load %arg2[%c0_1, %c0_2] : memref<128x128xbf16, #tpu.memory_space<vmem>>, vector<128x128xbf16>
    %cst = arith.constant dense<0.000000e+00> : vector<128x128xf32>
    %3 = tpu.matmul %1, %2, %cst {dimension_numbers = #tpu.dot_dimension_numbers<[1], [0], [0], [1], [0, 0, 1, 1], [], []>} : vector<128x128xbf16>, vector<128x128xbf16>, vector<128x128xf32> -> vector<128x128xf32>
    %c0_3 = arith.constant 0 : index
    %c0_4 = arith.constant 0 : index
    %4 = vector.load %arg3[%c0_3, %c0_4] : memref<1x128xf32, #tpu.memory_space<vmem>>, vector<1x128xf32>
    %5 = vector.broadcast %4 : vector<1x128xf32> to vector<128x128xf32>
    %6 = arith.addf %3, %5 : vector<128x128xf32>
    %cst_5 = arith.constant 0.000000e+00 : f32
    %7 = vector.broadcast %cst_5 : f32 to vector<128x128xf32>
    %8 = arith.maximumf %6, %7 : vector<128x128xf32>
    %9 = arith.truncf %8 : vector<128x128xf32> to vector<128x128xbf16>
    %c0_6 = arith.constant 0 : index
    %c0_7 = arith.constant 0 : index
    %10 = vector.load %arg4[%c0_6, %c0_7] : memref<128x128xbf16, #tpu.memory_space<vmem>>, vector<128x128xbf16>
    %cst_8 = arith.constant dense<0.000000e+00> : vector<128x128xf32>
    %11 = tpu.matmul %9, %10, %cst_8 {dimension_numbers = #tpu.dot_dimension_numbers<[1], [0], [0], [1], [0, 0, 1, 1], [], []>} : vector<128x128xbf16>, vector<128x128xbf16>, vector<128x128xf32> -> vector<128x128xf32>
    %c0_9 = arith.constant 0 : index
    %c0_10 = arith.constant 0 : index
    %12 = vector.load %arg5[%c0_9, %c0_10] : memref<1x128xf32, #tpu.memory_space<vmem>>, vector<1x128xf32>
    %13 = vector.broadcast %12 : vector<1x128xf32> to vector<128x128xf32>
    %14 = arith.addf %11, %13 : vector<128x128xf32>
    %15 = arith.addf %14, %0 : vector<128x128xf32>
    %cst_11 = arith.constant dense<0.000000e+00> : vector<128xf32>
    %16 = vector.multi_reduction <add>, %15, %cst_11 [1] : vector<128x128xf32> to vector<128xf32>
    %17 = vector.shape_cast %16 : vector<128xf32> to vector<128x1xf32>
    %cst_12 = arith.constant 3.125000e-02 : f32
    %18 = vector.broadcast %cst_12 : f32 to vector<128x1xf32>
    %19 = arith.mulf %17, %18 : vector<128x1xf32>
    %20 = tpu.iota {dimensions = array<i32: 1>} : vector<128x128xi32>
    %c32_i32 = arith.constant 32 : i32
    %21 = vector.broadcast %c32_i32 : i32 to vector<128x128xi32>
    %22 = arith.cmpi slt, %20, %21 : vector<128x128xi32>
    %23 = vector.broadcast %19 : vector<128x1xf32> to vector<128x128xf32>
    %24 = arith.subf %15, %23 : vector<128x128xf32>
    %cst_13 = arith.constant 0.000000e+00 : f32
    %25 = vector.broadcast %cst_13 : f32 to vector<128x128xf32>
    %26 = arith.select %22, %24, %25 : vector<128x128xi1>, vector<128x128xf32>
    %27 = arith.mulf %26, %26 : vector<128x128xf32>
    %cst_14 = arith.constant dense<0.000000e+00> : vector<128xf32>
    %28 = vector.multi_reduction <add>, %27, %cst_14 [1] : vector<128x128xf32> to vector<128xf32>
    %29 = vector.shape_cast %28 : vector<128xf32> to vector<128x1xf32>
    %cst_15 = arith.constant 3.125000e-02 : f32
    %30 = vector.broadcast %cst_15 : f32 to vector<128x1xf32>
    %31 = arith.mulf %29, %30 : vector<128x1xf32>
    %32 = vector.broadcast %19 : vector<128x1xf32> to vector<128x128xf32>
    %33 = arith.subf %15, %32 : vector<128x128xf32>
    %cst_16 = arith.constant 9.99999974E-6 : f32
    %34 = vector.broadcast %cst_16 : f32 to vector<128x1xf32>
    %35 = arith.addf %31, %34 : vector<128x1xf32>
    %36 = math.rsqrt %35 : vector<128x1xf32>
    %37 = vector.broadcast %36 : vector<128x1xf32> to vector<128x128xf32>
    %38 = arith.mulf %33, %37 : vector<128x128xf32>
    %c0_17 = arith.constant 0 : index
    %c0_18 = arith.constant 0 : index
    %39 = vector.load %arg6[%c0_17, %c0_18] : memref<1x128xf32, #tpu.memory_space<vmem>>, vector<1x128xf32>
    %40 = vector.broadcast %39 : vector<1x128xf32> to vector<128x128xf32>
    %41 = arith.mulf %38, %40 : vector<128x128xf32>
    %c0_19 = arith.constant 0 : index
    %c0_20 = arith.constant 0 : index
    %42 = vector.load %arg7[%c0_19, %c0_20] : memref<1x128xf32, #tpu.memory_space<vmem>>, vector<1x128xf32>
    %43 = vector.broadcast %42 : vector<1x128xf32> to vector<128x128xf32>
    %44 = arith.addf %41, %43 : vector<128x128xf32>
    %45 = arith.truncf %44 : vector<128x128xf32> to vector<128x128xbf16>
    %c0_21 = arith.constant 0 : index
    %c0_22 = arith.constant 0 : index
    %46 = vector.load %arg8[%c0_21, %c0_22] : memref<128x128xbf16, #tpu.memory_space<vmem>>, vector<128x128xbf16>
    %cst_23 = arith.constant dense<0.000000e+00> : vector<128x128xf32>
    %47 = tpu.matmul %45, %46, %cst_23 {dimension_numbers = #tpu.dot_dimension_numbers<[1], [0], [0], [1], [0, 0, 1, 1], [], []>} : vector<128x128xbf16>, vector<128x128xbf16>, vector<128x128xf32> -> vector<128x128xf32>
    %c0_24 = arith.constant 0 : index
    %c0_25 = arith.constant 0 : index
    %48 = vector.load %arg9[%c0_24, %c0_25] : memref<1x128xf32, #tpu.memory_space<vmem>>, vector<1x128xf32>
    %49 = vector.broadcast %48 : vector<1x128xf32> to vector<128x128xf32>
    %50 = arith.addf %47, %49 : vector<128x128xf32>
    %51 = arith.mulf %50, %50 : vector<128x128xf32>
    %cst_26 = arith.constant 5.000000e-01 : f32
    %52 = vector.broadcast %cst_26 : f32 to vector<128x128xf32>
    %53 = arith.mulf %52, %50 : vector<128x128xf32>
    %cst_27 = arith.constant 0.797884583 : f32
    %54 = vector.broadcast %cst_27 : f32 to vector<128x128xf32>
    %55 = arith.mulf %54, %50 : vector<128x128xf32>
    %cst_28 = arith.constant 4.471500e-02 : f32
    %56 = vector.broadcast %cst_28 : f32 to vector<128x128xf32>
    %57 = arith.mulf %56, %51 : vector<128x128xf32>
    %cst_29 = arith.constant 1.000000e+00 : f32
    %58 = vector.broadcast %cst_29 : f32 to vector<128x128xf32>
    %59 = arith.addf %58, %57 : vector<128x128xf32>
    %60 = arith.mulf %55, %59 : vector<128x128xf32>
    %61 = math.tanh %60 : vector<128x128xf32>
    %cst_30 = arith.constant 1.000000e+00 : f32
    %62 = vector.broadcast %cst_30 : f32 to vector<128x128xf32>
    %63 = arith.addf %62, %61 : vector<128x128xf32>
    %64 = arith.mulf %53, %63 : vector<128x128xf32>
    %65 = arith.truncf %64 : vector<128x128xf32> to vector<128x128xbf16>
    %c0_31 = arith.constant 0 : index
    %c0_32 = arith.constant 0 : index
    %66 = vector.load %arg10[%c0_31, %c0_32] : memref<128x128xbf16, #tpu.memory_space<vmem>>, vector<128x128xbf16>
    %cst_33 = arith.constant dense<0.000000e+00> : vector<128x128xf32>
    %67 = tpu.matmul %65, %66, %cst_33 {dimension_numbers = #tpu.dot_dimension_numbers<[1], [0], [0], [1], [0, 0, 1, 1], [], []>} : vector<128x128xbf16>, vector<128x128xbf16>, vector<128x128xf32> -> vector<128x128xf32>
    %c0_34 = arith.constant 0 : index
    %c0_35 = arith.constant 0 : index
    %68 = vector.load %arg11[%c0_34, %c0_35] : memref<1x128xf32, #tpu.memory_space<vmem>>, vector<1x128xf32>
    %69 = vector.broadcast %68 : vector<1x128xf32> to vector<128x128xf32>
    %70 = arith.addf %67, %69 : vector<128x128xf32>
    %c0_36 = arith.constant 0 : index
    %c0_37 = arith.constant 0 : index
    %71 = vector.load %arg12[%c0_36, %c0_37] : memref<128x128xf32, #tpu.memory_space<vmem>>, vector<128x128xf32>
    tpu.vector_store %arg12[%c0_36, %c0_37], %70 {strides = array<i32>} : memref<128x128xf32, #tpu.memory_space<vmem>>, vector<128x128xf32>,
    return
  }
  func.func @transform_0(%arg0: i32) -> (i32, i32) {
    %c0_i32 = arith.constant 0 : i32
    %c0_i32_0 = arith.constant 0 : i32
    return %arg0, %c0_i32 : i32, i32
  }
  func.func @transform_1(%arg0: i32) -> (i32, i32) {
    %c0_i32 = arith.constant 0 : i32
    %c0_i32_0 = arith.constant 0 : i32
    %c0_i32_1 = arith.constant 0 : i32
    return %c0_i32, %c0_i32_0 : i32, i32
  }
  func.func @transform_2(%arg0: i32) -> (i32, i32) {
    %c0_i32 = arith.constant 0 : i32
    %c0_i32_0 = arith.constant 0 : i32
    %c0_i32_1 = arith.constant 0 : i32
    return %c0_i32, %c0_i32_0 : i32, i32
  }
  func.func @transform_3(%arg0: i32) -> (i32, i32) {
    %c0_i32 = arith.constant 0 : i32
    %c0_i32_0 = arith.constant 0 : i32
    %c0_i32_1 = arith.constant 0 : i32
    return %c0_i32, %c0_i32_0 : i32, i32
  }
  func.func @transform_4(%arg0: i32) -> (i32, i32) {
    %c0_i32 = arith.constant 0 : i32
    %c0_i32_0 = arith.constant 0 : i32
    %c0_i32_1 = arith.constant 0 : i32
    return %c0_i32, %c0_i32_0 : i32, i32
  }
  func.func @transform_5(%arg0: i32) -> (i32, i32) {
    %c0_i32 = arith.constant 0 : i32
    %c0_i32_0 = arith.constant 0 : i32
    %c0_i32_1 = arith.constant 0 : i32
    return %c0_i32, %c0_i32_0 : i32, i32
  }
  func.func @transform_6(%arg0: i32) -> (i32, i32) {
    %c0_i32 = arith.constant 0 : i32
    %c0_i32_0 = arith.constant 0 : i32
    %c0_i32_1 = arith.constant 0 : i32
    return %c0_i32, %c0_i32_0 : i32, i32
  }
  func.func @transform_7(%arg0: i32) -> (i32, i32) {
    %c0_i32 = arith.constant 0 : i32
    %c0_i32_0 = arith.constant 0 : i32
    %c0_i32_1 = arith.constant 0 : i32
    return %c0_i32, %c0_i32_0 : i32, i32
  }
  func.func @transform_8(%arg0: i32) -> (i32, i32) {
    %c0_i32 = arith.constant 0 : i32
    %c0_i32_0 = arith.constant 0 : i32
    %c0_i32_1 = arith.constant 0 : i32
    return %c0_i32, %c0_i32_0 : i32, i32
  }
  func.func @transform_9(%arg0: i32) -> (i32, i32) {
    %c0_i32 = arith.constant 0 : i32
    %c0_i32_0 = arith.constant 0 : i32
    %c0_i32_1 = arith.constant 0 : i32
    return %c0_i32, %c0_i32_0 : i32, i32
  }
  func.func @transform_10(%arg0: i32) -> (i32, i32) {
    %c0_i32 = arith.constant 0 : i32
    %c0_i32_0 = arith.constant 0 : i32
    %c0_i32_1 = arith.constant 0 : i32
    return %c0_i32, %c0_i32_0 : i32, i32
  }
  func.func @transform_11(%arg0: i32) -> (i32, i32) {
    %c0_i32 = arith.constant 0 : i32
    %c0_i32_0 = arith.constant 0 : i32
    return %arg0, %c0_i32 : i32, i32
  }
}

</mosaic_0001>

<llo_original>
// kernel: tpu_custom_call.1
$region0: #{tpu_custom_call.1}
  #allocation0 [shape = 'u32[]', space=smem, size = 0x4, offset = 0x4, fixed_abs, tag = 'smem constant byte address 0x4 - core index']
  #allocation1 [shape = 'u32[144,128]{1,0:T(1,128)}', space=vmem, size = 0x12000, scoped, tag = 'internal scratch']
  %s0 = inlined_call_operand.hbm [shape: f32[128,128], index: 0, kind: input, shape index: {}]
  %s1 = inlined_call_operand.hbm [shape: bf16[128,128], index: 1, kind: input, shape index: {}]
  %s2 = inlined_call_operand.hbm [shape: f32[1,128], index: 2, kind: input, shape index: {}]
  %s3 = inlined_call_operand.hbm [shape: bf16[128,128], index: 3, kind: input, shape index: {}]
  %s4 = inlined_call_operand.hbm [shape: f32[1,128], index: 4, kind: input, shape index: {}]
  %s5 = inlined_call_operand.hbm [shape: f32[1,128], index: 5, kind: input, shape index: {}]
  %s6 = inlined_call_operand.hbm [shape: f32[1,128], index: 6, kind: input, shape index: {}]
  %s7 = inlined_call_operand.hbm [shape: bf16[128,128], index: 7, kind: input, shape index: {}]
  %s8 = inlined_call_operand.hbm [shape: f32[1,128], index: 8, kind: input, shape index: {}]
  %s9 = inlined_call_operand.hbm [shape: bf16[128,128], index: 9, kind: input, shape index: {}]
  %s10 = inlined_call_operand.hbm [shape: f32[1,128], index: 10, kind: input, shape index: {}]
  %s11 = inlined_call_operand.hbm [shape: f32[128,128], index: 11, kind: output, shape index: {}]
  %s12 = sld [smem:[#allocation0]]
  $region98: #{tpu_custom_call.1} parent=0
    _
  %s14 = ssub.s32 1, %s12
  %s15 = scalar_select 0, %s14, %s12
  $region1: #{tpu_custom_call.1} parent=0
    #allocation2 [shape = 'u8[65536]{0}', space=vmem, size = 0x10000, scoped, tag = 'input window, operand 0, single buffered']
    #allocation3 [shape = 's32[1]{0}', space=sflag, size = 0x4, scoped, tag = 'scoped memory for tpu_custom_call.1']
    #allocation4 [shape = 's32[1]{0}', space=sflag, size = 0x4, scoped, tag = 'scoped memory for tpu_custom_call.1']
    #allocation5 [shape = 'u8[32768]{0}', space=vmem, size = 0x8000, scoped, tag = 'input window, operand 1, single buffered']
    #allocation6 [shape = 's32[1]{0}', space=sflag, size = 0x4, scoped, tag = 'scoped memory for tpu_custom_call.1']
    #allocation7 [shape = 'u8[512]{0}', space=vmem, size = 0x400, scoped, tag = 'input window, operand 2, single buffered']
    #allocation8 [shape = 'u8[32768]{0}', space=vmem, size = 0x8000, scoped, tag = 'input window, operand 3, single buffered']
    #allocation9 [shape = 's32[1]{0}', space=sflag, size = 0x4, scoped, tag = 'scoped memory for tpu_custom_call.1']
    #allocation10 [shape = 'u8[512]{0}', space=vmem, size = 0x400, scoped, tag = 'input window, operand 4, single buffered']
    #allocation11 [shape = 'u8[512]{0}', space=vmem, size = 0x400, scoped, tag = 'input window, operand 5, single buffered']
    #allocation12 [shape = 's32[1]{0}', space=sflag, size = 0x4, scoped, tag = 'scoped memory for tpu_custom_call.1']
    #allocation13 [shape = 'u8[512]{0}', space=vmem, size = 0x400, scoped, tag = 'input window, operand 6, single buffered']
    #allocation14 [shape = 'u8[32768]{0}', space=vmem, size = 0x8000, scoped, tag = 'input window, operand 7, single buffered']
    #allocation15 [shape = 's32[1]{0}', space=sflag, size = 0x4, scoped, tag = 'scoped memory for tpu_custom_call.1']
    #allocation16 [shape = 'u8[512]{0}', space=vmem, size = 0x400, scoped, tag = 'input window, operand 8, single buffered']
    #allocation17 [shape = 'u8[32768]{0}', space=vmem, size = 0x8000, scoped, tag = 'input window, operand 9, single buffered']
    #allocation18 [shape = 's32[1]{0}', space=sflag, size = 0x4, scoped, tag = 'scoped memory for tpu_custom_call.1']
    #allocation19 [shape = 'u8[512]{0}', space=vmem, size = 0x400, scoped, tag = 'input window, operand 10, single buffered']
    #allocation20 [shape = 'u8[65536]{0}', space=vmem, size = 0x10000, scoped, tag = 'output window, operand 0, single buffered']
    %16 = vsyncpa [#allocation3], 0
    %17 = vsyncpa [#allocation6], 0
    %18 = vsyncpa [#allocation9], 0
    %19 = vsyncpa [#allocation12], 0
    %20 = vsyncpa [#allocation15], 0
    %21 = vsyncpa [#allocation18], 0
    %22 = vsyncpa [#allocation4], 0
    // Predicated region
    $region2: #{tpu_custom_call.1} parent=1 // pred_check
      _
    $region3: #{tpu_custom_call.1} parent=1 // pred_check_branch
      %24 = sbr.rel (0) target = $region5
    $region4: #{tpu_custom_call.1} parent=1 // pred_region
      %s26 = ssub.s32 2048, 2048
      %27 = vsyncadd [#allocation3], %s26
      %s28 = sshll.u32 [#allocation2], 4
      %s29 = int_to_ptr.vmem [resolvable:$true] %s28
      %34 = dma.hbm_to_vmem [thread:$0]  %s0, 2048, %s29, [#allocation3], 128, 128, 8
    $region5: #{tpu_custom_call.1} parent=1 // pred_fallthru
      _
    // Predicated region
    $region6: #{tpu_custom_call.1} parent=1 // pred_check
      _
    $region7: #{tpu_custom_call.1} parent=1 // pred_check_branch
      %36 = sbr.rel (0) target = $region9
    $region8: #{tpu_custom_call.1} parent=1 // pred_region
      %s38 = ssub.s32 1024, 1024
      %39 = vsyncadd [#allocation6], %s38
      %s40 = sshll.u32 [#allocation5], 4
      %s41 = int_to_ptr.vmem [resolvable:$true] %s40
      %46 = dma.hbm_to_vmem [thread:$0]  %s1, 1024, %s41, [#allocation6], 64, 64, 4
    $region9: #{tpu_custom_call.1} parent=1 // pred_fallthru
      _
    // Predicated region
    $region10: #{tpu_custom_call.1} parent=1 // pred_check
      _
    $region11: #{tpu_custom_call.1} parent=1 // pred_check_branch
      %48 = sbr.rel (0) target = $region13
    $region12: #{tpu_custom_call.1} parent=1 // pred_region
      %s50 = ssub.s32 16, 16
      %51 = vsyncadd [#allocation6], %s50
      %s53 = sshll.u32 [#allocation7], 4
      %s54 = int_to_ptr.vmem [resolvable:$true] %s53
      %56 = dma.hbm_to_vmem [thread:$0]  %s2, 16, %s54, [#allocation6]
    $region13: #{tpu_custom_call.1} parent=1 // pred_fallthru
      _
    // Predicated region
    $region14: #{tpu_custom_call.1} parent=1 // pred_check
      _
    $region15: #{tpu_custom_call.1} parent=1 // pred_check_branch
      %58 = sbr.rel (0) target = $region17
    $region16: #{tpu_custom_call.1} parent=1 // pred_region
      %s60 = ssub.s32 1024, 1024
      %61 = vsyncadd [#allocation9], %s60
      %s62 = sshll.u32 [#allocation8], 4
      %s63 = int_to_ptr.vmem [resolvable:$true] %s62
      %68 = dma.hbm_to_vmem [thread:$0]  %s3, 1024, %s63, [#allocation9], 64, 64, 4
    $region17: #{tpu_custom_call.1} parent=1 // pred_fallthru
      _
    // Predicated region
    $region18: #{tpu_custom_call.1} parent=1 // pred_check
      _
    $region19: #{tpu_custom_call.1} parent=1 // pred_check_branch
      %70 = sbr.rel (0) target = $region21
    $region20: #{tpu_custom_call.1} parent=1 // pred_region
      %s72 = ssub.s32 16, 16
      %73 = vsyncadd [#allocation9], %s72
      %s75 = sshll.u32 [#allocation10], 4
      %s76 = int_to_ptr.vmem [resolvable:$true] %s75
      %78 = dma.hbm_to_vmem [thread:$0]  %s4, 16, %s76, [#allocation9]
    $region21: #{tpu_custom_call.1} parent=1 // pred_fallthru
      _
    // Predicated region
    $region22: #{tpu_custom_call.1} parent=1 // pred_check
      _
    $region23: #{tpu_custom_call.1} parent=1 // pred_check_branch
      %80 = sbr.rel (0) target = $region25
    $region24: #{tpu_custom_call.1} parent=1 // pred_region
      %s82 = ssub.s32 16, 16
      %83 = vsyncadd [#allocation12], %s82
      %s85 = sshll.u32 [#allocation11], 4
      %s86 = int_to_ptr.vmem [resolvable:$true] %s85
      %88 = dma.hbm_to_vmem [thread:$0]  %s5, 16, %s86, [#allocation12]
    $region25: #{tpu_custom_call.1} parent=1 // pred_fallthru
      _
    // Predicated region
    $region26: #{tpu_custom_call.1} parent=1 // pred_check
      _
    $region27: #{tpu_custom_call.1} parent=1 // pred_check_branch
      %90 = sbr.rel (0) target = $region29
    $region28: #{tpu_custom_call.1} parent=1 // pred_region
      %s92 = ssub.s32 16, 16
      %93 = vsyncadd [#allocation12], %s92
      %s95 = sshll.u32 [#allocation13], 4
      %s96 = int_to_ptr.vmem [resolvable:$true] %s95
      %98 = dma.hbm_to_vmem [thread:$0]  %s6, 16, %s96, [#allocation12]
    $region29: #{tpu_custom_call.1} parent=1 // pred_fallthru
      _
    // Predicated region
    $region30: #{tpu_custom_call.1} parent=1 // pred_check
      _
    $region31: #{tpu_custom_call.1} parent=1 // pred_check_branch
      %100 = sbr.rel (0) target = $region33
    $region32: #{tpu_custom_call.1} parent=1 // pred_region
      %s102 = ssub.s32 1024, 1024
      %103 = vsyncadd [#allocation15], %s102
      %s104 = sshll.u32 [#allocation14], 4
      %s105 = int_to_ptr.vmem [resolvable:$true] %s104
      %110 = dma.hbm_to_vmem [thread:$0]  %s7, 1024, %s105, [#allocation15], 64, 64, 4
    $region33: #{tpu_custom_call.1} parent=1 // pred_fallthru
      _
    // Predicated region
    $region34: #{tpu_custom_call.1} parent=1 // pred_check
      _
    $region35: #{tpu_custom_call.1} parent=1 // pred_check_branch
      %112 = sbr.rel (0) target = $region37
    $region36: #{tpu_custom_call.1} parent=1 // pred_region
      %s114 = ssub.s32 16, 16
      %115 = vsyncadd [#allocation15], %s114
      %s117 = sshll.u32 [#allocation16], 4
      %s118 = int_to_ptr.vmem [resolvable:$true] %s117
      %120 = dma.hbm_to_vmem [thread:$0]  %s8, 16, %s118, [#allocation15]
    $region37: #{tpu_custom_call.1} parent=1 // pred_fallthru
      _
    // Predicated region
    $region38: #{tpu_custom_call.1} parent=1 // pred_check
      _
    $region39: #{tpu_custom_call.1} parent=1 // pred_check_branch
      %122 = sbr.rel (0) target = $region41
    $region40: #{tpu_custom_call.1} parent=1 // pred_region
      %s124 = ssub.s32 1024, 1024
      %125 = vsyncadd [#allocation18], %s124
      %s126 = sshll.u32 [#allocation17], 4
      %s127 = int_to_ptr.vmem [resolvable:$true] %s126
      %132 = dma.hbm_to_vmem [thread:$0]  %s9, 1024, %s127, [#allocation18], 64, 64, 4
    $region41: #{tpu_custom_call.1} parent=1 // pred_fallthru
      _
    // Predicated region
    $region42: #{tpu_custom_call.1} parent=1 // pred_check
      _
    $region43: #{tpu_custom_call.1} parent=1 // pred_check_branch
      %134 = sbr.rel (0) target = $region45
    $region44: #{tpu_custom_call.1} parent=1 // pred_region
      %s136 = ssub.s32 16, 16
      %137 = vsyncadd [#allocation18], %s136
      %s139 = sshll.u32 [#allocation19], 4
      %s140 = int_to_ptr.vmem [resolvable:$true] %s139
      %142 = dma.hbm_to_vmem [thread:$0]  %s10, 16, %s140, [#allocation18]
    $region45: #{tpu_custom_call.1} parent=1 // pred_fallthru
      _
    // Predicated region
    $region46: #{tpu_custom_call.1} parent=1 // pred_check
      _
    $region47: #{tpu_custom_call.1} parent=1 // pred_check_branch
      %144 = sbr.rel (0) target = $region49
    $region48: #{tpu_custom_call.1} parent=1 // pred_region
      %145 = dma.done [#allocation3], 2048
    $region49: #{tpu_custom_call.1} parent=1 // pred_fallthru
      _
    // Predicated region
    $region50: #{tpu_custom_call.1} parent=1 // pred_check
      _
    $region51: #{tpu_custom_call.1} parent=1 // pred_check_branch
      %147 = sbr.rel (0) target = $region53
    $region52: #{tpu_custom_call.1} parent=1 // pred_region
      %148 = dma.done [#allocation6], 1024
    $region53: #{tpu_custom_call.1} parent=1 // pred_fallthru
      _
    // Predicated region
    $region54: #{tpu_custom_call.1} parent=1 // pred_check
      _
    $region55: #{tpu_custom_call.1} parent=1 // pred_check_branch
      %150 = sbr.rel (0) target = $region57
    $region56: #{tpu_custom_call.1} parent=1 // pred_region
      %151 = dma.done [#allocation6], 16
    $region57: #{tpu_custom_call.1} parent=1 // pred_fallthru
      _
    // Predicated region
    $region58: #{tpu_custom_call.1} parent=1 // pred_check
      _
    $region59: #{tpu_custom_call.1} parent=1 // pred_check_branch
      %153 = sbr.rel (0) target = $region61
    $region60: #{tpu_custom_call.1} parent=1 // pred_region
      %154 = dma.done [#allocation9], 1024
    $region61: #{tpu_custom_call.1} parent=1 // pred_fallthru
      _
    // Predicated region
    $region62: #{tpu_custom_call.1} parent=1 // pred_check
      _
    $region63: #{tpu_custom_call.1} parent=1 // pred_check_branch
      %156 = sbr.rel (0) target = $region65
    $region64: #{tpu_custom_call.1} parent=1 // pred_region
      %157 = dma.done [#allocation9], 16
    $region65: #{tpu_custom_call.1} parent=1 // pred_fallthru
      _
    // Predicated region
    $region66: #{tpu_custom_call.1} parent=1 // pred_check
      _
    $region67: #{tpu_custom_call.1} parent=1 // pred_check_branch
      %159 = sbr.rel (0) target = $region69
    $region68: #{tpu_custom_call.1} parent=1 // pred_region
      %160 = dma.done [#allocation12], 16
    $region69: #{tpu_custom_call.1} parent=1 // pred_fallthru
      _
    // Predicated region
    $region70: #{tpu_custom_call.1} parent=1 // pred_check
      _
    $region71: #{tpu_custom_call.1} parent=1 // pred_check_branch
      %162 = sbr.rel (0) target = $region73
    $region72: #{tpu_custom_call.1} parent=1 // pred_region
      %163 = dma.done [#allocation12], 16
    $region73: #{tpu_custom_call.1} parent=1 // pred_fallthru
      _
    // Predicated region
    $region74: #{tpu_custom_call.1} parent=1 // pred_check
      _
    $region75: #{tpu_custom_call.1} parent=1 // pred_check_branch
      %165 = sbr.rel (0) target = $region77
    $region76: #{tpu_custom_call.1} parent=1 // pred_region
      %166 = dma.done [#allocation15], 1024
    $region77: #{tpu_custom_call.1} parent=1 // pred_fallthru
      _
    // Predicated region
    $region78: #{tpu_custom_call.1} parent=1 // pred_check
      _
    $region79: #{tpu_custom_call.1} parent=1 // pred_check_branch
      %168 = sbr.rel (0) target = $region81
    $region80: #{tpu_custom_call.1} parent=1 // pred_region
      %169 = dma.done [#allocation15], 16
    $region81: #{tpu_custom_call.1} parent=1 // pred_fallthru
      _
    // Predicated region
    $region82: #{tpu_custom_call.1} parent=1 // pred_check
      _
    $region83: #{tpu_custom_call.1} parent=1 // pred_check_branch
      %171 = sbr.rel (0) target = $region85
    $region84: #{tpu_custom_call.1} parent=1 // pred_region
      %172 = dma.done [#allocation18], 1024
    $region85: #{tpu_custom_call.1} parent=1 // pred_fallthru
      _
    // Predicated region
    $region86: #{tpu_custom_call.1} parent=1 // pred_check
      _
    $region87: #{tpu_custom_call.1} parent=1 // pred_check_branch
      %174 = sbr.rel (0) target = $region89
    $region88: #{tpu_custom_call.1} parent=1 // pred_region
      %175 = dma.done [#allocation18], 16
    $region89: #{tpu_custom_call.1} parent=1 // pred_fallthru
      _
    %v177 = vld [vmem:[#allocation2] sm:$0xff]
    %v178 = vld [vmem:[#allocation2 + $0x8] sm:$0xff]
    %v179 = vld [vmem:[#allocation2 + $0x10] sm:$0xff]
    %v180 = vld [vmem:[#allocation2 + $0x18] sm:$0xff]
    %v181 = vld [vmem:[#allocation2 + $0x20] sm:$0xff]
    %v182 = vld [vmem:[#allocation2 + $0x28] sm:$0xff]
    %v183 = vld [vmem:[#allocation2 + $0x30] sm:$0xff]
    %v184 = vld [vmem:[#allocation2 + $0x38] sm:$0xff]
    %v185 = vld [vmem:[#allocation2 + $0x40] sm:$0xff]
    %v186 = vld [vmem:[#allocation2 + $0x48] sm:$0xff]
    %v187 = vld [vmem:[#allocation2 + $0x50] sm:$0xff]
    %v188 = vld [vmem:[#allocation2 + $0x58] sm:$0xff]
    %v189 = vld [vmem:[#allocation2 + $0x60] sm:$0xff]
    %v190 = vld [vmem:[#allocation2 + $0x68] sm:$0xff]
    %v191 = vld [vmem:[#allocation2 + $0x70] sm:$0xff]
    %v192 = vld [vmem:[#allocation2 + $0x78] sm:$0xff]
    %v193 = vpack.c.bf16 %v178, %v177
    %v194 = vpack.c.bf16 %v180, %v179
    %v195 = vpack.c.bf16 %v182, %v181
    %v196 = vpack.c.bf16 %v184, %v183
    %v197 = vpack.c.bf16 %v186, %v185
    %v198 = vpack.c.bf16 %v188, %v187
    %v199 = vpack.c.bf16 %v190, %v189
    %v200 = vpack.c.bf16 %v192, %v191
    %v201 = vld [vmem:[#allocation5] sm:$0xf]
    %v202 = vld [vmem:[#allocation5 + $0x4] sm:$0xf]
    %v203 = vld [vmem:[#allocation5 + $0x8] sm:$0xf]
    %v204 = vld [vmem:[#allocation5 + $0xc] sm:$0xf]
    %v205 = vld [vmem:[#allocation5 + $0x10] sm:$0xf]
    %v206 = vld [vmem:[#allocation5 + $0x14] sm:$0xf]
    %v207 = vld [vmem:[#allocation5 + $0x18] sm:$0xf]
    %v208 = vld [vmem:[#allocation5 + $0x1c] sm:$0xf]
    %v209 = vld [vmem:[#allocation5 + $0x20] sm:$0xf]
    %v210 = vld [vmem:[#allocation5 + $0x24] sm:$0xf]
    %v211 = vld [vmem:[#allocation5 + $0x28] sm:$0xf]
    %v212 = vld [vmem:[#allocation5 + $0x2c] sm:$0xf]
    %v213 = vld [vmem:[#allocation5 + $0x30] sm:$0xf]
    %v214 = vld [vmem:[#allocation5 + $0x34] sm:$0xf]
    %v215 = vld [vmem:[#allocation5 + $0x38] sm:$0xf]
    %v216 = vld [vmem:[#allocation5 + $0x3c] sm:$0xf]
    %v217 = vld [vmem:[#allocation7] sm:$0x1]
    %v219 = vlaneseq
    %v220 = vshrl.u32 %v219, 7
    %v221 = vsub.s32 0, %v220
    %v222 = vrot.slane %v217, %v221
    %v240 = vunpack.c.l.b16 %v201
    %v241 = vunpack.c.l.b16 %v202
    %v242 = vunpack.c.l.b16 %v203
    %v243 = vunpack.c.l.b16 %v204
    %v244 = vunpack.c.l.b16 %v205
    %v245 = vunpack.c.l.b16 %v206
    %v246 = vunpack.c.l.b16 %v207
    %v247 = vunpack.c.l.b16 %v208
    %v248 = vunpack.c.l.b16 %v209
    %v249 = vunpack.c.l.b16 %v210
    %v250 = vunpack.c.l.b16 %v211
    %v251 = vunpack.c.l.b16 %v212
    %v252 = vunpack.c.l.b16 %v213
    %v253 = vunpack.c.l.b16 %v214
    %v254 = vunpack.c.l.b16 %v215
    %v255 = vunpack.c.l.b16 %v216
    %v256 = vpack.c.b16 %v241, %v240
    %v257 = vpack.c.b16 %v243, %v242
    %v258 = vpack.c.b16 %v245, %v244
    %v259 = vpack.c.b16 %v247, %v246
    %v260 = vpack.c.b16 %v249, %v248
    %v261 = vpack.c.b16 %v251, %v250
    %v262 = vpack.c.b16 %v253, %v252
    %v263 = vpack.c.b16 %v255, %v254
    %272 = vmatprep.subr.bf16.mxu0 0
    %273 = vmatpush1.bf16.msra.mxu0 %v256
    %274 = vmatprep.subr.bf16.mxu0 0
    %275 = vmatpush1.bf16.msra.mxu0 %v257
    %276 = vmatprep.subr.bf16.mxu0 0
    %277 = vmatpush1.bf16.msra.mxu0 %v258
    %278 = vmatprep.subr.bf16.mxu0 0
    %279 = vmatpush1.bf16.msra.mxu0 %v259
    %280 = vmatprep.subr.bf16.mxu0 0
    %281 = vmatpush1.bf16.msra.mxu0 %v260
    %282 = vmatprep.subr.bf16.mxu0 0
    %283 = vmatpush1.bf16.msra.mxu0 %v261
    %284 = vmatprep.subr.bf16.mxu0 0
    %285 = vmatpush1.bf16.msra.mxu0 %v262
    %286 = vmatprep.subr.bf16.mxu0 0
    %287 = vmatpush1.bf16.msra.mxu0 %v263
    %288 = vmatprep.subr.bf16.mxu0 0
    %289 = vmatpush1.bf16.msra.mxu0 0
    %290 = vmatprep.subr.bf16.mxu0 0
    %291 = vmatpush1.bf16.msra.mxu0 0
    %292 = vmatprep.subr.bf16.mxu0 0
    %293 = vmatpush1.bf16.msra.mxu0 0
    %294 = vmatprep.subr.bf16.mxu0 0
    %295 = vmatpush1.bf16.msra.mxu0 0
    %296 = vmatprep.subr.bf16.mxu0 0
    %297 = vmatpush1.bf16.msra.mxu0 0
    %298 = vmatprep.subr.bf16.mxu0 0
    %299 = vmatpush1.bf16.msra.mxu0 0
    %300 = vmatprep.subr.bf16.mxu0 0
    %301 = vmatpush1.bf16.msra.mxu0 0
    %302 = vmatprep.subr.bf16.mxu0 0
    %303 = vmatpush1.bf16.msra.mxu0 0
    %304 = vmatprep.mubr.bf16.mxu0 0
    %305 = vmatmul.mubr.bf16.gmra.mrb[0].mxu0 %v193
    %v306 = vpop.f32.mrb[0].mxu0
    %v307 = vadd.f32 %v222, %v306
    %v308 = vpop.f32.mrb[0].mxu0
    %v309 = vpop.f32.mrb[0].mxu0
    %v310 = vadd.f32 %v222, %v309
    %v311 = vpop.f32.mrb[0].mxu0
    %312 = vmatprep.mubr.bf16.mxu0 0
    %313 = vmatmul.mubr.bf16.gmra.mrb[0].mxu0 %v194
    %v314 = vpop.f32.mrb[0].mxu0
    %v315 = vadd.f32 %v222, %v314
    %v316 = vpop.f32.mrb[0].mxu0
    %v317 = vpop.f32.mrb[0].mxu0
    %v318 = vadd.f32 %v222, %v317
    %v319 = vpop.f32.mrb[0].mxu0
    %320 = vmatprep.mubr.bf16.mxu0 0
    %321 = vmatmul.mubr.bf16.gmra.mrb[0].mxu0 %v195
    %v322 = vpop.f32.mrb[0].mxu0
    %v323 = vadd.f32 %v222, %v322
    %v324 = vpop.f32.mrb[0].mxu0
    %v325 = vpop.f32.mrb[0].mxu0
    %v326 = vadd.f32 %v222, %v325
    %v327 = vpop.f32.mrb[0].mxu0
    %328 = vmatprep.mubr.bf16.mxu0 0
    %329 = vmatmul.mubr.bf16.gmra.mrb[0].mxu0 %v196
    %v330 = vpop.f32.mrb[0].mxu0
    %v331 = vadd.f32 %v222, %v330
    %v332 = vpop.f32.mrb[0].mxu0
    %v333 = vpop.f32.mrb[0].mxu0
    %v334 = vadd.f32 %v222, %v333
    %v335 = vpop.f32.mrb[0].mxu0
    %336 = vmatprep.mubr.bf16.mxu0 0
    %337 = vmatmul.mubr.bf16.gmra.mrb[0].mxu0 %v197
    %v338 = vpop.f32.mrb[0].mxu0
    %v339 = vadd.f32 %v222, %v338
    %v340 = vpop.f32.mrb[0].mxu0
    %v341 = vpop.f32.mrb[0].mxu0
    %v342 = vadd.f32 %v222, %v341
    %v343 = vpop.f32.mrb[0].mxu0
    %344 = vmatprep.mubr.bf16.mxu0 0
    %345 = vmatmul.mubr.bf16.gmra.mrb[0].mxu0 %v198
    %v346 = vpop.f32.mrb[0].mxu0
    %v347 = vadd.f32 %v222, %v346
    %v348 = vpop.f32.mrb[0].mxu0
    %v349 = vpop.f32.mrb[0].mxu0
    %v350 = vadd.f32 %v222, %v349
    %v351 = vpop.f32.mrb[0].mxu0
    %352 = vmatprep.mubr.bf16.mxu0 0
    %353 = vmatmul.mubr.bf16.gmra.mrb[0].mxu0 %v199
    %v354 = vpop.f32.mrb[0].mxu0
    %v355 = vadd.f32 %v222, %v354
    %v356 = vpop.f32.mrb[0].mxu0
    %v357 = vpop.f32.mrb[0].mxu0
    %v358 = vadd.f32 %v222, %v357
    %v359 = vpop.f32.mrb[0].mxu0
    %360 = vmatprep.mubr.bf16.mxu0 0
    %361 = vmatmul.mubr.bf16.gmra.mrb[0].mxu0 %v200
    %v362 = vpop.f32.mrb[0].mxu0
    %v363 = vadd.f32 %v222, %v362
    %v364 = vpop.f32.mrb[0].mxu0
    %v365 = vpop.f32.mrb[0].mxu0
    %v366 = vadd.f32 %v222, %v365
    %v367 = vpop.f32.mrb[0].mxu0
    %368 = vdwg.mxu0
    %v369 = vmax.f32 %v307, 0.0
    %v370 = vmax.f32 %v310, 0.0
    %v371 = vmax.f32 %v315, 0.0
    %v372 = vmax.f32 %v318, 0.0
    %v373 = vmax.f32 %v323, 0.0
    %v374 = vmax.f32 %v326, 0.0
    %v375 = vmax.f32 %v331, 0.0
    %v376 = vmax.f32 %v334, 0.0
    %v377 = vmax.f32 %v339, 0.0
    %v378 = vmax.f32 %v342, 0.0
    %v379 = vmax.f32 %v347, 0.0
    %v380 = vmax.f32 %v350, 0.0
    %v381 = vmax.f32 %v355, 0.0
    %v382 = vmax.f32 %v358, 0.0
    %v383 = vmax.f32 %v363, 0.0
    %v384 = vmax.f32 %v366, 0.0
    %v385 = vpack.c.bf16 %v370, %v369
    %v386 = vpack.c.bf16 %v372, %v371
    %v387 = vpack.c.bf16 %v374, %v373
    %v388 = vpack.c.bf16 %v376, %v375
    %v389 = vpack.c.bf16 %v378, %v377
    %v390 = vpack.c.bf16 %v380, %v379
    %v391 = vpack.c.bf16 %v382, %v381
    %v392 = vpack.c.bf16 %v384, %v383
    %v393 = vld [vmem:[#allocation8] sm:$0xf]
    %v394 = vld [vmem:[#allocation8 + $0x4] sm:$0xf]
    %v395 = vld [vmem:[#allocation8 + $0x8] sm:$0xf]
    %v396 = vld [vmem:[#allocation8 + $0xc] sm:$0xf]
    %v397 = vld [vmem:[#allocation8 + $0x10] sm:$0xf]
    %v398 = vld [vmem:[#allocation8 + $0x14] sm:$0xf]
    %v399 = vld [vmem:[#allocation8 + $0x18] sm:$0xf]
    %v400 = vld [vmem:[#allocation8 + $0x1c] sm:$0xf]
    %v401 = vld [vmem:[#allocation8 + $0x20] sm:$0xf]
    %v402 = vld [vmem:[#allocation8 + $0x24] sm:$0xf]
    %v403 = vld [vmem:[#allocation8 + $0x28] sm:$0xf]
    %v404 = vld [vmem:[#allocation8 + $0x2c] sm:$0xf]
    %v405 = vld [vmem:[#allocation8 + $0x30] sm:$0xf]
    %v406 = vld [vmem:[#allocation8 + $0x34] sm:$0xf]
    %v407 = vld [vmem:[#allocation8 + $0x38] sm:$0xf]
    %v408 = vld [vmem:[#allocation8 + $0x3c] sm:$0xf]
    %v409 = vld [vmem:[#allocation10] sm:$0x1]
    %v411 = vlaneseq
    %v412 = vshrl.u32 %v411, 7
    %v413 = vsub.s32 0, %v412
    %v414 = vrot.slane %v409, %v413
    %v432 = vunpack.c.l.b16 %v393
    %v433 = vunpack.c.l.b16 %v394
    %v434 = vunpack.c.l.b16 %v395
    %v435 = vunpack.c.l.b16 %v396
    %v436 = vunpack.c.l.b16 %v397
    %v437 = vunpack.c.l.b16 %v398
    %v438 = vunpack.c.l.b16 %v399
    %v439 = vunpack.c.l.b16 %v400
    %v440 = vunpack.c.l.b16 %v401
    %v441 = vunpack.c.l.b16 %v402
    %v442 = vunpack.c.l.b16 %v403
    %v443 = vunpack.c.l.b16 %v404
    %v444 = vunpack.c.l.b16 %v405
    %v445 = vunpack.c.l.b16 %v406
    %v446 = vunpack.c.l.b16 %v407
    %v447 = vunpack.c.l.b16 %v408
    %v448 = vpack.c.b16 %v433, %v432
    %v449 = vpack.c.b16 %v435, %v434
    %v450 = vpack.c.b16 %v437, %v436
    %v451 = vpack.c.b16 %v439, %v438
    %v452 = vpack.c.b16 %v441, %v440
    %v453 = vpack.c.b16 %v443, %v442
    %v454 = vpack.c.b16 %v445, %v444
    %v455 = vpack.c.b16 %v447, %v446
    %464 = vmatprep.subr.bf16.mxu0 0
    %465 = vmatpush1.bf16.msra.mxu0 %v448
    %466 = vmatprep.subr.bf16.mxu0 0
    %467 = vmatpush1.bf16.msra.mxu0 %v449
    %468 = vmatprep.subr.bf16.mxu0 0
    %469 = vmatpush1.bf16.msra.mxu0 %v450
    %470 = vmatprep.subr.bf16.mxu0 0
    %471 = vmatpush1.bf16.msra.mxu0 %v451
    %472 = vmatprep.subr.bf16.mxu0 0
    %473 = vmatpush1.bf16.msra.mxu0 %v452
    %474 = vmatprep.subr.bf16.mxu0 0
    %475 = vmatpush1.bf16.msra.mxu0 %v453
    %476 = vmatprep.subr.bf16.mxu0 0
    %477 = vmatpush1.bf16.msra.mxu0 %v454
    %478 = vmatprep.subr.bf16.mxu0 0
    %479 = vmatpush1.bf16.msra.mxu0 %v455
    %480 = vmatprep.subr.bf16.mxu0 0
    %481 = vmatpush1.bf16.msra.mxu0 0
    %482 = vmatprep.subr.bf16.mxu0 0
    %483 = vmatpush1.bf16.msra.mxu0 0
    %484 = vmatprep.subr.bf16.mxu0 0
    %485 = vmatpush1.bf16.msra.mxu0 0
    %486 = vmatprep.subr.bf16.mxu0 0
    %487 = vmatpush1.bf16.msra.mxu0 0
    %488 = vmatprep.subr.bf16.mxu0 0
    %489 = vmatpush1.bf16.msra.mxu0 0
    %490 = vmatprep.subr.bf16.mxu0 0
    %491 = vmatpush1.bf16.msra.mxu0 0
    %492 = vmatprep.subr.bf16.mxu0 0
    %493 = vmatpush1.bf16.msra.mxu0 0
    %494 = vmatprep.subr.bf16.mxu0 0
    %495 = vmatpush1.bf16.msra.mxu0 0
    %496 = vmatprep.mubr.bf16.mxu0 0
    %497 = vmatmul.mubr.bf16.gmra.mrb[0].mxu0 %v385
    %v498 = vpop.f32.mrb[0].mxu0
    %v499 = vadd.f32 %v414, %v498
    %v500 = vpop.f32.mrb[0].mxu0
    %v501 = vpop.f32.mrb[0].mxu0
    %v502 = vadd.f32 %v414, %v501
    %v503 = vpop.f32.mrb[0].mxu0
    %504 = vmatprep.mubr.bf16.mxu0 0
    %505 = vmatmul.mubr.bf16.gmra.mrb[0].mxu0 %v386
    %v506 = vpop.f32.mrb[0].mxu0
    %v507 = vadd.f32 %v414, %v506
    %v508 = vpop.f32.mrb[0].mxu0
    %v509 = vpop.f32.mrb[0].mxu0
    %v510 = vadd.f32 %v414, %v509
    %v511 = vpop.f32.mrb[0].mxu0
    %512 = vmatprep.mubr.bf16.mxu0 0
    %513 = vmatmul.mubr.bf16.gmra.mrb[0].mxu0 %v387
    %v514 = vpop.f32.mrb[0].mxu0
    %v515 = vadd.f32 %v414, %v514
    %v516 = vpop.f32.mrb[0].mxu0
    %v517 = vpop.f32.mrb[0].mxu0
    %v518 = vadd.f32 %v414, %v517
    %v519 = vpop.f32.mrb[0].mxu0
    %520 = vmatprep.mubr.bf16.mxu0 0
    %521 = vmatmul.mubr.bf16.gmra.mrb[0].mxu0 %v388
    %v522 = vpop.f32.mrb[0].mxu0
    %v523 = vadd.f32 %v414, %v522
    %v524 = vpop.f32.mrb[0].mxu0
    %v525 = vpop.f32.mrb[0].mxu0
    %v526 = vadd.f32 %v414, %v525
    %v527 = vpop.f32.mrb[0].mxu0
    %528 = vmatprep.mubr.bf16.mxu0 0
    %529 = vmatmul.mubr.bf16.gmra.mrb[0].mxu0 %v389
    %v530 = vpop.f32.mrb[0].mxu0
    %v531 = vadd.f32 %v414, %v530
    %v532 = vpop.f32.mrb[0].mxu0
    %v533 = vpop.f32.mrb[0].mxu0
    %v534 = vadd.f32 %v414, %v533
    %v535 = vpop.f32.mrb[0].mxu0
    %536 = vmatprep.mubr.bf16.mxu0 0
    %537 = vmatmul.mubr.bf16.gmra.mrb[0].mxu0 %v390
    %v538 = vpop.f32.mrb[0].mxu0
    %v539 = vadd.f32 %v414, %v538
    %v540 = vpop.f32.mrb[0].mxu0
    %v541 = vpop.f32.mrb[0].mxu0
    %v542 = vadd.f32 %v414, %v541
    %v543 = vpop.f32.mrb[0].mxu0
    %544 = vmatprep.mubr.bf16.mxu0 0
    %545 = vmatmul.mubr.bf16.gmra.mrb[0].mxu0 %v391
    %v546 = vpop.f32.mrb[0].mxu0
    %v547 = vadd.f32 %v414, %v546
    %v548 = vpop.f32.mrb[0].mxu0
    %v549 = vpop.f32.mrb[0].mxu0
    %v550 = vadd.f32 %v414, %v549
    %v551 = vpop.f32.mrb[0].mxu0
    %552 = vmatprep.mubr.bf16.mxu0 0
    %553 = vmatmul.mubr.bf16.gmra.mrb[0].mxu0 %v392
    %v554 = vpop.f32.mrb[0].mxu0
    %v555 = vadd.f32 %v414, %v554
    %v556 = vpop.f32.mrb[0].mxu0
    %v557 = vpop.f32.mrb[0].mxu0
    %v558 = vadd.f32 %v414, %v557
    %v559 = vpop.f32.mrb[0].mxu0
    %560 = vdwg.mxu0
    %v561 = vadd.f32 %v499, %v177
    %v562 = vadd.f32 %v502, %v178
    %v563 = vadd.f32 %v507, %v179
    %v564 = vadd.f32 %v510, %v180
    %v565 = vadd.f32 %v515, %v181
    %v566 = vadd.f32 %v518, %v182
    %v567 = vadd.f32 %v523, %v183
    %v568 = vadd.f32 %v526, %v184
    %v569 = vadd.f32 %v531, %v185
    %v570 = vadd.f32 %v534, %v186
    %v571 = vadd.f32 %v539, %v187
    %v572 = vadd.f32 %v542, %v188
    %v573 = vadd.f32 %v547, %v189
    %v574 = vadd.f32 %v550, %v190
    %v575 = vadd.f32 %v555, %v191
    %v576 = vadd.f32 %v558, %v192
    %577 = vadd.xlane.f32.xlu0 %v561
    %v578 = vpop.xlane.xlu0 %577
    %579 = vadd.xlane.f32.xlu0 %v562
    %v580 = vpop.xlane.xlu0 %579
    %581 = vadd.xlane.f32.xlu0 %v563
    %v582 = vpop.xlane.xlu0 %581
    %583 = vadd.xlane.f32.xlu0 %v564
    %v584 = vpop.xlane.xlu0 %583
    %585 = vadd.xlane.f32.xlu0 %v565
    %v586 = vpop.xlane.xlu0 %585
    %587 = vadd.xlane.f32.xlu0 %v566
    %v588 = vpop.xlane.xlu0 %587
    %589 = vadd.xlane.f32.xlu0 %v567
    %v590 = vpop.xlane.xlu0 %589
    %591 = vadd.xlane.f32.xlu0 %v568
    %v592 = vpop.xlane.xlu0 %591
    %593 = vadd.xlane.f32.xlu0 %v569
    %v594 = vpop.xlane.xlu0 %593
    %595 = vadd.xlane.f32.xlu0 %v570
    %v596 = vpop.xlane.xlu0 %595
    %597 = vadd.xlane.f32.xlu0 %v571
    %v598 = vpop.xlane.xlu0 %597
    %599 = vadd.xlane.f32.xlu0 %v572
    %v600 = vpop.xlane.xlu0 %599
    %601 = vadd.xlane.f32.xlu0 %v573
    %v602 = vpop.xlane.xlu0 %601
    %603 = vadd.xlane.f32.xlu0 %v574
    %v604 = vpop.xlane.xlu0 %603
    %605 = vadd.xlane.f32.xlu0 %v575
    %v606 = vpop.xlane.xlu0 %605
    %607 = vadd.xlane.f32.xlu0 %v576
    %v608 = vpop.xlane.xlu0 %607
    %v609 = vmul.f32 %v578, 0.03125
    %v610 = vmul.f32 %v580, 0.03125
    %v611 = vmul.f32 %v582, 0.03125
    %v612 = vmul.f32 %v584, 0.03125
    %v613 = vmul.f32 %v586, 0.03125
    %v614 = vmul.f32 %v588, 0.03125
    %v615 = vmul.f32 %v590, 0.03125
    %v616 = vmul.f32 %v592, 0.03125
    %v617 = vmul.f32 %v594, 0.03125
    %v618 = vmul.f32 %v596, 0.03125
    %v619 = vmul.f32 %v598, 0.03125
    %v620 = vmul.f32 %v600, 0.03125
    %v621 = vmul.f32 %v602, 0.03125
    %v622 = vmul.f32 %v604, 0.03125
    %v623 = vmul.f32 %v606, 0.03125
    %v624 = vmul.f32 %v608, 0.03125
    %v625 = vlaneseq
    %v626 = vand.u32 %v625, 127
    %vm627 = vcmp.lt.s32.totalorder %v626, 32
    %v628 = vsub.f32 %v561, %v609
    %v629 = vsub.f32 %v562, %v610
    %v630 = vsub.f32 %v563, %v611
    %v631 = vsub.f32 %v564, %v612
    %v632 = vsub.f32 %v565, %v613
    %v633 = vsub.f32 %v566, %v614
    %v634 = vsub.f32 %v567, %v615
    %v635 = vsub.f32 %v568, %v616
    %v636 = vsub.f32 %v569, %v617
    %v637 = vsub.f32 %v570, %v618
    %v638 = vsub.f32 %v571, %v619
    %v639 = vsub.f32 %v572, %v620
    %v640 = vsub.f32 %v573, %v621
    %v641 = vsub.f32 %v574, %v622
    %v642 = vsub.f32 %v575, %v623
    %v643 = vsub.f32 %v576, %v624
    %v644 = vsel %vm627, %v628, 0.0
    %v645 = vsel %vm627, %v629, 0.0
    %v646 = vsel %vm627, %v630, 0.0
    %v647 = vsel %vm627, %v631, 0.0
    %v648 = vsel %vm627, %v632, 0.0
    %v649 = vsel %vm627, %v633, 0.0
    %v650 = vsel %vm627, %v634, 0.0
    %v651 = vsel %vm627, %v635, 0.0
    %v652 = vsel %vm627, %v636, 0.0
    %v653 = vsel %vm627, %v637, 0.0
    %v654 = vsel %vm627, %v638, 0.0
    %v655 = vsel %vm627, %v639, 0.0
    %v656 = vsel %vm627, %v640, 0.0
    %v657 = vsel %vm627, %v641, 0.0
    %v658 = vsel %vm627, %v642, 0.0
    %v659 = vsel %vm627, %v643, 0.0
    %v660 = vmul.f32 %v644, %v644
    %v661 = vmul.f32 %v645, %v645
    %v662 = vmul.f32 %v646, %v646
    %v663 = vmul.f32 %v647, %v647
    %v664 = vmul.f32 %v648, %v648
    %v665 = vmul.f32 %v649, %v649
    %v666 = vmul.f32 %v650, %v650
    %v667 = vmul.f32 %v651, %v651
    %v668 = vmul.f32 %v652, %v652
    %v669 = vmul.f32 %v653, %v653
    %v670 = vmul.f32 %v654, %v654
    %v671 = vmul.f32 %v655, %v655
    %v672 = vmul.f32 %v656, %v656
    %v673 = vmul.f32 %v657, %v657
    %v674 = vmul.f32 %v658, %v658
    %v675 = vmul.f32 %v659, %v659
    %676 = vadd.xlane.f32.xlu0 %v660
    %v677 = vpop.xlane.xlu0 %676
    %678 = vadd.xlane.f32.xlu0 %v661
    %v679 = vpop.xlane.xlu0 %678
    %680 = vadd.xlane.f32.xlu0 %v662
    %v681 = vpop.xlane.xlu0 %680
    %682 = vadd.xlane.f32.xlu0 %v663
    %v683 = vpop.xlane.xlu0 %682
    %684 = vadd.xlane.f32.xlu0 %v664
    %v685 = vpop.xlane.xlu0 %684
    %686 = vadd.xlane.f32.xlu0 %v665
    %v687 = vpop.xlane.xlu0 %686
    %688 = vadd.xlane.f32.xlu0 %v666
    %v689 = vpop.xlane.xlu0 %688
    %690 = vadd.xlane.f32.xlu0 %v667
    %v691 = vpop.xlane.xlu0 %690
    %692 = vadd.xlane.f32.xlu0 %v668
    %v693 = vpop.xlane.xlu0 %692
    %694 = vadd.xlane.f32.xlu0 %v669
    %v695 = vpop.xlane.xlu0 %694
    %696 = vadd.xlane.f32.xlu0 %v670
    %v697 = vpop.xlane.xlu0 %696
    %698 = vadd.xlane.f32.xlu0 %v671
    %v699 = vpop.xlane.xlu0 %698
    %700 = vadd.xlane.f32.xlu0 %v672
    %v701 = vpop.xlane.xlu0 %700
    %702 = vadd.xlane.f32.xlu0 %v673
    %v703 = vpop.xlane.xlu0 %702
    %704 = vadd.xlane.f32.xlu0 %v674
    %v705 = vpop.xlane.xlu0 %704
    %706 = vadd.xlane.f32.xlu0 %v675
    %v707 = vpop.xlane.xlu0 %706
    %v708 = vmul.f32 %v677, 0.03125
    %v709 = vmul.f32 %v679, 0.03125
    %v710 = vmul.f32 %v681, 0.03125
    %v711 = vmul.f32 %v683, 0.03125
    %v712 = vmul.f32 %v685, 0.03125
    %v713 = vmul.f32 %v687, 0.03125
    %v714 = vmul.f32 %v689, 0.03125
    %v715 = vmul.f32 %v691, 0.03125
    %v716 = vmul.f32 %v693, 0.03125
    %v717 = vmul.f32 %v695, 0.03125
    %v718 = vmul.f32 %v697, 0.03125
    %v719 = vmul.f32 %v699, 0.03125
    %v720 = vmul.f32 %v701, 0.03125
    %v721 = vmul.f32 %v703, 0.03125
    %v722 = vmul.f32 %v705, 0.03125
    %v723 = vmul.f32 %v707, 0.03125
    %v724 = vadd.f32 %v708, 1e-05
    %v725 = vadd.f32 %v709, 1e-05
    %v726 = vadd.f32 %v710, 1e-05
    %v727 = vadd.f32 %v711, 1e-05
    %v728 = vadd.f32 %v712, 1e-05
    %v729 = vadd.f32 %v713, 1e-05
    %v730 = vadd.f32 %v714, 1e-05
    %v731 = vadd.f32 %v715, 1e-05
    %v732 = vadd.f32 %v716, 1e-05
    %v733 = vadd.f32 %v717, 1e-05
    %v734 = vadd.f32 %v718, 1e-05
    %v735 = vadd.f32 %v719, 1e-05
    %v736 = vadd.f32 %v720, 1e-05
    %v737 = vadd.f32 %v721, 1e-05
    %v738 = vadd.f32 %v722, 1e-05
    %v739 = vadd.f32 %v723, 1e-05
    %v740 = vrsqrt.pop %v724
    %v741 = vrsqrt.pop %v725
    %v742 = vrsqrt.pop %v726
    %v743 = vrsqrt.pop %v727
    %v744 = vrsqrt.pop %v728
    %v745 = vrsqrt.pop %v729
    %v746 = vrsqrt.pop %v730
    %v747 = vrsqrt.pop %v731
    %v748 = vrsqrt.pop %v732
    %v749 = vrsqrt.pop %v733
    %v750 = vrsqrt.pop %v734
    %v751 = vrsqrt.pop %v735
    %v752 = vrsqrt.pop %v736
    %v753 = vrsqrt.pop %v737
    %v754 = vrsqrt.pop %v738
    %v755 = vrsqrt.pop %v739
    %v756 = vmul.f32 %v628, %v740
    %v757 = vmul.f32 %v629, %v741
    %v758 = vmul.f32 %v630, %v742
    %v759 = vmul.f32 %v631, %v743
    %v760 = vmul.f32 %v632, %v744
    %v761 = vmul.f32 %v633, %v745
    %v762 = vmul.f32 %v634, %v746
    %v763 = vmul.f32 %v635, %v747
    %v764 = vmul.f32 %v636, %v748
    %v765 = vmul.f32 %v637, %v749
    %v766 = vmul.f32 %v638, %v750
    %v767 = vmul.f32 %v639, %v751
    %v768 = vmul.f32 %v640, %v752
    %v769 = vmul.f32 %v641, %v753
    %v770 = vmul.f32 %v642, %v754
    %v771 = vmul.f32 %v643, %v755
    %v772 = vld [vmem:[#allocation11] sm:$0x1]
    %v774 = vlaneseq
    %v775 = vshrl.u32 %v774, 7
    %v776 = vsub.s32 0, %v775
    %v777 = vrot.slane %v772, %v776
    %v779 = vmul.f32 %v756, %v777
    %v780 = vmul.f32 %v757, %v777
    %v781 = vmul.f32 %v758, %v777
    %v782 = vmul.f32 %v759, %v777
    %v783 = vmul.f32 %v760, %v777
    %v784 = vmul.f32 %v761, %v777
    %v785 = vmul.f32 %v762, %v777
    %v786 = vmul.f32 %v763, %v777
    %v787 = vmul.f32 %v764, %v777
    %v788 = vmul.f32 %v765, %v777
    %v789 = vmul.f32 %v766, %v777
    %v790 = vmul.f32 %v767, %v777
    %v791 = vmul.f32 %v768, %v777
    %v792 = vmul.f32 %v769, %v777
    %v793 = vmul.f32 %v770, %v777
    %v794 = vmul.f32 %v771, %v777
    %v795 = vld [vmem:[#allocation13] sm:$0x1]
    %v797 = vlaneseq
    %v798 = vshrl.u32 %v797, 7
    %v799 = vsub.s32 0, %v798
    %v800 = vrot.slane %v795, %v799
    %v802 = vadd.f32 %v779, %v800
    %v803 = vadd.f32 %v780, %v800
    %v804 = vadd.f32 %v781, %v800
    %v805 = vadd.f32 %v782, %v800
    %v806 = vadd.f32 %v783, %v800
    %v807 = vadd.f32 %v784, %v800
    %v808 = vadd.f32 %v785, %v800
    %v809 = vadd.f32 %v786, %v800
    %v810 = vadd.f32 %v787, %v800
    %v811 = vadd.f32 %v788, %v800
    %v812 = vadd.f32 %v789, %v800
    %v813 = vadd.f32 %v790, %v800
    %v814 = vadd.f32 %v791, %v800
    %v815 = vadd.f32 %v792, %v800
    %v816 = vadd.f32 %v793, %v800
    %v817 = vadd.f32 %v794, %v800
    %v818 = vpack.c.bf16 %v803, %v802
    %v819 = vpack.c.bf16 %v805, %v804
    %v820 = vpack.c.bf16 %v807, %v806
    %v821 = vpack.c.bf16 %v809, %v808
    %v822 = vpack.c.bf16 %v811, %v810
    %v823 = vpack.c.bf16 %v813, %v812
    %v824 = vpack.c.bf16 %v815, %v814
    %v825 = vpack.c.bf16 %v817, %v816
    %v826 = vld [vmem:[#allocation14] sm:$0xf]
    %v827 = vld [vmem:[#allocation14 + $0x4] sm:$0xf]
    %v828 = vld [vmem:[#allocation14 + $0x8] sm:$0xf]
    %v829 = vld [vmem:[#allocation14 + $0xc] sm:$0xf]
    %v830 = vld [vmem:[#allocation14 + $0x10] sm:$0xf]
    %v831 = vld [vmem:[#allocation14 + $0x14] sm:$0xf]
    %v832 = vld [vmem:[#allocation14 + $0x18] sm:$0xf]
    %v833 = vld [vmem:[#allocation14 + $0x1c] sm:$0xf]
    %v834 = vld [vmem:[#allocation14 + $0x20] sm:$0xf]
    %v835 = vld [vmem:[#allocation14 + $0x24] sm:$0xf]
    %v836 = vld [vmem:[#allocation14 + $0x28] sm:$0xf]
    %v837 = vld [vmem:[#allocation14 + $0x2c] sm:$0xf]
    %v838 = vld [vmem:[#allocation14 + $0x30] sm:$0xf]
    %v839 = vld [vmem:[#allocation14 + $0x34] sm:$0xf]
    %v840 = vld [vmem:[#allocation14 + $0x38] sm:$0xf]
    %v841 = vld [vmem:[#allocation14 + $0x3c] sm:$0xf]
    %v842 = vld [vmem:[#allocation16] sm:$0x1]
    %v844 = vlaneseq
    %v845 = vshrl.u32 %v844, 7
    %v846 = vsub.s32 0, %v845
    %v847 = vrot.slane %v842, %v846
    %v865 = vunpack.c.l.b16 %v826
    %v866 = vunpack.c.l.b16 %v827
    %v867 = vunpack.c.l.b16 %v828
    %v868 = vunpack.c.l.b16 %v829
    %v869 = vunpack.c.l.b16 %v830
    %v870 = vunpack.c.l.b16 %v831
    %v871 = vunpack.c.l.b16 %v832
    %v872 = vunpack.c.l.b16 %v833
    %v873 = vunpack.c.l.b16 %v834
    %v874 = vunpack.c.l.b16 %v835
    %v875 = vunpack.c.l.b16 %v836
    %v876 = vunpack.c.l.b16 %v837
    %v877 = vunpack.c.l.b16 %v838
    %v878 = vunpack.c.l.b16 %v839
    %v879 = vunpack.c.l.b16 %v840
    %v880 = vunpack.c.l.b16 %v841
    %v881 = vpack.c.b16 %v866, %v865
    %v882 = vpack.c.b16 %v868, %v867
    %v883 = vpack.c.b16 %v870, %v869
    %v884 = vpack.c.b16 %v872, %v871
    %v885 = vpack.c.b16 %v874, %v873
    %v886 = vpack.c.b16 %v876, %v875
    %v887 = vpack.c.b16 %v878, %v877
    %v888 = vpack.c.b16 %v880, %v879
    %897 = vmatprep.subr.bf16.mxu0 0
    %898 = vmatpush1.bf16.msra.mxu0 %v881
    %899 = vmatprep.subr.bf16.mxu0 0
    %900 = vmatpush1.bf16.msra.mxu0 %v882
    %901 = vmatprep.subr.bf16.mxu0 0
    %902 = vmatpush1.bf16.msra.mxu0 %v883
    %903 = vmatprep.subr.bf16.mxu0 0
    %904 = vmatpush1.bf16.msra.mxu0 %v884
    %905 = vmatprep.subr.bf16.mxu0 0
    %906 = vmatpush1.bf16.msra.mxu0 %v885
    %907 = vmatprep.subr.bf16.mxu0 0
    %908 = vmatpush1.bf16.msra.mxu0 %v886
    %909 = vmatprep.subr.bf16.mxu0 0
    %910 = vmatpush1.bf16.msra.mxu0 %v887
    %911 = vmatprep.subr.bf16.mxu0 0
    %912 = vmatpush1.bf16.msra.mxu0 %v888
    %913 = vmatprep.subr.bf16.mxu0 0
    %914 = vmatpush1.bf16.msra.mxu0 0
    %915 = vmatprep.subr.bf16.mxu0 0
    %916 = vmatpush1.bf16.msra.mxu0 0
    %917 = vmatprep.subr.bf16.mxu0 0
    %918 = vmatpush1.bf16.msra.mxu0 0
    %919 = vmatprep.subr.bf16.mxu0 0
    %920 = vmatpush1.bf16.msra.mxu0 0
    %921 = vmatprep.subr.bf16.mxu0 0
    %922 = vmatpush1.bf16.msra.mxu0 0
    %923 = vmatprep.subr.bf16.mxu0 0
    %924 = vmatpush1.bf16.msra.mxu0 0
    %925 = vmatprep.subr.bf16.mxu0 0
    %926 = vmatpush1.bf16.msra.mxu0 0
    %927 = vmatprep.subr.bf16.mxu0 0
    %928 = vmatpush1.bf16.msra.mxu0 0
    %929 = vmatprep.mubr.bf16.mxu0 0
    %930 = vmatmul.mubr.bf16.gmra.mrb[0].mxu0 %v818
    %v931 = vpop.f32.mrb[0].mxu0
    %v932 = vadd.f32 %v847, %v931
    %v933 = vpop.f32.mrb[0].mxu0
    %v934 = vpop.f32.mrb[0].mxu0
    %v935 = vadd.f32 %v847, %v934
    %v936 = vpop.f32.mrb[0].mxu0
    %937 = vmatprep.mubr.bf16.mxu0 0
    %938 = vmatmul.mubr.bf16.gmra.mrb[0].mxu0 %v819
    %v939 = vpop.f32.mrb[0].mxu0
    %v940 = vadd.f32 %v847, %v939
    %v941 = vpop.f32.mrb[0].mxu0
    %v942 = vpop.f32.mrb[0].mxu0
    %v943 = vadd.f32 %v847, %v942
    %v944 = vpop.f32.mrb[0].mxu0
    %945 = vmatprep.mubr.bf16.mxu0 0
    %946 = vmatmul.mubr.bf16.gmra.mrb[0].mxu0 %v820
    %v947 = vpop.f32.mrb[0].mxu0
    %v948 = vadd.f32 %v847, %v947
    %v949 = vpop.f32.mrb[0].mxu0
    %v950 = vpop.f32.mrb[0].mxu0
    %v951 = vadd.f32 %v847, %v950
    %v952 = vpop.f32.mrb[0].mxu0
    %953 = vmatprep.mubr.bf16.mxu0 0
    %954 = vmatmul.mubr.bf16.gmra.mrb[0].mxu0 %v821
    %v955 = vpop.f32.mrb[0].mxu0
    %v956 = vadd.f32 %v847, %v955
    %v957 = vpop.f32.mrb[0].mxu0
    %v958 = vpop.f32.mrb[0].mxu0
    %v959 = vadd.f32 %v847, %v958
    %v960 = vpop.f32.mrb[0].mxu0
    %961 = vmatprep.mubr.bf16.mxu0 0
    %962 = vmatmul.mubr.bf16.gmra.mrb[0].mxu0 %v822
    %v963 = vpop.f32.mrb[0].mxu0
    %v964 = vadd.f32 %v847, %v963
    %v965 = vpop.f32.mrb[0].mxu0
    %v966 = vpop.f32.mrb[0].mxu0
    %v967 = vadd.f32 %v847, %v966
    %v968 = vpop.f32.mrb[0].mxu0
    %969 = vmatprep.mubr.bf16.mxu0 0
    %970 = vmatmul.mubr.bf16.gmra.mrb[0].mxu0 %v823
    %v971 = vpop.f32.mrb[0].mxu0
    %v972 = vadd.f32 %v847, %v971
    %v973 = vpop.f32.mrb[0].mxu0
    %v974 = vpop.f32.mrb[0].mxu0
    %v975 = vadd.f32 %v847, %v974
    %v976 = vpop.f32.mrb[0].mxu0
    %977 = vmatprep.mubr.bf16.mxu0 0
    %978 = vmatmul.mubr.bf16.gmra.mrb[0].mxu0 %v824
    %v979 = vpop.f32.mrb[0].mxu0
    %v980 = vadd.f32 %v847, %v979
    %v981 = vpop.f32.mrb[0].mxu0
    %v982 = vpop.f32.mrb[0].mxu0
    %v983 = vadd.f32 %v847, %v982
    %v984 = vpop.f32.mrb[0].mxu0
    %985 = vmatprep.mubr.bf16.mxu0 0
    %986 = vmatmul.mubr.bf16.gmra.mrb[0].mxu0 %v825
    %v987 = vpop.f32.mrb[0].mxu0
    %v988 = vadd.f32 %v847, %v987
    %v989 = vpop.f32.mrb[0].mxu0
    %v990 = vpop.f32.mrb[0].mxu0
    %v991 = vadd.f32 %v847, %v990
    %v992 = vpop.f32.mrb[0].mxu0
    %993 = vdwg.mxu0
    %v994 = vmul.f32 %v932, %v932
    %v995 = vmul.f32 %v935, %v935
    %v996 = vmul.f32 %v940, %v940
    %v997 = vmul.f32 %v943, %v943
    %v998 = vmul.f32 %v948, %v948
    %v999 = vmul.f32 %v951, %v951
    %v1000 = vmul.f32 %v956, %v956
    %v1001 = vmul.f32 %v959, %v959
    %v1002 = vmul.f32 %v964, %v964
    %v1003 = vmul.f32 %v967, %v967
    %v1004 = vmul.f32 %v972, %v972
    %v1005 = vmul.f32 %v975, %v975
    %v1006 = vmul.f32 %v980, %v980
    %v1007 = vmul.f32 %v983, %v983
    %v1008 = vmul.f32 %v988, %v988
    %v1009 = vmul.f32 %v991, %v991
    %v1010 = vmul.f32 %v932, 0.5
    %v1011 = vmul.f32 %v935, 0.5
    %v1012 = vmul.f32 %v940, 0.5
    %v1013 = vmul.f32 %v943, 0.5
    %v1014 = vmul.f32 %v948, 0.5
    %v1015 = vmul.f32 %v951, 0.5
    %v1016 = vmul.f32 %v956, 0.5
    %v1017 = vmul.f32 %v959, 0.5
    %v1018 = vmul.f32 %v964, 0.5
    %v1019 = vmul.f32 %v967, 0.5
    %v1020 = vmul.f32 %v972, 0.5
    %v1021 = vmul.f32 %v975, 0.5
    %v1022 = vmul.f32 %v980, 0.5
    %v1023 = vmul.f32 %v983, 0.5
    %v1024 = vmul.f32 %v988, 0.5
    %v1025 = vmul.f32 %v991, 0.5
    %v1026 = vmul.f32 %v932, 0.7978846
    %v1027 = vmul.f32 %v935, 0.7978846
    %v1028 = vmul.f32 %v940, 0.7978846
    %v1029 = vmul.f32 %v943, 0.7978846
    %v1030 = vmul.f32 %v948, 0.7978846
    %v1031 = vmul.f32 %v951, 0.7978846
    %v1032 = vmul.f32 %v956, 0.7978846
    %v1033 = vmul.f32 %v959, 0.7978846
    %v1034 = vmul.f32 %v964, 0.7978846
    %v1035 = vmul.f32 %v967, 0.7978846
    %v1036 = vmul.f32 %v972, 0.7978846
    %v1037 = vmul.f32 %v975, 0.7978846
    %v1038 = vmul.f32 %v980, 0.7978846
    %v1039 = vmul.f32 %v983, 0.7978846
    %v1040 = vmul.f32 %v988, 0.7978846
    %v1041 = vmul.f32 %v991, 0.7978846
    %v1042 = vmul.f32 %v994, 0.044715
    %v1043 = vmul.f32 %v995, 0.044715
    %v1044 = vmul.f32 %v996, 0.044715
    %v1045 = vmul.f32 %v997, 0.044715
    %v1046 = vmul.f32 %v998, 0.044715
    %v1047 = vmul.f32 %v999, 0.044715
    %v1048 = vmul.f32 %v1000, 0.044715
    %v1049 = vmul.f32 %v1001, 0.044715
    %v1050 = vmul.f32 %v1002, 0.044715
    %v1051 = vmul.f32 %v1003, 0.044715
    %v1052 = vmul.f32 %v1004, 0.044715
    %v1053 = vmul.f32 %v1005, 0.044715
    %v1054 = vmul.f32 %v1006, 0.044715
    %v1055 = vmul.f32 %v1007, 0.044715
    %v1056 = vmul.f32 %v1008, 0.044715
    %v1057 = vmul.f32 %v1009, 0.044715
    %v1058 = vadd.f32 %v1042, 1.0
    %v1059 = vadd.f32 %v1043, 1.0
    %v1060 = vadd.f32 %v1044, 1.0
    %v1061 = vadd.f32 %v1045, 1.0
    %v1062 = vadd.f32 %v1046, 1.0
    %v1063 = vadd.f32 %v1047, 1.0
    %v1064 = vadd.f32 %v1048, 1.0
    %v1065 = vadd.f32 %v1049, 1.0
    %v1066 = vadd.f32 %v1050, 1.0
    %v1067 = vadd.f32 %v1051, 1.0
    %v1068 = vadd.f32 %v1052, 1.0
    %v1069 = vadd.f32 %v1053, 1.0
    %v1070 = vadd.f32 %v1054, 1.0
    %v1071 = vadd.f32 %v1055, 1.0
    %v1072 = vadd.f32 %v1056, 1.0
    %v1073 = vadd.f32 %v1057, 1.0
    %v1074 = vmul.f32 %v1026, %v1058
    %v1075 = vmul.f32 %v1027, %v1059
    %v1076 = vmul.f32 %v1028, %v1060
    %v1077 = vmul.f32 %v1029, %v1061
    %v1078 = vmul.f32 %v1030, %v1062
    %v1079 = vmul.f32 %v1031, %v1063
    %v1080 = vmul.f32 %v1032, %v1064
    %v1081 = vmul.f32 %v1033, %v1065
    %v1082 = vmul.f32 %v1034, %v1066
    %v1083 = vmul.f32 %v1035, %v1067
    %v1084 = vmul.f32 %v1036, %v1068
    %v1085 = vmul.f32 %v1037, %v1069
    %v1086 = vmul.f32 %v1038, %v1070
    %v1087 = vmul.f32 %v1039, %v1071
    %v1088 = vmul.f32 %v1040, %v1072
    %v1089 = vmul.f32 %v1041, %v1073
    %v1090 = vtanh.pop %v1074
    %v1091 = vtanh.pop %v1075
    %v1092 = vtanh.pop %v1076
    %v1093 = vtanh.pop %v1077
    %v1094 = vtanh.pop %v1078
    %v1095 = vtanh.pop %v1079
    %v1096 = vtanh.pop %v1080
    %v1097 = vtanh.pop %v1081
    %v1098 = vtanh.pop %v1082
    %v1099 = vtanh.pop %v1083
    %v1100 = vtanh.pop %v1084
    %v1101 = vtanh.pop %v1085
    %v1102 = vtanh.pop %v1086
    %v1103 = vtanh.pop %v1087
    %v1104 = vtanh.pop %v1088
    %v1105 = vtanh.pop %v1089
    %v1106 = vadd.f32 %v1090, 1.0
    %v1107 = vadd.f32 %v1091, 1.0
    %v1108 = vadd.f32 %v1092, 1.0
    %v1109 = vadd.f32 %v1093, 1.0
    %v1110 = vadd.f32 %v1094, 1.0
    %v1111 = vadd.f32 %v1095, 1.0
    %v1112 = vadd.f32 %v1096, 1.0
    %v1113 = vadd.f32 %v1097, 1.0
    %v1114 = vadd.f32 %v1098, 1.0
    %v1115 = vadd.f32 %v1099, 1.0
    %v1116 = vadd.f32 %v1100, 1.0
    %v1117 = vadd.f32 %v1101, 1.0
    %v1118 = vadd.f32 %v1102, 1.0
    %v1119 = vadd.f32 %v1103, 1.0
    %v1120 = vadd.f32 %v1104, 1.0
    %v1121 = vadd.f32 %v1105, 1.0
    %v1122 = vmul.f32 %v1010, %v1106
    %v1123 = vmul.f32 %v1011, %v1107
    %v1124 = vmul.f32 %v1012, %v1108
    %v1125 = vmul.f32 %v1013, %v1109
    %v1126 = vmul.f32 %v1014, %v1110
    %v1127 = vmul.f32 %v1015, %v1111
    %v1128 = vmul.f32 %v1016, %v1112
    %v1129 = vmul.f32 %v1017, %v1113
    %v1130 = vmul.f32 %v1018, %v1114
    %v1131 = vmul.f32 %v1019, %v1115
    %v1132 = vmul.f32 %v1020, %v1116
    %v1133 = vmul.f32 %v1021, %v1117
    %v1134 = vmul.f32 %v1022, %v1118
    %v1135 = vmul.f32 %v1023, %v1119
    %v1136 = vmul.f32 %v1024, %v1120
    %v1137 = vmul.f32 %v1025, %v1121
    %v1138 = vpack.c.bf16 %v1123, %v1122
    %v1139 = vpack.c.bf16 %v1125, %v1124
    %v1140 = vpack.c.bf16 %v1127, %v1126
    %v1141 = vpack.c.bf16 %v1129, %v1128
    %v1142 = vpack.c.bf16 %v1131, %v1130
    %v1143 = vpack.c.bf16 %v1133, %v1132
    %v1144 = vpack.c.bf16 %v1135, %v1134
    %v1145 = vpack.c.bf16 %v1137, %v1136
    %v1146 = vld [vmem:[#allocation17] sm:$0xf]
    %v1147 = vld [vmem:[#allocation17 + $0x4] sm:$0xf]
    %v1148 = vld [vmem:[#allocation17 + $0x8] sm:$0xf]
    %v1149 = vld [vmem:[#allocation17 + $0xc] sm:$0xf]
    %v1150 = vld [vmem:[#allocation17 + $0x10] sm:$0xf]
    %v1151 = vld [vmem:[#allocation17 + $0x14] sm:$0xf]
    %v1152 = vld [vmem:[#allocation17 + $0x18] sm:$0xf]
    %v1153 = vld [vmem:[#allocation17 + $0x1c] sm:$0xf]
    %v1154 = vld [vmem:[#allocation17 + $0x20] sm:$0xf]
    %v1155 = vld [vmem:[#allocation17 + $0x24] sm:$0xf]
    %v1156 = vld [vmem:[#allocation17 + $0x28] sm:$0xf]
    %v1157 = vld [vmem:[#allocation17 + $0x2c] sm:$0xf]
    %v1158 = vld [vmem:[#allocation17 + $0x30] sm:$0xf]
    %v1159 = vld [vmem:[#allocation17 + $0x34] sm:$0xf]
    %v1160 = vld [vmem:[#allocation17 + $0x38] sm:$0xf]
    %v1161 = vld [vmem:[#allocation17 + $0x3c] sm:$0xf]
    %v1162 = vld [vmem:[#allocation19] sm:$0x1]
    %v1164 = vlaneseq
    %v1165 = vshrl.u32 %v1164, 7
    %v1166 = vsub.s32 0, %v1165
    %v1167 = vrot.slane %v1162, %v1166
    %v1185 = vunpack.c.l.b16 %v1146
    %v1186 = vunpack.c.l.b16 %v1147
    %v1187 = vunpack.c.l.b16 %v1148
    %v1188 = vunpack.c.l.b16 %v1149
    %v1189 = vunpack.c.l.b16 %v1150
    %v1190 = vunpack.c.l.b16 %v1151
    %v1191 = vunpack.c.l.b16 %v1152
    %v1192 = vunpack.c.l.b16 %v1153
    %v1193 = vunpack.c.l.b16 %v1154
    %v1194 = vunpack.c.l.b16 %v1155
    %v1195 = vunpack.c.l.b16 %v1156
    %v1196 = vunpack.c.l.b16 %v1157
    %v1197 = vunpack.c.l.b16 %v1158
    %v1198 = vunpack.c.l.b16 %v1159
    %v1199 = vunpack.c.l.b16 %v1160
    %v1200 = vunpack.c.l.b16 %v1161
    %v1201 = vpack.c.b16 %v1186, %v1185
    %v1202 = vpack.c.b16 %v1188, %v1187
    %v1203 = vpack.c.b16 %v1190, %v1189
    %v1204 = vpack.c.b16 %v1192, %v1191
    %v1205 = vpack.c.b16 %v1194, %v1193
    %v1206 = vpack.c.b16 %v1196, %v1195
    %v1207 = vpack.c.b16 %v1198, %v1197
    %v1208 = vpack.c.b16 %v1200, %v1199
    %1217 = vmatprep.subr.bf16.mxu0 0
    %1218 = vmatpush1.bf16.msra.mxu0 %v1201
    %1219 = vmatprep.subr.bf16.mxu0 0
    %1220 = vmatpush1.bf16.msra.mxu0 %v1202
    %1221 = vmatprep.subr.bf16.mxu0 0
    %1222 = vmatpush1.bf16.msra.mxu0 %v1203
    %1223 = vmatprep.subr.bf16.mxu0 0
    %1224 = vmatpush1.bf16.msra.mxu0 %v1204
    %1225 = vmatprep.subr.bf16.mxu0 0
    %1226 = vmatpush1.bf16.msra.mxu0 %v1205
    %1227 = vmatprep.subr.bf16.mxu0 0
    %1228 = vmatpush1.bf16.msra.mxu0 %v1206
    %1229 = vmatprep.subr.bf16.mxu0 0
    %1230 = vmatpush1.bf16.msra.mxu0 %v1207
    %1231 = vmatprep.subr.bf16.mxu0 0
    %1232 = vmatpush1.bf16.msra.mxu0 %v1208
    %1233 = vmatprep.subr.bf16.mxu0 0
    %1234 = vmatpush1.bf16.msra.mxu0 0
    %1235 = vmatprep.subr.bf16.mxu0 0
    %1236 = vmatpush1.bf16.msra.mxu0 0
    %1237 = vmatprep.subr.bf16.mxu0 0
    %1238 = vmatpush1.bf16.msra.mxu0 0
    %1239 = vmatprep.subr.bf16.mxu0 0
    %1240 = vmatpush1.bf16.msra.mxu0 0
    %1241 = vmatprep.subr.bf16.mxu0 0
    %1242 = vmatpush1.bf16.msra.mxu0 0
    %1243 = vmatprep.subr.bf16.mxu0 0
    %1244 = vmatpush1.bf16.msra.mxu0 0
    %1245 = vmatprep.subr.bf16.mxu0 0
    %1246 = vmatpush1.bf16.msra.mxu0 0
    %1247 = vmatprep.subr.bf16.mxu0 0
    %1248 = vmatpush1.bf16.msra.mxu0 0
    %1249 = vmatprep.mubr.bf16.mxu0 0
    %1250 = vmatmul.mubr.bf16.gmra.mrb[0].mxu0 %v1138
    %v1251 = vpop.f32.mrb[0].mxu0
    %v1252 = vadd.f32 %v1167, %v1251
    %v1253 = vpop.f32.mrb[0].mxu0
    %v1254 = vpop.f32.mrb[0].mxu0
    %v1255 = vadd.f32 %v1167, %v1254
    %v1256 = vpop.f32.mrb[0].mxu0
    %1257 = vmatprep.mubr.bf16.mxu0 0
    %1258 = vmatmul.mubr.bf16.gmra.mrb[0].mxu0 %v1139
    %v1259 = vpop.f32.mrb[0].mxu0
    %v1260 = vadd.f32 %v1167, %v1259
    %v1261 = vpop.f32.mrb[0].mxu0
    %v1262 = vpop.f32.mrb[0].mxu0
    %v1263 = vadd.f32 %v1167, %v1262
    %v1264 = vpop.f32.mrb[0].mxu0
    %1265 = vmatprep.mubr.bf16.mxu0 0
    %1266 = vmatmul.mubr.bf16.gmra.mrb[0].mxu0 %v1140
    %v1267 = vpop.f32.mrb[0].mxu0
    %v1268 = vadd.f32 %v1167, %v1267
    %v1269 = vpop.f32.mrb[0].mxu0
    %v1270 = vpop.f32.mrb[0].mxu0
    %v1271 = vadd.f32 %v1167, %v1270
    %v1272 = vpop.f32.mrb[0].mxu0
    %1273 = vmatprep.mubr.bf16.mxu0 0
    %1274 = vmatmul.mubr.bf16.gmra.mrb[0].mxu0 %v1141
    %v1275 = vpop.f32.mrb[0].mxu0
    %v1276 = vadd.f32 %v1167, %v1275
    %v1277 = vpop.f32.mrb[0].mxu0
    %v1278 = vpop.f32.mrb[0].mxu0
    %v1279 = vadd.f32 %v1167, %v1278
    %v1280 = vpop.f32.mrb[0].mxu0
    %1281 = vmatprep.mubr.bf16.mxu0 0
    %1282 = vmatmul.mubr.bf16.gmra.mrb[0].mxu0 %v1142
    %v1283 = vpop.f32.mrb[0].mxu0
    %v1284 = vadd.f32 %v1167, %v1283
    %v1285 = vpop.f32.mrb[0].mxu0
    %v1286 = vpop.f32.mrb[0].mxu0
    %v1287 = vadd.f32 %v1167, %v1286
    %v1288 = vpop.f32.mrb[0].mxu0
    %1289 = vmatprep.mubr.bf16.mxu0 0
    %1290 = vmatmul.mubr.bf16.gmra.mrb[0].mxu0 %v1143
    %v1291 = vpop.f32.mrb[0].mxu0
    %v1292 = vadd.f32 %v1167, %v1291
    %v1293 = vpop.f32.mrb[0].mxu0
    %v1294 = vpop.f32.mrb[0].mxu0
    %v1295 = vadd.f32 %v1167, %v1294
    %v1296 = vpop.f32.mrb[0].mxu0
    %1297 = vmatprep.mubr.bf16.mxu0 0
    %1298 = vmatmul.mubr.bf16.gmra.mrb[0].mxu0 %v1144
    %v1299 = vpop.f32.mrb[0].mxu0
    %v1300 = vadd.f32 %v1167, %v1299
    %v1301 = vpop.f32.mrb[0].mxu0
    %v1302 = vpop.f32.mrb[0].mxu0
    %v1303 = vadd.f32 %v1167, %v1302
    %v1304 = vpop.f32.mrb[0].mxu0
    %1305 = vmatprep.mubr.bf16.mxu0 0
    %1306 = vmatmul.mubr.bf16.gmra.mrb[0].mxu0 %v1145
    %v1307 = vpop.f32.mrb[0].mxu0
    %v1308 = vadd.f32 %v1167, %v1307
    %v1309 = vpop.f32.mrb[0].mxu0
    %v1310 = vpop.f32.mrb[0].mxu0
    %v1311 = vadd.f32 %v1167, %v1310
    %v1312 = vpop.f32.mrb[0].mxu0
    %1313 = vdwg.mxu0
    %1314 = vst [vmem:[#allocation20] sm:$0xff] %v1252
    %1315 = vst [vmem:[#allocation20 + $0x8] sm:$0xff] %v1255
    %1316 = vst [vmem:[#allocation20 + $0x10] sm:$0xff] %v1260
    %1317 = vst [vmem:[#allocation20 + $0x18] sm:$0xff] %v1263
    %1318 = vst [vmem:[#allocation20 + $0x20] sm:$0xff] %v1268
    %1319 = vst [vmem:[#allocation20 + $0x28] sm:$0xff] %v1271
    %1320 = vst [vmem:[#allocation20 + $0x30] sm:$0xff] %v1276
    %1321 = vst [vmem:[#allocation20 + $0x38] sm:$0xff] %v1279
    %1322 = vst [vmem:[#allocation20 + $0x40] sm:$0xff] %v1284
    %1323 = vst [vmem:[#allocation20 + $0x48] sm:$0xff] %v1287
    %1324 = vst [vmem:[#allocation20 + $0x50] sm:$0xff] %v1292
    %1325 = vst [vmem:[#allocation20 + $0x58] sm:$0xff] %v1295
    %1326 = vst [vmem:[#allocation20 + $0x60] sm:$0xff] %v1300
    %1327 = vst [vmem:[#allocation20 + $0x68] sm:$0xff] %v1303
    %1328 = vst [vmem:[#allocation20 + $0x70] sm:$0xff] %v1308
    %1329 = vst [vmem:[#allocation20 + $0x78] sm:$0xff] %v1311
    // Predicated region
    $region90: #{tpu_custom_call.1} parent=1 // pred_check
      _
    $region91: #{tpu_custom_call.1} parent=1 // pred_check_branch
      %1331 = sbr.rel (0) target = $region93
    $region92: #{tpu_custom_call.1} parent=1 // pred_region
      %s1333 = ssub.s32 2048, 2048
      %1334 = vsyncadd [#allocation4], %s1333
      %s1335 = sshll.u32 [#allocation20], 4
      %s1336 = int_to_ptr.vmem [resolvable:$true] %s1335
      %1341 = dma.vmem_to_hbm [thread:$0]  %s1336, 2048, %s11, [#allocation4], 128, 128, 8
    $region93: #{tpu_custom_call.1} parent=1 // pred_fallthru
      _
    // Predicated region
    $region94: #{tpu_custom_call.1} parent=1 // pred_check
      _
    $region95: #{tpu_custom_call.1} parent=1 // pred_check_branch
      %1343 = sbr.rel (0) target = $region97
    $region96: #{tpu_custom_call.1} parent=1 // pred_region
      %1344 = dma.done [#allocation4], 2048
    $region97: #{tpu_custom_call.1} parent=1 // pred_fallthru
      _
    %1345 = vsyncpa [#allocation3], 1
    %1346 = vsyncpa [#allocation6], 1
    %1347 = vsyncpa [#allocation9], 1
    %1348 = vsyncpa [#allocation12], 1
    %1349 = vsyncpa [#allocation15], 1
    %1350 = vsyncpa [#allocation18], 1
    %1351 = vsyncpa [#allocation4], 1

// kernel: tpu_custom_call.1
$region0: #{tpu_custom_call.1}
  #allocation0 [shape = 'u32[]', space=smem, size = 0x4, offset = 0x4, fixed_abs, tag = 'smem constant byte address 0x4 - core index']
  #allocation1 [shape = 'u32[144,128]{1,0:T(1,128)}', space=vmem, size = 0x12000, scoped, tag = 'internal scratch']
  %s0 = inlined_call_operand.hbm [shape: f32[128,128], index: 0, kind: input, shape index: {}]
  %s1 = inlined_call_operand.hbm [shape: bf16[128,128], index: 1, kind: input, shape index: {}]
  %s2 = inlined_call_operand.hbm [shape: f32[1,128], index: 2, kind: input, shape index: {}]
  %s3 = inlined_call_operand.hbm [shape: bf16[128,128], index: 3, kind: input, shape index: {}]
  %s4 = inlined_call_operand.hbm [shape: f32[1,128], index: 4, kind: input, shape index: {}]
  %s5 = inlined_call_operand.hbm [shape: f32[1,128], index: 5, kind: input, shape index: {}]
  %s6 = inlined_call_operand.hbm [shape: f32[1,128], index: 6, kind: input, shape index: {}]
  %s7 = inlined_call_operand.hbm [shape: bf16[128,128], index: 7, kind: input, shape index: {}]
  %s8 = inlined_call_operand.hbm [shape: f32[1,128], index: 8, kind: input, shape index: {}]
  %s9 = inlined_call_operand.hbm [shape: bf16[128,128], index: 9, kind: input, shape index: {}]
  %s10 = inlined_call_operand.hbm [shape: f32[1,128], index: 10, kind: input, shape index: {}]
  %s11 = inlined_call_operand.hbm [shape: f32[128,128], index: 11, kind: output, shape index: {}]
  %s12 = sld [smem:[#allocation0]]
  $region98: #{tpu_custom_call.1} parent=0
    _
  %s14 = ssub.s32 1, %s12
  %s15 = scalar_select 0, %s14, %s12
  $region1: #{tpu_custom_call.1} parent=0
    #allocation2 [shape = 'u8[65536]{0}', space=vmem, size = 0x10000, scoped, tag = 'input window, operand 0, single buffered']
    #allocation3 [shape = 's32[1]{0}', space=sflag, size = 0x4, scoped, tag = 'scoped memory for tpu_custom_call.1']
    #allocation4 [shape = 's32[1]{0}', space=sflag, size = 0x4, scoped, tag = 'scoped memory for tpu_custom_call.1']
    #allocation5 [shape = 'u8[32768]{0}', space=vmem, size = 0x8000, scoped, tag = 'input window, operand 1, single buffered']
    #allocation6 [shape = 's32[1]{0}', space=sflag, size = 0x4, scoped, tag = 'scoped memory for tpu_custom_call.1']
    #allocation7 [shape = 'u8[512]{0}', space=vmem, size = 0x400, scoped, tag = 'input window, operand 2, single buffered']
    #allocation8 [shape = 'u8[32768]{0}', space=vmem, size = 0x8000, scoped, tag = 'input window, operand 3, single buffered']
    #allocation9 [shape = 's32[1]{0}', space=sflag, size = 0x4, scoped, tag = 'scoped memory for tpu_custom_call.1']
    #allocation10 [shape = 'u8[512]{0}', space=vmem, size = 0x400, scoped, tag = 'input window, operand 4, single buffered']
    #allocation11 [shape = 'u8[512]{0}', space=vmem, size = 0x400, scoped, tag = 'input window, operand 5, single buffered']
    #allocation12 [shape = 's32[1]{0}', space=sflag, size = 0x4, scoped, tag = 'scoped memory for tpu_custom_call.1']
    #allocation13 [shape = 'u8[512]{0}', space=vmem, size = 0x400, scoped, tag = 'input window, operand 6, single buffered']
    #allocation14 [shape = 'u8[32768]{0}', space=vmem, size = 0x8000, scoped, tag = 'input window, operand 7, single buffered']
    #allocation15 [shape = 's32[1]{0}', space=sflag, size = 0x4, scoped, tag = 'scoped memory for tpu_custom_call.1']
    #allocation16 [shape = 'u8[512]{0}', space=vmem, size = 0x400, scoped, tag = 'input window, operand 8, single buffered']
    #allocation17 [shape = 'u8[32768]{0}', space=vmem, size = 0x8000, scoped, tag = 'input window, operand 9, single buffered']
    #allocation18 [shape = 's32[1]{0}', space=sflag, size = 0x4, scoped, tag = 'scoped memory for tpu_custom_call.1']
    #allocation19 [shape = 'u8[512]{0}', space=vmem, size = 0x400, scoped, tag = 'input window, operand 10, single buffered']
    #allocation20 [shape = 'u8[65536]{0}', space=vmem, size = 0x10000, scoped, tag = 'output window, operand 0, single buffered']
    %16 = vsyncpa [#allocation3], 0
    %17 = vsyncpa [#allocation6], 0
    %18 = vsyncpa [#allocation9], 0
    %19 = vsyncpa [#allocation12], 0
    %20 = vsyncpa [#allocation15], 0
    %21 = vsyncpa [#allocation18], 0
    %22 = vsyncpa [#allocation4], 0
    // Predicated region
    $region2: #{tpu_custom_call.1} parent=1 // pred_check
      _
    $region3: #{tpu_custom_call.1} parent=1 // pred_check_branch
      %24 = sbr.rel (0) target = $region5
    $region4: #{tpu_custom_call.1} parent=1 // pred_region
      %s26 = ssub.s32 2048, 2048
      %27 = vsyncadd [#allocation3], %s26
      %s28 = sshll.u32 [#allocation2], 4
      %s29 = int_to_ptr.vmem [resolvable:$true] %s28
      %34 = dma.hbm_to_vmem [thread:$0]  %s0, 2048, %s29, [#allocation3], 128, 128, 8
    $region5: #{tpu_custom_call.1} parent=1 // pred_fallthru
      _
    // Predicated region
    $region6: #{tpu_custom_call.1} parent=1 // pred_check
      _
    $region7: #{tpu_custom_call.1} parent=1 // pred_check_branch
      %36 = sbr.rel (0) target = $region9
    $region8: #{tpu_custom_call.1} parent=1 // pred_region
      %s38 = ssub.s32 1024, 1024
      %39 = vsyncadd [#allocation6], %s38
      %s40 = sshll.u32 [#allocation5], 4
      %s41 = int_to_ptr.vmem [resolvable:$true] %s40
      %46 = dma.hbm_to_vmem [thread:$0]  %s1, 1024, %s41, [#allocation6], 64, 64, 4
    $region9: #{tpu_custom_call.1} parent=1 // pred_fallthru
      _
    // Predicated region
    $region10: #{tpu_custom_call.1} parent=1 // pred_check
      _
    $region11: #{tpu_custom_call.1} parent=1 // pred_check_branch
      %48 = sbr.rel (0) target = $region13
    $region12: #{tpu_custom_call.1} parent=1 // pred_region
      %s50 = ssub.s32 16, 16
      %51 = vsyncadd [#allocation6], %s50
      %s53 = sshll.u32 [#allocation7], 4
      %s54 = int_to_ptr.vmem [resolvable:$true] %s53
      %56 = dma.hbm_to_vmem [thread:$0]  %s2, 16, %s54, [#allocation6]
    $region13: #{tpu_custom_call.1} parent=1 // pred_fallthru
      _
    // Predicated region
    $region14: #{tpu_custom_call.1} parent=1 // pred_check
      _
    $region15: #{tpu_custom_call.1} parent=1 // pred_check_branch
      %58 = sbr.rel (0) target = $region17
    $region16: #{tpu_custom_call.1} parent=1 // pred_region
      %s60 = ssub.s32 1024, 1024
      %61 = vsyncadd [#allocation9], %s60
      %s62 = sshll.u32 [#allocation8], 4
      %s63 = int_to_ptr.vmem [resolvable:$true] %s62
      %68 = dma.hbm_to_vmem [thread:$0]  %s3, 1024, %s63, [#allocation9], 64, 64, 4
    $region17: #{tpu_custom_call.1} parent=1 // pred_fallthru
      _
    // Predicated region
    $region18: #{tpu_custom_call.1} parent=1 // pred_check
      _
    $region19: #{tpu_custom_call.1} parent=1 // pred_check_branch
      %70 = sbr.rel (0) target = $region21
    $region20: #{tpu_custom_call.1} parent=1 // pred_region
      %s72 = ssub.s32 16, 16
      %73 = vsyncadd [#allocation9], %s72
      %s75 = sshll.u32 [#allocation10], 4
      %s76 = int_to_ptr.vmem [resolvable:$true] %s75
      %78 = dma.hbm_to_vmem [thread:$0]  %s4, 16, %s76, [#allocation9]
    $region21: #{tpu_custom_call.1} parent=1 // pred_fallthru
      _
    // Predicated region
    $region22: #{tpu_custom_call.1} parent=1 // pred_check
      _
    $region23: #{tpu_custom_call.1} parent=1 // pred_check_branch
      %80 = sbr.rel (0) target = $region25
    $region24: #{tpu_custom_call.1} parent=1 // pred_region
      %s82 = ssub.s32 16, 16
      %83 = vsyncadd [#allocation12], %s82
      %s85 = sshll.u32 [#allocation11], 4
      %s86 = int_to_ptr.vmem [resolvable:$true] %s85
      %88 = dma.hbm_to_vmem [thread:$0]  %s5, 16, %s86, [#allocation12]
    $region25: #{tpu_custom_call.1} parent=1 // pred_fallthru
      _
    // Predicated region
    $region26: #{tpu_custom_call.1} parent=1 // pred_check
      _
    $region27: #{tpu_custom_call.1} parent=1 // pred_check_branch
      %90 = sbr.rel (0) target = $region29
    $region28: #{tpu_custom_call.1} parent=1 // pred_region
      %s92 = ssub.s32 16, 16
      %93 = vsyncadd [#allocation12], %s92
      %s95 = sshll.u32 [#allocation13], 4
      %s96 = int_to_ptr.vmem [resolvable:$true] %s95
      %98 = dma.hbm_to_vmem [thread:$0]  %s6, 16, %s96, [#allocation12]
    $region29: #{tpu_custom_call.1} parent=1 // pred_fallthru
      _
    // Predicated region
    $region30: #{tpu_custom_call.1} parent=1 // pred_check
      _
    $region31: #{tpu_custom_call.1} parent=1 // pred_check_branch
      %100 = sbr.rel (0) target = $region33
    $region32: #{tpu_custom_call.1} parent=1 // pred_region
      %s102 = ssub.s32 1024, 1024
      %103 = vsyncadd [#allocation15], %s102
      %s104 = sshll.u32 [#allocation14], 4
      %s105 = int_to_ptr.vmem [resolvable:$true] %s104
      %110 = dma.hbm_to_vmem [thread:$0]  %s7, 1024, %s105, [#allocation15], 64, 64, 4
    $region33: #{tpu_custom_call.1} parent=1 // pred_fallthru
      _
    // Predicated region
    $region34: #{tpu_custom_call.1} parent=1 // pred_check
      _
    $region35: #{tpu_custom_call.1} parent=1 // pred_check_branch
      %112 = sbr.rel (0) target = $region37
    $region36: #{tpu_custom_call.1} parent=1 // pred_region
      %s114 = ssub.s32 16, 16
      %115 = vsyncadd [#allocation15], %s114
      %s117 = sshll.u32 [#allocation16], 4
      %s118 = int_to_ptr.vmem [resolvable:$true] %s117
      %120 = dma.hbm_to_vmem [thread:$0]  %s8, 16, %s118, [#allocation15]
    $region37: #{tpu_custom_call.1} parent=1 // pred_fallthru
      _
    // Predicated region
    $region38: #{tpu_custom_call.1} parent=1 // pred_check
      _
    $region39: #{tpu_custom_call.1} parent=1 // pred_check_branch
      %122 = sbr.rel (0) target = $region41
    $region40: #{tpu_custom_call.1} parent=1 // pred_region
      %s124 = ssub.s32 1024, 1024
      %125 = vsyncadd [#allocation18], %s124
      %s126 = sshll.u32 [#allocation17], 4
      %s127 = int_to_ptr.vmem [resolvable:$true] %s126
      %132 = dma.hbm_to_vmem [thread:$0]  %s9, 1024, %s127, [#allocation18], 64, 64, 4
    $region41: #{tpu_custom_call.1} parent=1 // pred_fallthru
      _
    // Predicated region
    $region42: #{tpu_custom_call.1} parent=1 // pred_check
      _
    $region43: #{tpu_custom_call.1} parent=1 // pred_check_branch
      %134 = sbr.rel (0) target = $region45
    $region44: #{tpu_custom_call.1} parent=1 // pred_region
      %s136 = ssub.s32 16, 16
      %137 = vsyncadd [#allocation18], %s136
      %s139 = sshll.u32 [#allocation19], 4
      %s140 = int_to_ptr.vmem [resolvable:$true] %s139
      %142 = dma.hbm_to_vmem [thread:$0]  %s10, 16, %s140, [#allocation18]
    $region45: #{tpu_custom_call.1} parent=1 // pred_fallthru
      _
    // Predicated region
    $region46: #{tpu_custom_call.1} parent=1 // pred_check
      _
    $region47: #{tpu_custom_call.1} parent=1 // pred_check_branch
      %144 = sbr.rel (0) target = $region49
    $region48: #{tpu_custom_call.1} parent=1 // pred_region
      %145 = dma.done [#allocation3], 2048
    $region49: #{tpu_custom_call.1} parent=1 // pred_fallthru
      _
    // Predicated region
    $region50: #{tpu_custom_call.1} parent=1 // pred_check
      _
    $region51: #{tpu_custom_call.1} parent=1 // pred_check_branch
      %147 = sbr.rel (0) target = $region53
    $region52: #{tpu_custom_call.1} parent=1 // pred_region
      %148 = dma.done [#allocation6], 1024
    $region53: #{tpu_custom_call.1} parent=1 // pred_fallthru
      _
    // Predicated region
    $region54: #{tpu_custom_call.1} parent=1 // pred_check
      _
    $region55: #{tpu_custom_call.1} parent=1 // pred_check_branch
      %150 = sbr.rel (0) target = $region57
    $region56: #{tpu_custom_call.1} parent=1 // pred_region
      %151 = dma.done [#allocation6], 16
    $region57: #{tpu_custom_call.1} parent=1 // pred_fallthru
      _
    // Predicated region
    $region58: #{tpu_custom_call.1} parent=1 // pred_check
      _
    $region59: #{tpu_custom_call.1} parent=1 // pred_check_branch
      %153 = sbr.rel (0) target = $region61
    $region60: #{tpu_custom_call.1} parent=1 // pred_region
      %154 = dma.done [#allocation9], 1024
    $region61: #{tpu_custom_call.1} parent=1 // pred_fallthru
      _
    // Predicated region
    $region62: #{tpu_custom_call.1} parent=1 // pred_check
      _
    $region63: #{tpu_custom_call.1} parent=1 // pred_check_branch
      %156 = sbr.rel (0) target = $region65
    $region64: #{tpu_custom_call.1} parent=1 // pred_region
      %157 = dma.done [#allocation9], 16
    $region65: #{tpu_custom_call.1} parent=1 // pred_fallthru
      _
    // Predicated region
    $region66: #{tpu_custom_call.1} parent=1 // pred_check
      _
    $region67: #{tpu_custom_call.1} parent=1 // pred_check_branch
      %159 = sbr.rel (0) target = $region69
    $region68: #{tpu_custom_call.1} parent=1 // pred_region
      %160 = dma.done [#allocation12], 16
    $region69: #{tpu_custom_call.1} parent=1 // pred_fallthru
      _
    // Predicated region
    $region70: #{tpu_custom_call.1} parent=1 // pred_check
      _
    $region71: #{tpu_custom_call.1} parent=1 // pred_check_branch
      %162 = sbr.rel (0) target = $region73
    $region72: #{tpu_custom_call.1} parent=1 // pred_region
      %163 = dma.done [#allocation12], 16
    $region73: #{tpu_custom_call.1} parent=1 // pred_fallthru
      _
    // Predicated region
    $region74: #{tpu_custom_call.1} parent=1 // pred_check
      _
    $region75: #{tpu_custom_call.1} parent=1 // pred_check_branch
      %165 = sbr.rel (0) target = $region77
    $region76: #{tpu_custom_call.1} parent=1 // pred_region
      %166 = dma.done [#allocation15], 1024
    $region77: #{tpu_custom_call.1} parent=1 // pred_fallthru
      _
    // Predicated region
    $region78: #{tpu_custom_call.1} parent=1 // pred_check
      _
    $region79: #{tpu_custom_call.1} parent=1 // pred_check_branch
      %168 = sbr.rel (0) target = $region81
    $region80: #{tpu_custom_call.1} parent=1 // pred_region
      %169 = dma.done [#allocation15], 16
    $region81: #{tpu_custom_call.1} parent=1 // pred_fallthru
      _
    // Predicated region
    $region82: #{tpu_custom_call.1} parent=1 // pred_check
      _
    $region83: #{tpu_custom_call.1} parent=1 // pred_check_branch
      %171 = sbr.rel (0) target = $region85
    $region84: #{tpu_custom_call.1} parent=1 // pred_region
      %172 = dma.done [#allocation18], 1024
    $region85: #{tpu_custom_call.1} parent=1 // pred_fallthru
      _
    // Predicated region
    $region86: #{tpu_custom_call.1} parent=1 // pred_check
      _
    $region87: #{tpu_custom_call.1} parent=1 // pred_check_branch
      %174 = sbr.rel (0) target = $region89
    $region88: #{tpu_custom_call.1} parent=1 // pred_region
      %175 = dma.done [#allocation18], 16
    $region89: #{tpu_custom_call.1} parent=1 // pred_fallthru
      _
    %v177 = vld [vmem:[#allocation2] sm:$0xff]
    %v178 = vld [vmem:[#allocation2 + $0x8] sm:$0xff]
    %v179 = vld [vmem:[#allocation2 + $0x10] sm:$0xff]
    %v180 = vld [vmem:[#allocation2 + $0x18] sm:$0xff]
    %v181 = vld [vmem:[#allocation2 + $0x20] sm:$0xff]
    %v182 = vld [vmem:[#allocation2 + $0x28] sm:$0xff]
    %v183 = vld [vmem:[#allocation2 + $0x30] sm:$0xff]
    %v184 = vld [vmem:[#allocation2 + $0x38] sm:$0xff]
    %v185 = vld [vmem:[#allocation2 + $0x40] sm:$0xff]
    %v186 = vld [vmem:[#allocation2 + $0x48] sm:$0xff]
    %v187 = vld [vmem:[#allocation2 + $0x50] sm:$0xff]
    %v188 = vld [vmem:[#allocation2 + $0x58] sm:$0xff]
    %v189 = vld [vmem:[#allocation2 + $0x60] sm:$0xff]
    %v190 = vld [vmem:[#allocation2 + $0x68] sm:$0xff]
    %v191 = vld [vmem:[#allocation2 + $0x70] sm:$0xff]
    %v192 = vld [vmem:[#allocation2 + $0x78] sm:$0xff]
    %v193 = vpack.c.bf16 %v178, %v177
    %v194 = vpack.c.bf16 %v180, %v179
    %v195 = vpack.c.bf16 %v182, %v181
    %v196 = vpack.c.bf16 %v184, %v183
    %v197 = vpack.c.bf16 %v186, %v185
    %v198 = vpack.c.bf16 %v188, %v187
    %v199 = vpack.c.bf16 %v190, %v189
    %v200 = vpack.c.bf16 %v192, %v191
    %v201 = vld [vmem:[#allocation5] sm:$0xf]
    %v202 = vld [vmem:[#allocation5 + $0x4] sm:$0xf]
    %v203 = vld [vmem:[#allocation5 + $0x8] sm:$0xf]
    %v204 = vld [vmem:[#allocation5 + $0xc] sm:$0xf]
    %v205 = vld [vmem:[#allocation5 + $0x10] sm:$0xf]
    %v206 = vld [vmem:[#allocation5 + $0x14] sm:$0xf]
    %v207 = vld [vmem:[#allocation5 + $0x18] sm:$0xf]
    %v208 = vld [vmem:[#allocation5 + $0x1c] sm:$0xf]
    %v209 = vld [vmem:[#allocation5 + $0x20] sm:$0xf]
    %v210 = vld [vmem:[#allocation5 + $0x24] sm:$0xf]
    %v211 = vld [vmem:[#allocation5 + $0x28] sm:$0xf]
    %v212 = vld [vmem:[#allocation5 + $0x2c] sm:$0xf]
    %v213 = vld [vmem:[#allocation5 + $0x30] sm:$0xf]
    %v214 = vld [vmem:[#allocation5 + $0x34] sm:$0xf]
    %v215 = vld [vmem:[#allocation5 + $0x38] sm:$0xf]
    %v216 = vld [vmem:[#allocation5 + $0x3c] sm:$0xf]
    %v217 = vld [vmem:[#allocation7] sm:$0x1]
    %v219 = vlaneseq
    %v220 = vshrl.u32 %v219, 7
    %v221 = vsub.s32 0, %v220
    %v222 = vrot.slane %v217, %v221
    %v240 = vunpack.c.l.b16 %v201
    %v241 = vunpack.c.l.b16 %v202
    %v242 = vunpack.c.l.b16 %v203
    %v243 = vunpack.c.l.b16 %v204
    %v244 = vunpack.c.l.b16 %v205
    %v245 = vunpack.c.l.b16 %v206
    %v246 = vunpack.c.l.b16 %v207
    %v247 = vunpack.c.l.b16 %v208
    %v248 = vunpack.c.l.b16 %v209
    %v249 = vunpack.c.l.b16 %v210
    %v250 = vunpack.c.l.b16 %v211
    %v251 = vunpack.c.l.b16 %v212
    %v252 = vunpack.c.l.b16 %v213
    %v253 = vunpack.c.l.b16 %v214
    %v254 = vunpack.c.l.b16 %v215
    %v255 = vunpack.c.l.b16 %v216
    %v256 = vpack.c.b16 %v241, %v240
    %v257 = vpack.c.b16 %v243, %v242
    %v258 = vpack.c.b16 %v245, %v244
    %v259 = vpack.c.b16 %v247, %v246
    %v260 = vpack.c.b16 %v249, %v248
    %v261 = vpack.c.b16 %v251, %v250
    %v262 = vpack.c.b16 %v253, %v252
    %v263 = vpack.c.b16 %v255, %v254
    %272 = vmatprep.subr.bf16.mxu0 0
    %273 = vmatpush1.bf16.msra.mxu0 %v256
    %274 = vmatprep.subr.bf16.mxu0 0
    %275 = vmatpush1.bf16.msra.mxu0 %v257
    %276 = vmatprep.subr.bf16.mxu0 0
    %277 = vmatpush1.bf16.msra.mxu0 %v258
    %278 = vmatprep.subr.bf16.mxu0 0
    %279 = vmatpush1.bf16.msra.mxu0 %v259
    %280 = vmatprep.subr.bf16.mxu0 0
    %281 = vmatpush1.bf16.msra.mxu0 %v260
    %282 = vmatprep.subr.bf16.mxu0 0
    %283 = vmatpush1.bf16.msra.mxu0 %v261
    %284 = vmatprep.subr.bf16.mxu0 0
    %285 = vmatpush1.bf16.msra.mxu0 %v262
    %286 = vmatprep.subr.bf16.mxu0 0
    %287 = vmatpush1.bf16.msra.mxu0 %v263
    %288 = vmatprep.subr.bf16.mxu0 0
    %289 = vmatpush1.bf16.msra.mxu0 0
    %290 = vmatprep.subr.bf16.mxu0 0
    %291 = vmatpush1.bf16.msra.mxu0 0
    %292 = vmatprep.subr.bf16.mxu0 0
    %293 = vmatpush1.bf16.msra.mxu0 0
    %294 = vmatprep.subr.bf16.mxu0 0
    %295 = vmatpush1.bf16.msra.mxu0 0
    %296 = vmatprep.subr.bf16.mxu0 0
    %297 = vmatpush1.bf16.msra.mxu0 0
    %298 = vmatprep.subr.bf16.mxu0 0
    %299 = vmatpush1.bf16.msra.mxu0 0
    %300 = vmatprep.subr.bf16.mxu0 0
    %301 = vmatpush1.bf16.msra.mxu0 0
    %302 = vmatprep.subr.bf16.mxu0 0
    %303 = vmatpush1.bf16.msra.mxu0 0
    %304 = vmatprep.mubr.bf16.mxu0 0
    %305 = vmatmul.mubr.bf16.gmra.mrb[0].mxu0 %v193
    %v306 = vpop.f32.mrb[0].mxu0
    %v307 = vadd.f32 %v222, %v306
    %v308 = vpop.f32.mrb[0].mxu0
    %v309 = vpop.f32.mrb[0].mxu0
    %v310 = vadd.f32 %v222, %v309
    %v311 = vpop.f32.mrb[0].mxu0
    %312 = vmatprep.mubr.bf16.mxu0 0
    %313 = vmatmul.mubr.bf16.gmra.mrb[0].mxu0 %v194
    %v314 = vpop.f32.mrb[0].mxu0
    %v315 = vadd.f32 %v222, %v314
    %v316 = vpop.f32.mrb[0].mxu0
    %v317 = vpop.f32.mrb[0].mxu0
    %v318 = vadd.f32 %v222, %v317
    %v319 = vpop.f32.mrb[0].mxu0
    %320 = vmatprep.mubr.bf16.mxu0 0
    %321 = vmatmul.mubr.bf16.gmra.mrb[0].mxu0 %v195
    %v322 = vpop.f32.mrb[0].mxu0
    %v323 = vadd.f32 %v222, %v322
    %v324 = vpop.f32.mrb[0].mxu0
    %v325 = vpop.f32.mrb[0].mxu0
    %v326 = vadd.f32 %v222, %v325
    %v327 = vpop.f32.mrb[0].mxu0
    %328 = vmatprep.mubr.bf16.mxu0 0
    %329 = vmatmul.mubr.bf16.gmra.mrb[0].mxu0 %v196
    %v330 = vpop.f32.mrb[0].mxu0
    %v331 = vadd.f32 %v222, %v330
    %v332 = vpop.f32.mrb[0].mxu0
    %v333 = vpop.f32.mrb[0].mxu0
    %v334 = vadd.f32 %v222, %v333
    %v335 = vpop.f32.mrb[0].mxu0
    %336 = vmatprep.mubr.bf16.mxu0 0
    %337 = vmatmul.mubr.bf16.gmra.mrb[0].mxu0 %v197
    %v338 = vpop.f32.mrb[0].mxu0
    %v339 = vadd.f32 %v222, %v338
    %v340 = vpop.f32.mrb[0].mxu0
    %v341 = vpop.f32.mrb[0].mxu0
    %v342 = vadd.f32 %v222, %v341
    %v343 = vpop.f32.mrb[0].mxu0
    %344 = vmatprep.mubr.bf16.mxu0 0
    %345 = vmatmul.mubr.bf16.gmra.mrb[0].mxu0 %v198
    %v346 = vpop.f32.mrb[0].mxu0
    %v347 = vadd.f32 %v222, %v346
    %v348 = vpop.f32.mrb[0].mxu0
    %v349 = vpop.f32.mrb[0].mxu0
    %v350 = vadd.f32 %v222, %v349
    %v351 = vpop.f32.mrb[0].mxu0
    %352 = vmatprep.mubr.bf16.mxu0 0
    %353 = vmatmul.mubr.bf16.gmra.mrb[0].mxu0 %v199
    %v354 = vpop.f32.mrb[0].mxu0
    %v355 = vadd.f32 %v222, %v354
    %v356 = vpop.f32.mrb[0].mxu0
    %v357 = vpop.f32.mrb[0].mxu0
    %v358 = vadd.f32 %v222, %v357
    %v359 = vpop.f32.mrb[0].mxu0
    %360 = vmatprep.mubr.bf16.mxu0 0
    %361 = vmatmul.mubr.bf16.gmra.mrb[0].mxu0 %v200
    %v362 = vpop.f32.mrb[0].mxu0
    %v363 = vadd.f32 %v222, %v362
    %v364 = vpop.f32.mrb[0].mxu0
    %v365 = vpop.f32.mrb[0].mxu0
    %v366 = vadd.f32 %v222, %v365
    %v367 = vpop.f32.mrb[0].mxu0
    %368 = vdwg.mxu0
    %v369 = vmax.f32 %v307, 0.0
    %v370 = vmax.f32 %v310, 0.0
    %v371 = vmax.f32 %v315, 0.0
    %v372 = vmax.f32 %v318, 0.0
    %v373 = vmax.f32 %v323, 0.0
    %v374 = vmax.f32 %v326, 0.0
    %v375 = vmax.f32 %v331, 0.0
    %v376 = vmax.f32 %v334, 0.0
    %v377 = vmax.f32 %v339, 0.0
    %v378 = vmax.f32 %v342, 0.0
    %v379 = vmax.f32 %v347, 0.0
    %v380 = vmax.f32 %v350, 0.0
    %v381 = vmax.f32 %v355, 0.0
    %v382 = vmax.f32 %v358, 0.0
    %v383 = vmax.f32 %v363, 0.0
    %v384 = vmax.f32 %v366, 0.0
    %v385 = vpack.c.bf16 %v370, %v369
    %v386 = vpack.c.bf16 %v372, %v371
    %v387 = vpack.c.bf16 %v374, %v373
    %v388 = vpack.c.bf16 %v376, %v375
    %v389 = vpack.c.bf16 %v378, %v377
    %v390 = vpack.c.bf16 %v380, %v379
    %v391 = vpack.c.bf16 %v382, %v381
    %v392 = vpack.c.bf16 %v384, %v383
    %v393 = vld [vmem:[#allocation8] sm:$0xf]
    %v394 = vld [vmem:[#allocation8 + $0x4] sm:$0xf]
    %v395 = vld [vmem:[#allocation8 + $0x8] sm:$0xf]
    %v396 = vld [vmem:[#allocation8 + $0xc] sm:$0xf]
    %v397 = vld [vmem:[#allocation8 + $0x10] sm:$0xf]
    %v398 = vld [vmem:[#allocation8 + $0x14] sm:$0xf]
    %v399 = vld [vmem:[#allocation8 + $0x18] sm:$0xf]
    %v400 = vld [vmem:[#allocation8 + $0x1c] sm:$0xf]
    %v401 = vld [vmem:[#allocation8 + $0x20] sm:$0xf]
    %v402 = vld [vmem:[#allocation8 + $0x24] sm:$0xf]
    %v403 = vld [vmem:[#allocation8 + $0x28] sm:$0xf]
    %v404 = vld [vmem:[#allocation8 + $0x2c] sm:$0xf]
    %v405 = vld [vmem:[#allocation8 + $0x30] sm:$0xf]
    %v406 = vld [vmem:[#allocation8 + $0x34] sm:$0xf]
    %v407 = vld [vmem:[#allocation8 + $0x38] sm:$0xf]
    %v408 = vld [vmem:[#allocation8 + $0x3c] sm:$0xf]
    %v409 = vld [vmem:[#allocation10] sm:$0x1]
    %v411 = vlaneseq
    %v412 = vshrl.u32 %v411, 7
    %v413 = vsub.s32 0, %v412
    %v414 = vrot.slane %v409, %v413
    %v432 = vunpack.c.l.b16 %v393
    %v433 = vunpack.c.l.b16 %v394
    %v434 = vunpack.c.l.b16 %v395
    %v435 = vunpack.c.l.b16 %v396
    %v436 = vunpack.c.l.b16 %v397
    %v437 = vunpack.c.l.b16 %v398
    %v438 = vunpack.c.l.b16 %v399
    %v439 = vunpack.c.l.b16 %v400
    %v440 = vunpack.c.l.b16 %v401
    %v441 = vunpack.c.l.b16 %v402
    %v442 = vunpack.c.l.b16 %v403
    %v443 = vunpack.c.l.b16 %v404
    %v444 = vunpack.c.l.b16 %v405
    %v445 = vunpack.c.l.b16 %v406
    %v446 = vunpack.c.l.b16 %v407
    %v447 = vunpack.c.l.b16 %v408
    %v448 = vpack.c.b16 %v433, %v432
    %v449 = vpack.c.b16 %v435, %v434
    %v450 = vpack.c.b16 %v437, %v436
    %v451 = vpack.c.b16 %v439, %v438
    %v452 = vpack.c.b16 %v441, %v440
    %v453 = vpack.c.b16 %v443, %v442
    %v454 = vpack.c.b16 %v445, %v444
    %v455 = vpack.c.b16 %v447, %v446
    %464 = vmatprep.subr.bf16.mxu0 0
    %465 = vmatpush1.bf16.msra.mxu0 %v448
    %466 = vmatprep.subr.bf16.mxu0 0
    %467 = vmatpush1.bf16.msra.mxu0 %v449
    %468 = vmatprep.subr.bf16.mxu0 0
    %469 = vmatpush1.bf16.msra.mxu0 %v450
    %470 = vmatprep.subr.bf16.mxu0 0
    %471 = vmatpush1.bf16.msra.mxu0 %v451
    %472 = vmatprep.subr.bf16.mxu0 0
    %473 = vmatpush1.bf16.msra.mxu0 %v452
    %474 = vmatprep.subr.bf16.mxu0 0
    %475 = vmatpush1.bf16.msra.mxu0 %v453
    %476 = vmatprep.subr.bf16.mxu0 0
    %477 = vmatpush1.bf16.msra.mxu0 %v454
    %478 = vmatprep.subr.bf16.mxu0 0
    %479 = vmatpush1.bf16.msra.mxu0 %v455
    %480 = vmatprep.subr.bf16.mxu0 0
    %481 = vmatpush1.bf16.msra.mxu0 0
    %482 = vmatprep.subr.bf16.mxu0 0
    %483 = vmatpush1.bf16.msra.mxu0 0
    %484 = vmatprep.subr.bf16.mxu0 0
    %485 = vmatpush1.bf16.msra.mxu0 0
    %486 = vmatprep.subr.bf16.mxu0 0
    %487 = vmatpush1.bf16.msra.mxu0 0
    %488 = vmatprep.subr.bf16.mxu0 0
    %489 = vmatpush1.bf16.msra.mxu0 0
    %490 = vmatprep.subr.bf16.mxu0 0
    %491 = vmatpush1.bf16.msra.mxu0 0
    %492 = vmatprep.subr.bf16.mxu0 0
    %493 = vmatpush1.bf16.msra.mxu0 0
    %494 = vmatprep.subr.bf16.mxu0 0
    %495 = vmatpush1.bf16.msra.mxu0 0
    %496 = vmatprep.mubr.bf16.mxu0 0
    %497 = vmatmul.mubr.bf16.gmra.mrb[0].mxu0 %v385
    %v498 = vpop.f32.mrb[0].mxu0
    %v499 = vadd.f32 %v414, %v498
    %v500 = vpop.f32.mrb[0].mxu0
    %v501 = vpop.f32.mrb[0].mxu0
    %v502 = vadd.f32 %v414, %v501
    %v503 = vpop.f32.mrb[0].mxu0
    %504 = vmatprep.mubr.bf16.mxu0 0
    %505 = vmatmul.mubr.bf16.gmra.mrb[0].mxu0 %v386
    %v506 = vpop.f32.mrb[0].mxu0
    %v507 = vadd.f32 %v414, %v506
    %v508 = vpop.f32.mrb[0].mxu0
    %v509 = vpop.f32.mrb[0].mxu0
    %v510 = vadd.f32 %v414, %v509
    %v511 = vpop.f32.mrb[0].mxu0
    %512 = vmatprep.mubr.bf16.mxu0 0
    %513 = vmatmul.mubr.bf16.gmra.mrb[0].mxu0 %v387
    %v514 = vpop.f32.mrb[0].mxu0
    %v515 = vadd.f32 %v414, %v514
    %v516 = vpop.f32.mrb[0].mxu0
    %v517 = vpop.f32.mrb[0].mxu0
    %v518 = vadd.f32 %v414, %v517
    %v519 = vpop.f32.mrb[0].mxu0
    %520 = vmatprep.mubr.bf16.mxu0 0
    %521 = vmatmul.mubr.bf16.gmra.mrb[0].mxu0 %v388
    %v522 = vpop.f32.mrb[0].mxu0
    %v523 = vadd.f32 %v414, %v522
    %v524 = vpop.f32.mrb[0].mxu0
    %v525 = vpop.f32.mrb[0].mxu0
    %v526 = vadd.f32 %v414, %v525
    %v527 = vpop.f32.mrb[0].mxu0
    %528 = vmatprep.mubr.bf16.mxu0 0
    %529 = vmatmul.mubr.bf16.gmra.mrb[0].mxu0 %v389
    %v530 = vpop.f32.mrb[0].mxu0
    %v531 = vadd.f32 %v414, %v530
    %v532 = vpop.f32.mrb[0].mxu0
    %v533 = vpop.f32.mrb[0].mxu0
    %v534 = vadd.f32 %v414, %v533
    %v535 = vpop.f32.mrb[0].mxu0
    %536 = vmatprep.mubr.bf16.mxu0 0
    %537 = vmatmul.mubr.bf16.gmra.mrb[0].mxu0 %v390
    %v538 = vpop.f32.mrb[0].mxu0
    %v539 = vadd.f32 %v414, %v538
    %v540 = vpop.f32.mrb[0].mxu0
    %v541 = vpop.f32.mrb[0].mxu0
    %v542 = vadd.f32 %v414, %v541
    %v543 = vpop.f32.mrb[0].mxu0
    %544 = vmatprep.mubr.bf16.mxu0 0
    %545 = vmatmul.mubr.bf16.gmra.mrb[0].mxu0 %v391
    %v546 = vpop.f32.mrb[0].mxu0
    %v547 = vadd.f32 %v414, %v546
    %v548 = vpop.f32.mrb[0].mxu0
    %v549 = vpop.f32.mrb[0].mxu0
    %v550 = vadd.f32 %v414, %v549
    %v551 = vpop.f32.mrb[0].mxu0
    %552 = vmatprep.mubr.bf16.mxu0 0
    %553 = vmatmul.mubr.bf16.gmra.mrb[0].mxu0 %v392
    %v554 = vpop.f32.mrb[0].mxu0
    %v555 = vadd.f32 %v414, %v554
    %v556 = vpop.f32.mrb[0].mxu0
    %v557 = vpop.f32.mrb[0].mxu0
    %v558 = vadd.f32 %v414, %v557
    %v559 = vpop.f32.mrb[0].mxu0
    %560 = vdwg.mxu0
    %v561 = vadd.f32 %v499, %v177
    %v562 = vadd.f32 %v502, %v178
    %v563 = vadd.f32 %v507, %v179
    %v564 = vadd.f32 %v510, %v180
    %v565 = vadd.f32 %v515, %v181
    %v566 = vadd.f32 %v518, %v182
    %v567 = vadd.f32 %v523, %v183
    %v568 = vadd.f32 %v526, %v184
    %v569 = vadd.f32 %v531, %v185
    %v570 = vadd.f32 %v534, %v186
    %v571 = vadd.f32 %v539, %v187
    %v572 = vadd.f32 %v542, %v188
    %v573 = vadd.f32 %v547, %v189
    %v574 = vadd.f32 %v550, %v190
    %v575 = vadd.f32 %v555, %v191
    %v576 = vadd.f32 %v558, %v192
    %577 = vadd.xlane.f32.xlu0 %v561
    %v578 = vpop.xlane.xlu0 %577
    %579 = vadd.xlane.f32.xlu0 %v562
    %v580 = vpop.xlane.xlu0 %579
    %581 = vadd.xlane.f32.xlu0 %v563
    %v582 = vpop.xlane.xlu0 %581
    %583 = vadd.xlane.f32.xlu0 %v564
    %v584 = vpop.xlane.xlu0 %583
    %585 = vadd.xlane.f32.xlu0 %v565
    %v586 = vpop.xlane.xlu0 %585
    %587 = vadd.xlane.f32.xlu0 %v566
    %v588 = vpop.xlane.xlu0 %587
    %589 = vadd.xlane.f32.xlu0 %v567
    %v590 = vpop.xlane.xlu0 %589
    %591 = vadd.xlane.f32.xlu0 %v568
    %v592 = vpop.xlane.xlu0 %591
    %593 = vadd.xlane.f32.xlu0 %v569
    %v594 = vpop.xlane.xlu0 %593
    %595 = vadd.xlane.f32.xlu0 %v570
    %v596 = vpop.xlane.xlu0 %595
    %597 = vadd.xlane.f32.xlu0 %v571
    %v598 = vpop.xlane.xlu0 %597
    %599 = vadd.xlane.f32.xlu0 %v572
    %v600 = vpop.xlane.xlu0 %599
    %601 = vadd.xlane.f32.xlu0 %v573
    %v602 = vpop.xlane.xlu0 %601
    %603 = vadd.xlane.f32.xlu0 %v574
    %v604 = vpop.xlane.xlu0 %603
    %605 = vadd.xlane.f32.xlu0 %v575
    %v606 = vpop.xlane.xlu0 %605
    %607 = vadd.xlane.f32.xlu0 %v576
    %v608 = vpop.xlane.xlu0 %607
    %v609 = vmul.f32 %v578, 0.03125
    %v610 = vmul.f32 %v580, 0.03125
    %v611 = vmul.f32 %v582, 0.03125
    %v612 = vmul.f32 %v584, 0.03125
    %v613 = vmul.f32 %v586, 0.03125
    %v614 = vmul.f32 %v588, 0.03125
    %v615 = vmul.f32 %v590, 0.03125
    %v616 = vmul.f32 %v592, 0.03125
    %v617 = vmul.f32 %v594, 0.03125
    %v618 = vmul.f32 %v596, 0.03125
    %v619 = vmul.f32 %v598, 0.03125
    %v620 = vmul.f32 %v600, 0.03125
    %v621 = vmul.f32 %v602, 0.03125
    %v622 = vmul.f32 %v604, 0.03125
    %v623 = vmul.f32 %v606, 0.03125
    %v624 = vmul.f32 %v608, 0.03125
    %v625 = vlaneseq
    %v626 = vand.u32 %v625, 127
    %vm627 = vcmp.lt.s32.totalorder %v626, 32
    %v628 = vsub.f32 %v561, %v609
    %v629 = vsub.f32 %v562, %v610
    %v630 = vsub.f32 %v563, %v611
    %v631 = vsub.f32 %v564, %v612
    %v632 = vsub.f32 %v565, %v613
    %v633 = vsub.f32 %v566, %v614
    %v634 = vsub.f32 %v567, %v615
    %v635 = vsub.f32 %v568, %v616
    %v636 = vsub.f32 %v569, %v617
    %v637 = vsub.f32 %v570, %v618
    %v638 = vsub.f32 %v571, %v619
    %v639 = vsub.f32 %v572, %v620
    %v640 = vsub.f32 %v573, %v621
    %v641 = vsub.f32 %v574, %v622
    %v642 = vsub.f32 %v575, %v623
    %v643 = vsub.f32 %v576, %v624
    %v644 = vsel %vm627, %v628, 0.0
    %v645 = vsel %vm627, %v629, 0.0
    %v646 = vsel %vm627, %v630, 0.0
    %v647 = vsel %vm627, %v631, 0.0
    %v648 = vsel %vm627, %v632, 0.0
    %v649 = vsel %vm627, %v633, 0.0
    %v650 = vsel %vm627, %v634, 0.0
    %v651 = vsel %vm627, %v635, 0.0
    %v652 = vsel %vm627, %v636, 0.0
    %v653 = vsel %vm627, %v637, 0.0
    %v654 = vsel %vm627, %v638, 0.0
    %v655 = vsel %vm627, %v639, 0.0
    %v656 = vsel %vm627, %v640, 0.0
    %v657 = vsel %vm627, %v641, 0.0
    %v658 = vsel %vm627, %v642, 0.0
    %v659 = vsel %vm627, %v643, 0.0
    %v660 = vmul.f32 %v644, %v644
    %v661 = vmul.f32 %v645, %v645
    %v662 = vmul.f32 %v646, %v646
    %v663 = vmul.f32 %v647, %v647
    %v664 = vmul.f32 %v648, %v648
    %v665 = vmul.f32 %v649, %v649
    %v666 = vmul.f32 %v650, %v650
    %v667 = vmul.f32 %v651, %v651
    %v668 = vmul.f32 %v652, %v652
    %v669 = vmul.f32 %v653, %v653
    %v670 = vmul.f32 %v654, %v654
    %v671 = vmul.f32 %v655, %v655
    %v672 = vmul.f32 %v656, %v656
    %v673 = vmul.f32 %v657, %v657
    %v674 = vmul.f32 %v658, %v658
    %v675 = vmul.f32 %v659, %v659
    %676 = vadd.xlane.f32.xlu0 %v660
    %v677 = vpop.xlane.xlu0 %676
    %678 = vadd.xlane.f32.xlu0 %v661
    %v679 = vpop.xlane.xlu0 %678
    %680 = vadd.xlane.f32.xlu0 %v662
    %v681 = vpop.xlane.xlu0 %680
    %682 = vadd.xlane.f32.xlu0 %v663
    %v683 = vpop.xlane.xlu0 %682
    %684 = vadd.xlane.f32.xlu0 %v664
    %v685 = vpop.xlane.xlu0 %684
    %686 = vadd.xlane.f32.xlu0 %v665
    %v687 = vpop.xlane.xlu0 %686
    %688 = vadd.xlane.f32.xlu0 %v666
    %v689 = vpop.xlane.xlu0 %688
    %690 = vadd.xlane.f32.xlu0 %v667
    %v691 = vpop.xlane.xlu0 %690
    %692 = vadd.xlane.f32.xlu0 %v668
    %v693 = vpop.xlane.xlu0 %692
    %694 = vadd.xlane.f32.xlu0 %v669
    %v695 = vpop.xlane.xlu0 %694
    %696 = vadd.xlane.f32.xlu0 %v670
    %v697 = vpop.xlane.xlu0 %696
    %698 = vadd.xlane.f32.xlu0 %v671
    %v699 = vpop.xlane.xlu0 %698
    %700 = vadd.xlane.f32.xlu0 %v672
    %v701 = vpop.xlane.xlu0 %700
    %702 = vadd.xlane.f32.xlu0 %v673
    %v703 = vpop.xlane.xlu0 %702
    %704 = vadd.xlane.f32.xlu0 %v674
    %v705 = vpop.xlane.xlu0 %704
    %706 = vadd.xlane.f32.xlu0 %v675
    %v707 = vpop.xlane.xlu0 %706
    %v708 = vmul.f32 %v677, 0.03125
    %v709 = vmul.f32 %v679, 0.03125
    %v710 = vmul.f32 %v681, 0.03125
    %v711 = vmul.f32 %v683, 0.03125
    %v712 = vmul.f32 %v685, 0.03125
    %v713 = vmul.f32 %v687, 0.03125
    %v714 = vmul.f32 %v689, 0.03125
    %v715 = vmul.f32 %v691, 0.03125
    %v716 = vmul.f32 %v693, 0.03125
    %v717 = vmul.f32 %v695, 0.03125
    %v718 = vmul.f32 %v697, 0.03125
    %v719 = vmul.f32 %v699, 0.03125
    %v720 = vmul.f32 %v701, 0.03125
    %v721 = vmul.f32 %v703, 0.03125
    %v722 = vmul.f32 %v705, 0.03125
    %v723 = vmul.f32 %v707, 0.03125
    %v724 = vadd.f32 %v708, 1e-05
    %v725 = vadd.f32 %v709, 1e-05
    %v726 = vadd.f32 %v710, 1e-05
    %v727 = vadd.f32 %v711, 1e-05
    %v728 = vadd.f32 %v712, 1e-05
    %v729 = vadd.f32 %v713, 1e-05
    %v730 = vadd.f32 %v714, 1e-05
    %v731 = vadd.f32 %v715, 1e-05
    %v732 = vadd.f32 %v716, 1e-05
    %v733 = vadd.f32 %v717, 1e-05
    %v734 = vadd.f32 %v718, 1e-05
    %v735 = vadd.f32 %v719, 1e-05
    %v736 = vadd.f32 %v720, 1e-05
    %v737 = vadd.f32 %v721, 1e-05
    %v738 = vadd.f32 %v722, 1e-05
    %v739 = vadd.f32 %v723, 1e-05
    %v740 = vrsqrt.pop %v724
    %v741 = vrsqrt.pop %v725
    %v742 = vrsqrt.pop %v726
    %v743 = vrsqrt.pop %v727
    %v744 = vrsqrt.pop %v728
    %v745 = vrsqrt.pop %v729
    %v746 = vrsqrt.pop %v730
    %v747 = vrsqrt.pop %v731
    %v748 = vrsqrt.pop %v732
    %v749 = vrsqrt.pop %v733
    %v750 = vrsqrt.pop %v734
    %v751 = vrsqrt.pop %v735
    %v752 = vrsqrt.pop %v736
    %v753 = vrsqrt.pop %v737
    %v754 = vrsqrt.pop %v738
    %v755 = vrsqrt.pop %v739
    %v756 = vmul.f32 %v628, %v740
    %v757 = vmul.f32 %v629, %v741
    %v758 = vmul.f32 %v630, %v742
    %v759 = vmul.f32 %v631, %v743
    %v760 = vmul.f32 %v632, %v744
    %v761 = vmul.f32 %v633, %v745
    %v762 = vmul.f32 %v634, %v746
    %v763 = vmul.f32 %v635, %v747
    %v764 = vmul.f32 %v636, %v748
    %v765 = vmul.f32 %v637, %v749
    %v766 = vmul.f32 %v638, %v750
    %v767 = vmul.f32 %v639, %v751
    %v768 = vmul.f32 %v640, %v752
    %v769 = vmul.f32 %v641, %v753
    %v770 = vmul.f32 %v642, %v754
    %v771 = vmul.f32 %v643, %v755
    %v772 = vld [vmem:[#allocation11] sm:$0x1]
    %v774 = vlaneseq
    %v775 = vshrl.u32 %v774, 7
    %v776 = vsub.s32 0, %v775
    %v777 = vrot.slane %v772, %v776
    %v779 = vmul.f32 %v756, %v777
    %v780 = vmul.f32 %v757, %v777
    %v781 = vmul.f32 %v758, %v777
    %v782 = vmul.f32 %v759, %v777
    %v783 = vmul.f32 %v760, %v777
    %v784 = vmul.f32 %v761, %v777
    %v785 = vmul.f32 %v762, %v777
    %v786 = vmul.f32 %v763, %v777
    %v787 = vmul.f32 %v764, %v777
    %v788 = vmul.f32 %v765, %v777
    %v789 = vmul.f32 %v766, %v777
    %v790 = vmul.f32 %v767, %v777
    %v791 = vmul.f32 %v768, %v777
    %v792 = vmul.f32 %v769, %v777
    %v793 = vmul.f32 %v770, %v777
    %v794 = vmul.f32 %v771, %v777
    %v795 = vld [vmem:[#allocation13] sm:$0x1]
    %v797 = vlaneseq
    %v798 = vshrl.u32 %v797, 7
    %v799 = vsub.s32 0, %v798
    %v800 = vrot.slane %v795, %v799
    %v802 = vadd.f32 %v779, %v800
    %v803 = vadd.f32 %v780, %v800
    %v804 = vadd.f32 %v781, %v800
    %v805 = vadd.f32 %v782, %v800
    %v806 = vadd.f32 %v783, %v800
    %v807 = vadd.f32 %v784, %v800
    %v808 = vadd.f32 %v785, %v800
    %v809 = vadd.f32 %v786, %v800
    %v810 = vadd.f32 %v787, %v800
    %v811 = vadd.f32 %v788, %v800
    %v812 = vadd.f32 %v789, %v800
    %v813 = vadd.f32 %v790, %v800
    %v814 = vadd.f32 %v791, %v800
    %v815 = vadd.f32 %v792, %v800
    %v816 = vadd.f32 %v793, %v800
    %v817 = vadd.f32 %v794, %v800
    %v818 = vpack.c.bf16 %v803, %v802
    %v819 = vpack.c.bf16 %v805, %v804
    %v820 = vpack.c.bf16 %v807, %v806
    %v821 = vpack.c.bf16 %v809, %v808
    %v822 = vpack.c.bf16 %v811, %v810
    %v823 = vpack.c.bf16 %v813, %v812
    %v824 = vpack.c.bf16 %v815, %v814
    %v825 = vpack.c.bf16 %v817, %v816
    %v826 = vld [vmem:[#allocation14] sm:$0xf]
    %v827 = vld [vmem:[#allocation14 + $0x4] sm:$0xf]
    %v828 = vld [vmem:[#allocation14 + $0x8] sm:$0xf]
    %v829 = vld [vmem:[#allocation14 + $0xc] sm:$0xf]
    %v830 = vld [vmem:[#allocation14 + $0x10] sm:$0xf]
    %v831 = vld [vmem:[#allocation14 + $0x14] sm:$0xf]
    %v832 = vld [vmem:[#allocation14 + $0x18] sm:$0xf]
    %v833 = vld [vmem:[#allocation14 + $0x1c] sm:$0xf]
    %v834 = vld [vmem:[#allocation14 + $0x20] sm:$0xf]
    %v835 = vld [vmem:[#allocation14 + $0x24] sm:$0xf]
    %v836 = vld [vmem:[#allocation14 + $0x28] sm:$0xf]
    %v837 = vld [vmem:[#allocation14 + $0x2c] sm:$0xf]
    %v838 = vld [vmem:[#allocation14 + $0x30] sm:$0xf]
    %v839 = vld [vmem:[#allocation14 + $0x34] sm:$0xf]
    %v840 = vld [vmem:[#allocation14 + $0x38] sm:$0xf]
    %v841 = vld [vmem:[#allocation14 + $0x3c] sm:$0xf]
    %v842 = vld [vmem:[#allocation16] sm:$0x1]
    %v844 = vlaneseq
    %v845 = vshrl.u32 %v844, 7
    %v846 = vsub.s32 0, %v845
    %v847 = vrot.slane %v842, %v846
    %v865 = vunpack.c.l.b16 %v826
    %v866 = vunpack.c.l.b16 %v827
    %v867 = vunpack.c.l.b16 %v828
    %v868 = vunpack.c.l.b16 %v829
    %v869 = vunpack.c.l.b16 %v830
    %v870 = vunpack.c.l.b16 %v831
    %v871 = vunpack.c.l.b16 %v832
    %v872 = vunpack.c.l.b16 %v833
    %v873 = vunpack.c.l.b16 %v834
    %v874 = vunpack.c.l.b16 %v835
    %v875 = vunpack.c.l.b16 %v836
    %v876 = vunpack.c.l.b16 %v837
    %v877 = vunpack.c.l.b16 %v838
    %v878 = vunpack.c.l.b16 %v839
    %v879 = vunpack.c.l.b16 %v840
    %v880 = vunpack.c.l.b16 %v841
    %v881 = vpack.c.b16 %v866, %v865
    %v882 = vpack.c.b16 %v868, %v867
    %v883 = vpack.c.b16 %v870, %v869
    %v884 = vpack.c.b16 %v872, %v871
    %v885 = vpack.c.b16 %v874, %v873
    %v886 = vpack.c.b16 %v876, %v875
    %v887 = vpack.c.b16 %v878, %v877
    %v888 = vpack.c.b16 %v880, %v879
    %897 = vmatprep.subr.bf16.mxu0 0
    %898 = vmatpush1.bf16.msra.mxu0 %v881
    %899 = vmatprep.subr.bf16.mxu0 0
    %900 = vmatpush1.bf16.msra.mxu0 %v882
    %901 = vmatprep.subr.bf16.mxu0 0
    %902 = vmatpush1.bf16.msra.mxu0 %v883
    %903 = vmatprep.subr.bf16.mxu0 0
    %904 = vmatpush1.bf16.msra.mxu0 %v884
    %905 = vmatprep.subr.bf16.mxu0 0
    %906 = vmatpush1.bf16.msra.mxu0 %v885
    %907 = vmatprep.subr.bf16.mxu0 0
    %908 = vmatpush1.bf16.msra.mxu0 %v886
    %909 = vmatprep.subr.bf16.mxu0 0
    %910 = vmatpush1.bf16.msra.mxu0 %v887
    %911 = vmatprep.subr.bf16.mxu0 0
    %912 = vmatpush1.bf16.msra.mxu0 %v888
    %913 = vmatprep.subr.bf16.mxu0 0
    %914 = vmatpush1.bf16.msra.mxu0 0
    %915 = vmatprep.subr.bf16.mxu0 0
    %916 = vmatpush1.bf16.msra.mxu0 0
    %917 = vmatprep.subr.bf16.mxu0 0
    %918 = vmatpush1.bf16.msra.mxu0 0
    %919 = vmatprep.subr.bf16.mxu0 0
    %920 = vmatpush1.bf16.msra.mxu0 0
    %921 = vmatprep.subr.bf16.mxu0 0
    %922 = vmatpush1.bf16.msra.mxu0 0
    %923 = vmatprep.subr.bf16.mxu0 0
    %924 = vmatpush1.bf16.msra.mxu0 0
    %925 = vmatprep.subr.bf16.mxu0 0
    %926 = vmatpush1.bf16.msra.mxu0 0
    %927 = vmatprep.subr.bf16.mxu0 0
    %928 = vmatpush1.bf16.msra.mxu0 0
    %929 = vmatprep.mubr.bf16.mxu0 0
    %930 = vmatmul.mubr.bf16.gmra.mrb[0].mxu0 %v818
    %v931 = vpop.f32.mrb[0].mxu0
    %v932 = vadd.f32 %v847, %v931
    %v933 = vpop.f32.mrb[0].mxu0
    %v934 = vpop.f32.mrb[0].mxu0
    %v935 = vadd.f32 %v847, %v934
    %v936 = vpop.f32.mrb[0].mxu0
    %937 = vmatprep.mubr.bf16.mxu0 0
    %938 = vmatmul.mubr.bf16.gmra.mrb[0].mxu0 %v819
    %v939 = vpop.f32.mrb[0].mxu0
    %v940 = vadd.f32 %v847, %v939
    %v941 = vpop.f32.mrb[0].mxu0
    %v942 = vpop.f32.mrb[0].mxu0
    %v943 = vadd.f32 %v847, %v942
    %v944 = vpop.f32.mrb[0].mxu0
    %945 = vmatprep.mubr.bf16.mxu0 0
    %946 = vmatmul.mubr.bf16.gmra.mrb[0].mxu0 %v820
    %v947 = vpop.f32.mrb[0].mxu0
    %v948 = vadd.f32 %v847, %v947
    %v949 = vpop.f32.mrb[0].mxu0
    %v950 = vpop.f32.mrb[0].mxu0
    %v951 = vadd.f32 %v847, %v950
    %v952 = vpop.f32.mrb[0].mxu0
    %953 = vmatprep.mubr.bf16.mxu0 0
    %954 = vmatmul.mubr.bf16.gmra.mrb[0].mxu0 %v821
    %v955 = vpop.f32.mrb[0].mxu0
    %v956 = vadd.f32 %v847, %v955
    %v957 = vpop.f32.mrb[0].mxu0
    %v958 = vpop.f32.mrb[0].mxu0
    %v959 = vadd.f32 %v847, %v958
    %v960 = vpop.f32.mrb[0].mxu0
    %961 = vmatprep.mubr.bf16.mxu0 0
    %962 = vmatmul.mubr.bf16.gmra.mrb[0].mxu0 %v822
    %v963 = vpop.f32.mrb[0].mxu0
    %v964 = vadd.f32 %v847, %v963
    %v965 = vpop.f32.mrb[0].mxu0
    %v966 = vpop.f32.mrb[0].mxu0
    %v967 = vadd.f32 %v847, %v966
    %v968 = vpop.f32.mrb[0].mxu0
    %969 = vmatprep.mubr.bf16.mxu0 0
    %970 = vmatmul.mubr.bf16.gmra.mrb[0].mxu0 %v823
    %v971 = vpop.f32.mrb[0].mxu0
    %v972 = vadd.f32 %v847, %v971
    %v973 = vpop.f32.mrb[0].mxu0
    %v974 = vpop.f32.mrb[0].mxu0
    %v975 = vadd.f32 %v847, %v974
    %v976 = vpop.f32.mrb[0].mxu0
    %977 = vmatprep.mubr.bf16.mxu0 0
    %978 = vmatmul.mubr.bf16.gmra.mrb[0].mxu0 %v824
    %v979 = vpop.f32.mrb[0].mxu0
    %v980 = vadd.f32 %v847, %v979
    %v981 = vpop.f32.mrb[0].mxu0
    %v982 = vpop.f32.mrb[0].mxu0
    %v983 = vadd.f32 %v847, %v982
    %v984 = vpop.f32.mrb[0].mxu0
    %985 = vmatprep.mubr.bf16.mxu0 0
    %986 = vmatmul.mubr.bf16.gmra.mrb[0].mxu0 %v825
    %v987 = vpop.f32.mrb[0].mxu0
    %v988 = vadd.f32 %v847, %v987
    %v989 = vpop.f32.mrb[0].mxu0
    %v990 = vpop.f32.mrb[0].mxu0
    %v991 = vadd.f32 %v847, %v990
    %v992 = vpop.f32.mrb[0].mxu0
    %993 = vdwg.mxu0
    %v994 = vmul.f32 %v932, %v932
    %v995 = vmul.f32 %v935, %v935
    %v996 = vmul.f32 %v940, %v940
    %v997 = vmul.f32 %v943, %v943
    %v998 = vmul.f32 %v948, %v948
    %v999 = vmul.f32 %v951, %v951
    %v1000 = vmul.f32 %v956, %v956
    %v1001 = vmul.f32 %v959, %v959
    %v1002 = vmul.f32 %v964, %v964
    %v1003 = vmul.f32 %v967, %v967
    %v1004 = vmul.f32 %v972, %v972
    %v1005 = vmul.f32 %v975, %v975
    %v1006 = vmul.f32 %v980, %v980
    %v1007 = vmul.f32 %v983, %v983
    %v1008 = vmul.f32 %v988, %v988
    %v1009 = vmul.f32 %v991, %v991
    %v1010 = vmul.f32 %v932, 0.5
    %v1011 = vmul.f32 %v935, 0.5
    %v1012 = vmul.f32 %v940, 0.5
    %v1013 = vmul.f32 %v943, 0.5
    %v1014 = vmul.f32 %v948, 0.5
    %v1015 = vmul.f32 %v951, 0.5
    %v1016 = vmul.f32 %v956, 0.5
    %v1017 = vmul.f32 %v959, 0.5
    %v1018 = vmul.f32 %v964, 0.5
    %v1019 = vmul.f32 %v967, 0.5
    %v1020 = vmul.f32 %v972, 0.5
    %v1021 = vmul.f32 %v975, 0.5
    %v1022 = vmul.f32 %v980, 0.5
    %v1023 = vmul.f32 %v983, 0.5
    %v1024 = vmul.f32 %v988, 0.5
    %v1025 = vmul.f32 %v991, 0.5
    %v1026 = vmul.f32 %v932, 0.7978846
    %v1027 = vmul.f32 %v935, 0.7978846
    %v1028 = vmul.f32 %v940, 0.7978846
    %v1029 = vmul.f32 %v943, 0.7978846
    %v1030 = vmul.f32 %v948, 0.7978846
    %v1031 = vmul.f32 %v951, 0.7978846
    %v1032 = vmul.f32 %v956, 0.7978846
    %v1033 = vmul.f32 %v959, 0.7978846
    %v1034 = vmul.f32 %v964, 0.7978846
    %v1035 = vmul.f32 %v967, 0.7978846
    %v1036 = vmul.f32 %v972, 0.7978846
    %v1037 = vmul.f32 %v975, 0.7978846
    %v1038 = vmul.f32 %v980, 0.7978846
    %v1039 = vmul.f32 %v983, 0.7978846
    %v1040 = vmul.f32 %v988, 0.7978846
    %v1041 = vmul.f32 %v991, 0.7978846
    %v1042 = vmul.f32 %v994, 0.044715
    %v1043 = vmul.f32 %v995, 0.044715
    %v1044 = vmul.f32 %v996, 0.044715
    %v1045 = vmul.f32 %v997, 0.044715
    %v1046 = vmul.f32 %v998, 0.044715
    %v1047 = vmul.f32 %v999, 0.044715
    %v1048 = vmul.f32 %v1000, 0.044715
    %v1049 = vmul.f32 %v1001, 0.044715
    %v1050 = vmul.f32 %v1002, 0.044715
    %v1051 = vmul.f32 %v1003, 0.044715
    %v1052 = vmul.f32 %v1004, 0.044715
    %v1053 = vmul.f32 %v1005, 0.044715
    %v1054 = vmul.f32 %v1006, 0.044715
    %v1055 = vmul.f32 %v1007, 0.044715
    %v1056 = vmul.f32 %v1008, 0.044715
    %v1057 = vmul.f32 %v1009, 0.044715
    %v1058 = vadd.f32 %v1042, 1.0
    %v1059 = vadd.f32 %v1043, 1.0
    %v1060 = vadd.f32 %v1044, 1.0
    %v1061 = vadd.f32 %v1045, 1.0
    %v1062 = vadd.f32 %v1046, 1.0
    %v1063 = vadd.f32 %v1047, 1.0
    %v1064 = vadd.f32 %v1048, 1.0
    %v1065 = vadd.f32 %v1049, 1.0
    %v1066 = vadd.f32 %v1050, 1.0
    %v1067 = vadd.f32 %v1051, 1.0
    %v1068 = vadd.f32 %v1052, 1.0
    %v1069 = vadd.f32 %v1053, 1.0
    %v1070 = vadd.f32 %v1054, 1.0
    %v1071 = vadd.f32 %v1055, 1.0
    %v1072 = vadd.f32 %v1056, 1.0
    %v1073 = vadd.f32 %v1057, 1.0
    %v1074 = vmul.f32 %v1026, %v1058
    %v1075 = vmul.f32 %v1027, %v1059
    %v1076 = vmul.f32 %v1028, %v1060
    %v1077 = vmul.f32 %v1029, %v1061
    %v1078 = vmul.f32 %v1030, %v1062
    %v1079 = vmul.f32 %v1031, %v1063
    %v1080 = vmul.f32 %v1032, %v1064
    %v1081 = vmul.f32 %v1033, %v1065
    %v1082 = vmul.f32 %v1034, %v1066
    %v1083 = vmul.f32 %v1035, %v1067
    %v1084 = vmul.f32 %v1036, %v1068
    %v1085 = vmul.f32 %v1037, %v1069
    %v1086 = vmul.f32 %v1038, %v1070
    %v1087 = vmul.f32 %v1039, %v1071
    %v1088 = vmul.f32 %v1040, %v1072
    %v1089 = vmul.f32 %v1041, %v1073
    %v1090 = vtanh.pop %v1074
    %v1091 = vtanh.pop %v1075
    %v1092 = vtanh.pop %v1076
    %v1093 = vtanh.pop %v1077
    %v1094 = vtanh.pop %v1078
    %v1095 = vtanh.pop %v1079
    %v1096 = vtanh.pop %v1080
    %v1097 = vtanh.pop %v1081
    %v1098 = vtanh.pop %v1082
    %v1099 = vtanh.pop %v1083
    %v1100 = vtanh.pop %v1084
    %v1101 = vtanh.pop %v1085
    %v1102 = vtanh.pop %v1086
    %v1103 = vtanh.pop %v1087
    %v1104 = vtanh.pop %v1088
    %v1105 = vtanh.pop %v1089
    %v1106 = vadd.f32 %v1090, 1.0
    %v1107 = vadd.f32 %v1091, 1.0
    %v1108 = vadd.f32 %v1092, 1.0
    %v1109 = vadd.f32 %v1093, 1.0
    %v1110 = vadd.f32 %v1094, 1.0
    %v1111 = vadd.f32 %v1095, 1.0
    %v1112 = vadd.f32 %v1096, 1.0
    %v1113 = vadd.f32 %v1097, 1.0
    %v1114 = vadd.f32 %v1098, 1.0
    %v1115 = vadd.f32 %v1099, 1.0
    %v1116 = vadd.f32 %v1100, 1.0
    %v1117 = vadd.f32 %v1101, 1.0
    %v1118 = vadd.f32 %v1102, 1.0
    %v1119 = vadd.f32 %v1103, 1.0
    %v1120 = vadd.f32 %v1104, 1.0
    %v1121 = vadd.f32 %v1105, 1.0
    %v1122 = vmul.f32 %v1010, %v1106
    %v1123 = vmul.f32 %v1011, %v1107
    %v1124 = vmul.f32 %v1012, %v1108
    %v1125 = vmul.f32 %v1013, %v1109
    %v1126 = vmul.f32 %v1014, %v1110
    %v1127 = vmul.f32 %v1015, %v1111
    %v1128 = vmul.f32 %v1016, %v1112
    %v1129 = vmul.f32 %v1017, %v1113
    %v1130 = vmul.f32 %v1018, %v1114
    %v1131 = vmul.f32 %v1019, %v1115
    %v1132 = vmul.f32 %v1020, %v1116
    %v1133 = vmul.f32 %v1021, %v1117
    %v1134 = vmul.f32 %v1022, %v1118
    %v1135 = vmul.f32 %v1023, %v1119
    %v1136 = vmul.f32 %v1024, %v1120
    %v1137 = vmul.f32 %v1025, %v1121
    %v1138 = vpack.c.bf16 %v1123, %v1122
    %v1139 = vpack.c.bf16 %v1125, %v1124
    %v1140 = vpack.c.bf16 %v1127, %v1126
    %v1141 = vpack.c.bf16 %v1129, %v1128
    %v1142 = vpack.c.bf16 %v1131, %v1130
    %v1143 = vpack.c.bf16 %v1133, %v1132
    %v1144 = vpack.c.bf16 %v1135, %v1134
    %v1145 = vpack.c.bf16 %v1137, %v1136
    %v1146 = vld [vmem:[#allocation17] sm:$0xf]
    %v1147 = vld [vmem:[#allocation17 + $0x4] sm:$0xf]
    %v1148 = vld [vmem:[#allocation17 + $0x8] sm:$0xf]
    %v1149 = vld [vmem:[#allocation17 + $0xc] sm:$0xf]
    %v1150 = vld [vmem:[#allocation17 + $0x10] sm:$0xf]
    %v1151 = vld [vmem:[#allocation17 + $0x14] sm:$0xf]
    %v1152 = vld [vmem:[#allocation17 + $0x18] sm:$0xf]
    %v1153 = vld [vmem:[#allocation17 + $0x1c] sm:$0xf]
    %v1154 = vld [vmem:[#allocation17 + $0x20] sm:$0xf]
    %v1155 = vld [vmem:[#allocation17 + $0x24] sm:$0xf]
    %v1156 = vld [vmem:[#allocation17 + $0x28] sm:$0xf]
    %v1157 = vld [vmem:[#allocation17 + $0x2c] sm:$0xf]
    %v1158 = vld [vmem:[#allocation17 + $0x30] sm:$0xf]
    %v1159 = vld [vmem:[#allocation17 + $0x34] sm:$0xf]
    %v1160 = vld [vmem:[#allocation17 + $0x38] sm:$0xf]
    %v1161 = vld [vmem:[#allocation17 + $0x3c] sm:$0xf]
    %v1162 = vld [vmem:[#allocation19] sm:$0x1]
    %v1164 = vlaneseq
    %v1165 = vshrl.u32 %v1164, 7
    %v1166 = vsub.s32 0, %v1165
    %v1167 = vrot.slane %v1162, %v1166
    %v1185 = vunpack.c.l.b16 %v1146
    %v1186 = vunpack.c.l.b16 %v1147
    %v1187 = vunpack.c.l.b16 %v1148
    %v1188 = vunpack.c.l.b16 %v1149
    %v1189 = vunpack.c.l.b16 %v1150
    %v1190 = vunpack.c.l.b16 %v1151
    %v1191 = vunpack.c.l.b16 %v1152
    %v1192 = vunpack.c.l.b16 %v1153
    %v1193 = vunpack.c.l.b16 %v1154
    %v1194 = vunpack.c.l.b16 %v1155
    %v1195 = vunpack.c.l.b16 %v1156
    %v1196 = vunpack.c.l.b16 %v1157
    %v1197 = vunpack.c.l.b16 %v1158
    %v1198 = vunpack.c.l.b16 %v1159
    %v1199 = vunpack.c.l.b16 %v1160
    %v1200 = vunpack.c.l.b16 %v1161
    %v1201 = vpack.c.b16 %v1186, %v1185
    %v1202 = vpack.c.b16 %v1188, %v1187
    %v1203 = vpack.c.b16 %v1190, %v1189
    %v1204 = vpack.c.b16 %v1192, %v1191
    %v1205 = vpack.c.b16 %v1194, %v1193
    %v1206 = vpack.c.b16 %v1196, %v1195
    %v1207 = vpack.c.b16 %v1198, %v1197
    %v1208 = vpack.c.b16 %v1200, %v1199
    %1217 = vmatprep.subr.bf16.mxu0 0
    %1218 = vmatpush1.bf16.msra.mxu0 %v1201
    %1219 = vmatprep.subr.bf16.mxu0 0
    %1220 = vmatpush1.bf16.msra.mxu0 %v1202
    %1221 = vmatprep.subr.bf16.mxu0 0
    %1222 = vmatpush1.bf16.msra.mxu0 %v1203
    %1223 = vmatprep.subr.bf16.mxu0 0
    %1224 = vmatpush1.bf16.msra.mxu0 %v1204
    %1225 = vmatprep.subr.bf16.mxu0 0
    %1226 = vmatpush1.bf16.msra.mxu0 %v1205
    %1227 = vmatprep.subr.bf16.mxu0 0
    %1228 = vmatpush1.bf16.msra.mxu0 %v1206
    %1229 = vmatprep.subr.bf16.mxu0 0
    %1230 = vmatpush1.bf16.msra.mxu0 %v1207
    %1231 = vmatprep.subr.bf16.mxu0 0
    %1232 = vmatpush1.bf16.msra.mxu0 %v1208
    %1233 = vmatprep.subr.bf16.mxu0 0
    %1234 = vmatpush1.bf16.msra.mxu0 0
    %1235 = vmatprep.subr.bf16.mxu0 0
    %1236 = vmatpush1.bf16.msra.mxu0 0
    %1237 = vmatprep.subr.bf16.mxu0 0
    %1238 = vmatpush1.bf16.msra.mxu0 0
    %1239 = vmatprep.subr.bf16.mxu0 0
    %1240 = vmatpush1.bf16.msra.mxu0 0
    %1241 = vmatprep.subr.bf16.mxu0 0
    %1242 = vmatpush1.bf16.msra.mxu0 0
    %1243 = vmatprep.subr.bf16.mxu0 0
    %1244 = vmatpush1.bf16.msra.mxu0 0
    %1245 = vmatprep.subr.bf16.mxu0 0
    %1246 = vmatpush1.bf16.msra.mxu0 0
    %1247 = vmatprep.subr.bf16.mxu0 0
    %1248 = vmatpush1.bf16.msra.mxu0 0
    %1249 = vmatprep.mubr.bf16.mxu0 0
    %1250 = vmatmul.mubr.bf16.gmra.mrb[0].mxu0 %v1138
    %v1251 = vpop.f32.mrb[0].mxu0
    %v1252 = vadd.f32 %v1167, %v1251
    %v1253 = vpop.f32.mrb[0].mxu0
    %v1254 = vpop.f32.mrb[0].mxu0
    %v1255 = vadd.f32 %v1167, %v1254
    %v1256 = vpop.f32.mrb[0].mxu0
    %1257 = vmatprep.mubr.bf16.mxu0 0
    %1258 = vmatmul.mubr.bf16.gmra.mrb[0].mxu0 %v1139
    %v1259 = vpop.f32.mrb[0].mxu0
    %v1260 = vadd.f32 %v1167, %v1259
    %v1261 = vpop.f32.mrb[0].mxu0
    %v1262 = vpop.f32.mrb[0].mxu0
    %v1263 = vadd.f32 %v1167, %v1262
    %v1264 = vpop.f32.mrb[0].mxu0
    %1265 = vmatprep.mubr.bf16.mxu0 0
    %1266 = vmatmul.mubr.bf16.gmra.mrb[0].mxu0 %v1140
    %v1267 = vpop.f32.mrb[0].mxu0
    %v1268 = vadd.f32 %v1167, %v1267
    %v1269 = vpop.f32.mrb[0].mxu0
    %v1270 = vpop.f32.mrb[0].mxu0
    %v1271 = vadd.f32 %v1167, %v1270
    %v1272 = vpop.f32.mrb[0].mxu0
    %1273 = vmatprep.mubr.bf16.mxu0 0
    %1274 = vmatmul.mubr.bf16.gmra.mrb[0].mxu0 %v1141
    %v1275 = vpop.f32.mrb[0].mxu0
    %v1276 = vadd.f32 %v1167, %v1275
    %v1277 = vpop.f32.mrb[0].mxu0
    %v1278 = vpop.f32.mrb[0].mxu0
    %v1279 = vadd.f32 %v1167, %v1278
    %v1280 = vpop.f32.mrb[0].mxu0
    %1281 = vmatprep.mubr.bf16.mxu0 0
    %1282 = vmatmul.mubr.bf16.gmra.mrb[0].mxu0 %v1142
    %v1283 = vpop.f32.mrb[0].mxu0
    %v1284 = vadd.f32 %v1167, %v1283
    %v1285 = vpop.f32.mrb[0].mxu0
    %v1286 = vpop.f32.mrb[0].mxu0
    %v1287 = vadd.f32 %v1167, %v1286
    %v1288 = vpop.f32.mrb[0].mxu0
    %1289 = vmatprep.mubr.bf16.mxu0 0
    %1290 = vmatmul.mubr.bf16.gmra.mrb[0].mxu0 %v1143
    %v1291 = vpop.f32.mrb[0].mxu0
    %v1292 = vadd.f32 %v1167, %v1291
    %v1293 = vpop.f32.mrb[0].mxu0
    %v1294 = vpop.f32.mrb[0].mxu0
    %v1295 = vadd.f32 %v1167, %v1294
    %v1296 = vpop.f32.mrb[0].mxu0
    %1297 = vmatprep.mubr.bf16.mxu0 0
    %1298 = vmatmul.mubr.bf16.gmra.mrb[0].mxu0 %v1144
    %v1299 = vpop.f32.mrb[0].mxu0
    %v1300 = vadd.f32 %v1167, %v1299
    %v1301 = vpop.f32.mrb[0].mxu0
    %v1302 = vpop.f32.mrb[0].mxu0
    %v1303 = vadd.f32 %v1167, %v1302
    %v1304 = vpop.f32.mrb[0].mxu0
    %1305 = vmatprep.mubr.bf16.mxu0 0
    %1306 = vmatmul.mubr.bf16.gmra.mrb[0].mxu0 %v1145
    %v1307 = vpop.f32.mrb[0].mxu0
    %v1308 = vadd.f32 %v1167, %v1307
    %v1309 = vpop.f32.mrb[0].mxu0
    %v1310 = vpop.f32.mrb[0].mxu0
    %v1311 = vadd.f32 %v1167, %v1310
    %v1312 = vpop.f32.mrb[0].mxu0
    %1313 = vdwg.mxu0
    %1314 = vst [vmem:[#allocation20] sm:$0xff] %v1252
    %1315 = vst [vmem:[#allocation20 + $0x8] sm:$0xff] %v1255
    %1316 = vst [vmem:[#allocation20 + $0x10] sm:$0xff] %v1260
    %1317 = vst [vmem:[#allocation20 + $0x18] sm:$0xff] %v1263
    %1318 = vst [vmem:[#allocation20 + $0x20] sm:$0xff] %v1268
    %1319 = vst [vmem:[#allocation20 + $0x28] sm:$0xff] %v1271
    %1320 = vst [vmem:[#allocation20 + $0x30] sm:$0xff] %v1276
    %1321 = vst [vmem:[#allocation20 + $0x38] sm:$0xff] %v1279
    %1322 = vst [vmem:[#allocation20 + $0x40] sm:$0xff] %v1284
    %1323 = vst [vmem:[#allocation20 + $0x48] sm:$0xff] %v1287
    %1324 = vst [vmem:[#allocation20 + $0x50] sm:$0xff] %v1292
    %1325 = vst [vmem:[#allocation20 + $0x58] sm:$0xff] %v1295
    %1326 = vst [vmem:[#allocation20 + $0x60] sm:$0xff] %v1300
    %1327 = vst [vmem:[#allocation20 + $0x68] sm:$0xff] %v1303
    %1328 = vst [vmem:[#allocation20 + $0x70] sm:$0xff] %v1308
    %1329 = vst [vmem:[#allocation20 + $0x78] sm:$0xff] %v1311
    // Predicated region
    $region90: #{tpu_custom_call.1} parent=1 // pred_check
      _
    $region91: #{tpu_custom_call.1} parent=1 // pred_check_branch
      %1331 = sbr.rel (0) target = $region93
    $region92: #{tpu_custom_call.1} parent=1 // pred_region
      %s1333 = ssub.s32 2048, 2048
      %1334 = vsyncadd [#allocation4], %s1333
      %s1335 = sshll.u32 [#allocation20], 4
      %s1336 = int_to_ptr.vmem [resolvable:$true] %s1335
      %1341 = dma.vmem_to_hbm [thread:$0]  %s1336, 2048, %s11, [#allocation4], 128, 128, 8
    $region93: #{tpu_custom_call.1} parent=1 // pred_fallthru
      _
    // Predicated region
    $region94: #{tpu_custom_call.1} parent=1 // pred_check
      _
    $region95: #{tpu_custom_call.1} parent=1 // pred_check_branch
      %1343 = sbr.rel (0) target = $region97
    $region96: #{tpu_custom_call.1} parent=1 // pred_region
      %1344 = dma.done [#allocation4], 2048
    $region97: #{tpu_custom_call.1} parent=1 // pred_fallthru
      _
    %1345 = vsyncpa [#allocation3], 1
    %1346 = vsyncpa [#allocation6], 1
    %1347 = vsyncpa [#allocation9], 1
    %1348 = vsyncpa [#allocation12], 1
    %1349 = vsyncpa [#allocation15], 1
    %1350 = vsyncpa [#allocation18], 1
    %1351 = vsyncpa [#allocation4], 1

</llo_original>
